<compile_context>
chip_gen: v7x
topology: tpu7x:2x2x1
jax: 0.10.0
libtpu: 0.0.40
codegen_flags: <defaults>
</compile_context>

<pallas_src>
import functools

import jax
import jax.numpy as jnp
from jax.experimental import pallas as pl
from jax.experimental.pallas import tpu as pltpu


def _round8(n):
    return ((n + 7) // 8) * 8


# ----------------------------------------------------------------------------
# Fused kernel: conv3x3+BN1+ReLU -> conv3x3+BN2 -> +identity -> ReLU
# ----------------------------------------------------------------------------
def _basic_block_kernel(x_ref, w1_ref, b1_ref, w2_ref, b2_ref, mask_ref, o_ref,
                        xpad_ref, mid_ref, col_ref, *, H, W, d1, d2):
    # x_ref:    (1, H, W, Cin)        input image (NHWC block)
    # w1_ref:   (9*Cin, Cpl)          conv1 weights (BN1 scale folded), taps flattened
    # b1_ref:   (1, Cpl)              BN1 folded bias
    # w2_ref:   (9*Cpl, Cpl)          conv2 weights (BN2 scale folded), taps flattened
    # b2_ref:   (1, Cpl)              BN2 folded bias
    # mask_ref: (H*Wp1, 1) f32        1.0 on real-pixel columns of the wide grid
    # o_ref:    (1, H*Wp2, Cpl)       output in "wide" layout (wrapper strips halo cols)
    # xpad_ref: VMEM (R1, Cin)        flat zero-padded input
    # mid_ref:  VMEM (R2, Cpl)        flat zero-padded conv1 output
    # col_ref:  VMEM (rows, 9*Cpl)    shared im2col slab for both convs
    cin = x_ref.shape[-1]
    cpl = o_ref.shape[-1]
    Wp1, Wp2 = W + 2 * d1, W + 2 * d2
    nw1, nw2 = H * Wp1, H * Wp2                    # "wide" row counts (incl. halo cols)
    R1, R2 = xpad_ref.shape[0], mid_ref.shape[0]
    cdt = xpad_ref.dtype                           # compute dtype (f32 default)

    # ---- stage input into the flat padded scratch ---------------------------
    # Zero only the thin halo strips (cheap, done every step so there is no
    # first-iteration / cross-core init hazard); interior rows are contiguous
    # (W, Cin) stores.
    xpad_ref[0:d1 * Wp1 + d1, :] = jnp.zeros((d1 * Wp1 + d1, cin), cdt)
    for i in range(H):
        base = (i + d1) * Wp1 + d1
        xpad_ref[base:base + W, :] = x_ref[0, i].astype(cdt)
        if i + 1 < H:
            xpad_ref[base + W:base + W + 2 * d1, :] = jnp.zeros((2 * d1, cin), cdt)
    tail1 = (H + d1) * Wp1 - d1
    xpad_ref[tail1:R1, :] = jnp.zeros((R1 - tail1, cin), cdt)

    # ---- conv1: im2col (9 contiguous flat slices) + ONE fat MXU matmul ------
    for k in range(9):
        ky, kx = divmod(k, 3)
        off = (ky * Wp1 + kx) * d1
        col_ref[0:nw1, k * cin:(k + 1) * cin] = xpad_ref[off:off + nw1, :]
    y1 = jnp.dot(col_ref[0:nw1, 0:9 * cin], w1_ref[...],
                 preferred_element_type=jnp.float32)
    y1 = jnp.maximum(y1 + b1_ref[...], 0.0)        # (nw1, Cpl) f32, wide layout

    # ---- stage conv1 output into conv2's padded scratch ----------------------
    mid_ref[0:d2 * Wp2 + d2, :] = jnp.zeros((d2 * Wp2 + d2, cpl), cdt)
    if d1 == d2:
        # identical padded geometry: a single contiguous store; the column-mask
        # writes zeros into the halo columns so they never need re-zeroing.
        mid_ref[d2 * Wp2 + d2:d2 * Wp2 + d2 + nw1, :] = (
            (y1 * mask_ref[...]).astype(cdt))
        tail2 = d2 * Wp2 + d2 + nw1
    else:
        for i in range(H):
            base = (i + d2) * Wp2 + d2
            mid_ref[base:base + W, :] = y1[i * Wp1:i * Wp1 + W, :].astype(cdt)
            if i + 1 < H:
                mid_ref[base + W:base + W + 2 * d2, :] = jnp.zeros((2 * d2, cpl), cdt)
        tail2 = (H + d2) * Wp2 - d2
    mid_ref[tail2:R2, :] = jnp.zeros((R2 - tail2, cpl), cdt)

    # ---- conv2: im2col + ONE fat matmul + folded BN2 -------------------------
    for k in range(9):
        ky, kx = divmod(k, 3)
        off = (ky * Wp2 + kx) * d2
        col_ref[0:nw2, k * cpl:(k + 1) * cpl] = mid_ref[off:off + nw2, :]
    y2 = jnp.dot(col_ref[0:nw2, 0:9 * cpl], w2_ref[...],
                 preferred_element_type=jnp.float32)
    y2 = y2 + b2_ref[...]

    # ---- residual add + ReLU; store in wide layout (wrapper strips halo) -----
    if d1 == d2:
        # identity comes straight from the already-staged padded input slab
        iden = xpad_ref[d1 * Wp1 + d1:d1 * Wp1 + d1 + nw2, :].astype(jnp.float32)
        o_ref[0] = jnp.maximum(y2 + iden, 0.0).astype(o_ref.dtype)
    else:
        for i in range(H):
            row = y2[i * Wp2:i * Wp2 + W, :] + x_ref[0, i].astype(jnp.float32)
            o_ref[0, i * Wp2:i * Wp2 + W, :] = jnp.maximum(row, 0.0).astype(o_ref.dtype)


# ----------------------------------------------------------------------------
# Wrapper: NCHW in -> NCHW out, BN folding, single fused pallas_call per block
# ----------------------------------------------------------------------------
def basic_block_v1b(x_nchw, w1, bn1, w2, bn2, *, stride=1, dilation=1,
                    previous_dilation=1, eps=1e-5, mxu_dtype=None):
    """bn1 / bn2 = (gamma, beta, running_mean, running_var); weights in HWIO."""
    assert stride == 1, "stride > 1 not implemented"  # TODO(synk): strided conv1
    g1, be1, m1, v1 = bn1
    g2, be2, m2, v2 = bn2
    N, cin, H, W = x_nchw.shape
    cpl = w1.shape[-1]
    assert w1.shape == (3, 3, cin, cpl) and w2.shape == (3, 3, cpl, cpl)
    assert cin == cpl, "downsample branch not implemented (inplanes must equal planes)"

    d1, d2 = int(dilation), int(previous_dilation)
    Wp1, Wp2 = W + 2 * d1, W + 2 * d2
    nw1, nw2 = H * Wp1, H * Wp2
    R1 = _round8((H + 2 * d1) * Wp1 + 2 * d1)
    R2 = _round8((H + 2 * d2) * Wp2 + 2 * d2)
    col_rows = _round8(max(nw1, nw2))

    # Fold BN (inference / running stats) into conv weights + bias, flatten taps
    # so each conv becomes one (H*Wpad, 9*C) @ (9*C, C) matmul.
    s1 = g1 / jnp.sqrt(v1 + eps)
    s2 = g2 / jnp.sqrt(v2 + eps)
    cdt = jnp.dtype(mxu_dtype) if mxu_dtype is not None else jnp.dtype(x_nchw.dtype)
    w1_eff = (w1 * s1[None, None, None, :]).reshape(9 * cin, cpl).astype(cdt)
    w2_eff = (w2 * s2[None, None, None, :]).reshape(9 * cpl, cpl).astype(cdt)
    b1_eff = (be1 - m1 * s1)[None, :].astype(jnp.float32)
    b2_eff = (be2 - m2 * s2)[None, :].astype(jnp.float32)

    # 1.0 on real-pixel columns of the conv1 wide grid, 0.0 on halo columns
    mask = ((jnp.arange(nw1) % Wp1) < W).astype(jnp.float32).reshape(nw1, 1)

    x = jnp.transpose(x_nchw, (0, 2, 3, 1))          # NCHW -> NHWC (C on lanes)
    kernel = functools.partial(_basic_block_kernel, H=H, W=W, d1=d1, d2=d2)

    # explicit scoped-VMEM budget (scratch + double-buffered I/O + temporaries)
    itm = jnp.dtype(cdt).itemsize
    xit = jnp.dtype(x.dtype).itemsize
    need = ((R1 * cin + R2 * cpl + col_rows * 9 * cpl) * itm
            + 2 * (H * W * cin + nw2 * cpl) * xit
            + 2 * (9 * cin * cpl + 9 * cpl * cpl) * itm
            + 4 * nw2 * cpl * 4)
    vmem_limit = int(min(100 * 2 ** 20, max(32 * 2 ** 20, need + (8 << 20))))

    out_wide = pl.pallas_call(
        kernel,
        out_shape=jax.ShapeDtypeStruct((N, nw2, cpl), x.dtype),
        grid_spec=pltpu.PrefetchScalarGridSpec(
            num_scalar_prefetch=0,
            grid=(N,),
            in_specs=[
                pl.BlockSpec((1, H, W, cin), lambda b: (b, 0, 0, 0)),
                pl.BlockSpec((9 * cin, cpl), lambda b: (0, 0)),
                pl.BlockSpec((1, cpl), lambda b: (0, 0)),
                pl.BlockSpec((9 * cpl, cpl), lambda b: (0, 0)),
                pl.BlockSpec((1, cpl), lambda b: (0, 0)),
                pl.BlockSpec((nw1, 1), lambda b: (0, 0)),
            ],
            out_specs=pl.BlockSpec((1, nw2, cpl), lambda b: (b, 0, 0)),
            scratch_shapes=[
                pltpu.VMEM((R1, cin), cdt),
                pltpu.VMEM((R2, cpl), cdt),
                pltpu.VMEM((col_rows, 9 * cpl), cdt),
            ],
        ),
        compiler_params=pltpu.CompilerParams(
            dimension_semantics=("parallel",),
            vmem_limit_bytes=vmem_limit),
    )(x, w1_eff, b1_eff, w2_eff, b2_eff, mask)

    # strip the halo columns of the wide output, return NCHW
    out = out_wide.reshape(N, H, Wp2, cpl)[:, :, :W, :]
    return jnp.transpose(out, (0, 3, 1, 2))


# ----------------------------------------------------------------------------
# Pure-JAX reference (for in-script numerical verification)
# ----------------------------------------------------------------------------
def _ref_forward(x_nhwc, w1, bn1, w2, bn2, d1, d2, eps=1e-5):
    def conv(x, w, d):
        return jax.lax.conv_general_dilated(
            x, w, window_strides=(1, 1), padding=[(d, d), (d, d)],
            rhs_dilation=(d, d),
            dimension_numbers=('NHWC', 'HWIO', 'NHWC'),
            precision=jax.lax.Precision.HIGHEST)

    g1, be1, m1, v1 = bn1
    g2, be2, m2, v2 = bn2
    y = conv(x_nhwc, w1, d1)
    y = (y - m1) / jnp.sqrt(v1 + eps) * g1 + be1
    y = jnp.maximum(y, 0.0)
    y = conv(y, w2, d2)
    y = (y - m2) / jnp.sqrt(v2 + eps) * g2 + be2
    return jnp.maximum(y + x_nhwc, 0.0)


if __name__ == "__main__":
    key = jax.random.PRNGKey(0)
    N, planes, H, W = 2, 32, 16, 16           # inplanes == planes (identity path)

    kx_, k1, k2, kb = jax.random.split(key, 4)
    x = jax.random.normal(kx_, (N, planes, H, W), jnp.float32)
    w1 = jax.random.normal(k1, (3, 3, planes, planes), jnp.float32) / jnp.sqrt(9.0 * planes)
    w2 = jax.random.normal(k2, (3, 3, planes, planes), jnp.float32) / jnp.sqrt(9.0 * planes)

    kg1, kb1, km1, kv1, kg2, kb2, km2, kv2 = jax.random.split(kb, 8)
    bn1 = (1.0 + 0.1 * jax.random.normal(kg1, (planes,), jnp.float32),
           0.1 * jax.random.normal(kb1, (planes,), jnp.float32),
           0.1 * jax.random.normal(km1, (planes,), jnp.float32),
           0.5 + jax.random.uniform(kv1, (planes,), jnp.float32))
    bn2 = (1.0 + 0.1 * jax.random.normal(kg2, (planes,), jnp.float32),
           0.1 * jax.random.normal(kb2, (planes,), jnp.float32),
           0.1 * jax.random.normal(km2, (planes,), jnp.float32),
           0.5 + jax.random.uniform(kv2, (planes,), jnp.float32))

    x_nhwc = jnp.transpose(x, (0, 2, 3, 1))

    # ---- default config: dilation = previous_dilation = 1 (fused fast path) ----
    out = jax.block_until_ready(basic_block_v1b(x, w1, bn1, w2, bn2))
    assert out.shape == (N, planes, H, W), out.shape
    assert bool(jnp.isfinite(out).all())
    ref = jnp.transpose(_ref_forward(x_nhwc, w1, bn1, w2, bn2, 1, 1), (0, 3, 1, 2))
    err = float(jnp.max(jnp.abs(out - ref)))
    # all-f32 path; 1e-2 leaves headroom for any multi-pass MXU rounding
    assert err < 1e-2, f"d=(1,1) max abs error vs reference: {err}"

    # ---- dilated config: dilation=2, previous_dilation=1 (general path) --------
    out2 = jax.block_until_ready(
        basic_block_v1b(x, w1, bn1, w2, bn2, dilation=2, previous_dilation=1))
    assert out2.shape == (N, planes, H, W), out2.shape
    ref2 = jnp.transpose(_ref_forward(x_nhwc, w1, bn1, w2, bn2, 2, 1), (0, 3, 1, 2))
    err2 = float(jnp.max(jnp.abs(out2 - ref2)))
    assert err2 < 1e-2, f"d=(2,1) max abs error vs reference: {err2}"

    print("KERNEL_OK")
</pallas_src>

<mosaic_0001>
module attributes {stable_mosaic.version = 11 : i64} {
  func.func @_basic_block_kernel(%arg0: i32, %arg1: memref<1x16x16x32xf32, #tpu.memory_space<vmem>>, %arg2: memref<288x32xf32, #tpu.memory_space<vmem>>, %arg3: memref<1x32xf32, #tpu.memory_space<vmem>>, %arg4: memref<288x32xf32, #tpu.memory_space<vmem>>, %arg5: memref<1x32xf32, #tpu.memory_space<vmem>>, %arg6: memref<288x1xf32, #tpu.memory_space<vmem>>, %arg7: memref<1x288x32xf32, #tpu.memory_space<vmem>>, %arg8: memref<328x32xf32, #tpu.memory_space<vmem>>, %arg9: memref<328x32xf32, #tpu.memory_space<vmem>>, %arg10: memref<288x288xf32, #tpu.memory_space<vmem>>) attributes {dimension_semantics = [#tpu.dimension_semantics<parallel>], iteration_bounds = array<i64: 2>, scalar_prefetch = 0 : i64, scratch_operands = 3 : i64, tpu.core_type = #tpu.core_type<tc>, window_params = [{transform_indices = @transform_0, window_bounds = array<i64: 1, 16, 16, 32>}, {pipeline_mode = #tpu.pipeline_mode<synchronous>, transform_indices = @transform_1, window_bounds = array<i64: 288, 32>}, {pipeline_mode = #tpu.pipeline_mode<synchronous>, transform_indices = @transform_2, window_bounds = array<i64: 1, 32>}, {pipeline_mode = #tpu.pipeline_mode<synchronous>, transform_indices = @transform_3, window_bounds = array<i64: 288, 32>}, {pipeline_mode = #tpu.pipeline_mode<synchronous>, transform_indices = @transform_4, window_bounds = array<i64: 1, 32>}, {pipeline_mode = #tpu.pipeline_mode<synchronous>, transform_indices = @transform_5, window_bounds = array<i64: 288, 1>}, {transform_indices = @transform_6, window_bounds = array<i64: 1, 288, 32>}]} {
    %cst = arith.constant 0.000000e+00 : f32
    %0 = vector.broadcast %cst : f32 to vector<19x32xf32>
    %c0 = arith.constant 0 : index
    %c0_0 = arith.constant 0 : index
    %1 = vector.load %arg8[%c0, %c0_0] : memref<328x32xf32, #tpu.memory_space<vmem>>, vector<19x32xf32>
    tpu.vector_store %arg8[%c0, %c0_0], %0 {strides = array<i32>} : memref<328x32xf32, #tpu.memory_space<vmem>>, vector<19x32xf32>,
    %c0_1 = arith.constant 0 : index
    %c0_2 = arith.constant 0 : index
    %c0_3 = arith.constant 0 : index
    %c0_4 = arith.constant 0 : index
    %2 = vector.load %arg1[%c0_1, %c0_2, %c0_3, %c0_4] : memref<1x16x16x32xf32, #tpu.memory_space<vmem>>, vector<1x1x16x32xf32>
    %3 = vector.shape_cast %2 : vector<1x1x16x32xf32> to vector<16x32xf32>
    %c19 = arith.constant 19 : index
    %c0_5 = arith.constant 0 : index
    %4 = vector.load %arg8[%c19, %c0_5] : memref<328x32xf32, #tpu.memory_space<vmem>>, vector<16x32xf32>
    tpu.vector_store %arg8[%c19, %c0_5], %3 {strides = array<i32>} : memref<328x32xf32, #tpu.memory_space<vmem>>, vector<16x32xf32>,
    %cst_6 = arith.constant 0.000000e+00 : f32
    %5 = vector.broadcast %cst_6 : f32 to vector<2x32xf32>
    %c35 = arith.constant 35 : index
    %c0_7 = arith.constant 0 : index
    %6 = vector.load %arg8[%c35, %c0_7] : memref<328x32xf32, #tpu.memory_space<vmem>>, vector<2x32xf32>
    tpu.vector_store %arg8[%c35, %c0_7], %5 {strides = array<i32>} : memref<328x32xf32, #tpu.memory_space<vmem>>, vector<2x32xf32>,
    %c0_8 = arith.constant 0 : index
    %c1 = arith.constant 1 : index
    %c0_9 = arith.constant 0 : index
    %c0_10 = arith.constant 0 : index
    %7 = vector.load %arg1[%c0_8, %c1, %c0_9, %c0_10] : memref<1x16x16x32xf32, #tpu.memory_space<vmem>>, vector<1x1x16x32xf32>
    %8 = vector.shape_cast %7 : vector<1x1x16x32xf32> to vector<16x32xf32>
    %c37 = arith.constant 37 : index
    %c0_11 = arith.constant 0 : index
    %9 = vector.load %arg8[%c37, %c0_11] : memref<328x32xf32, #tpu.memory_space<vmem>>, vector<16x32xf32>
    tpu.vector_store %arg8[%c37, %c0_11], %8 {strides = array<i32>} : memref<328x32xf32, #tpu.memory_space<vmem>>, vector<16x32xf32>,
    %cst_12 = arith.constant 0.000000e+00 : f32
    %10 = vector.broadcast %cst_12 : f32 to vector<2x32xf32>
    %c53 = arith.constant 53 : index
    %c0_13 = arith.constant 0 : index
    %11 = vector.load %arg8[%c53, %c0_13] : memref<328x32xf32, #tpu.memory_space<vmem>>, vector<2x32xf32>
    tpu.vector_store %arg8[%c53, %c0_13], %10 {strides = array<i32>} : memref<328x32xf32, #tpu.memory_space<vmem>>, vector<2x32xf32>,
    %c0_14 = arith.constant 0 : index
    %c2 = arith.constant 2 : index
    %c0_15 = arith.constant 0 : index
    %c0_16 = arith.constant 0 : index
    %12 = vector.load %arg1[%c0_14, %c2, %c0_15, %c0_16] : memref<1x16x16x32xf32, #tpu.memory_space<vmem>>, vector<1x1x16x32xf32>
    %13 = vector.shape_cast %12 : vector<1x1x16x32xf32> to vector<16x32xf32>
    %c55 = arith.constant 55 : index
    %c0_17 = arith.constant 0 : index
    %14 = vector.load %arg8[%c55, %c0_17] : memref<328x32xf32, #tpu.memory_space<vmem>>, vector<16x32xf32>
    tpu.vector_store %arg8[%c55, %c0_17], %13 {strides = array<i32>} : memref<328x32xf32, #tpu.memory_space<vmem>>, vector<16x32xf32>,
    %cst_18 = arith.constant 0.000000e+00 : f32
    %15 = vector.broadcast %cst_18 : f32 to vector<2x32xf32>
    %c71 = arith.constant 71 : index
    %c0_19 = arith.constant 0 : index
    %16 = vector.load %arg8[%c71, %c0_19] : memref<328x32xf32, #tpu.memory_space<vmem>>, vector<2x32xf32>
    tpu.vector_store %arg8[%c71, %c0_19], %15 {strides = array<i32>} : memref<328x32xf32, #tpu.memory_space<vmem>>, vector<2x32xf32>,
    %c0_20 = arith.constant 0 : index
    %c3 = arith.constant 3 : index
    %c0_21 = arith.constant 0 : index
    %c0_22 = arith.constant 0 : index
    %17 = vector.load %arg1[%c0_20, %c3, %c0_21, %c0_22] : memref<1x16x16x32xf32, #tpu.memory_space<vmem>>, vector<1x1x16x32xf32>
    %18 = vector.shape_cast %17 : vector<1x1x16x32xf32> to vector<16x32xf32>
    %c73 = arith.constant 73 : index
    %c0_23 = arith.constant 0 : index
    %19 = vector.load %arg8[%c73, %c0_23] : memref<328x32xf32, #tpu.memory_space<vmem>>, vector<16x32xf32>
    tpu.vector_store %arg8[%c73, %c0_23], %18 {strides = array<i32>} : memref<328x32xf32, #tpu.memory_space<vmem>>, vector<16x32xf32>,
    %cst_24 = arith.constant 0.000000e+00 : f32
    %20 = vector.broadcast %cst_24 : f32 to vector<2x32xf32>
    %c89 = arith.constant 89 : index
    %c0_25 = arith.constant 0 : index
    %21 = vector.load %arg8[%c89, %c0_25] : memref<328x32xf32, #tpu.memory_space<vmem>>, vector<2x32xf32>
    tpu.vector_store %arg8[%c89, %c0_25], %20 {strides = array<i32>} : memref<328x32xf32, #tpu.memory_space<vmem>>, vector<2x32xf32>,
    %c0_26 = arith.constant 0 : index
    %c4 = arith.constant 4 : index
    %c0_27 = arith.constant 0 : index
    %c0_28 = arith.constant 0 : index
    %22 = vector.load %arg1[%c0_26, %c4, %c0_27, %c0_28] : memref<1x16x16x32xf32, #tpu.memory_space<vmem>>, vector<1x1x16x32xf32>
    %23 = vector.shape_cast %22 : vector<1x1x16x32xf32> to vector<16x32xf32>
    %c91 = arith.constant 91 : index
    %c0_29 = arith.constant 0 : index
    %24 = vector.load %arg8[%c91, %c0_29] : memref<328x32xf32, #tpu.memory_space<vmem>>, vector<16x32xf32>
    tpu.vector_store %arg8[%c91, %c0_29], %23 {strides = array<i32>} : memref<328x32xf32, #tpu.memory_space<vmem>>, vector<16x32xf32>,
    %cst_30 = arith.constant 0.000000e+00 : f32
    %25 = vector.broadcast %cst_30 : f32 to vector<2x32xf32>
    %c107 = arith.constant 107 : index
    %c0_31 = arith.constant 0 : index
    %26 = vector.load %arg8[%c107, %c0_31] : memref<328x32xf32, #tpu.memory_space<vmem>>, vector<2x32xf32>
    tpu.vector_store %arg8[%c107, %c0_31], %25 {strides = array<i32>} : memref<328x32xf32, #tpu.memory_space<vmem>>, vector<2x32xf32>,
    %c0_32 = arith.constant 0 : index
    %c5 = arith.constant 5 : index
    %c0_33 = arith.constant 0 : index
    %c0_34 = arith.constant 0 : index
    %27 = vector.load %arg1[%c0_32, %c5, %c0_33, %c0_34] : memref<1x16x16x32xf32, #tpu.memory_space<vmem>>, vector<1x1x16x32xf32>
    %28 = vector.shape_cast %27 : vector<1x1x16x32xf32> to vector<16x32xf32>
    %c109 = arith.constant 109 : index
    %c0_35 = arith.constant 0 : index
    %29 = vector.load %arg8[%c109, %c0_35] : memref<328x32xf32, #tpu.memory_space<vmem>>, vector<16x32xf32>
    tpu.vector_store %arg8[%c109, %c0_35], %28 {strides = array<i32>} : memref<328x32xf32, #tpu.memory_space<vmem>>, vector<16x32xf32>,
    %cst_36 = arith.constant 0.000000e+00 : f32
    %30 = vector.broadcast %cst_36 : f32 to vector<2x32xf32>
    %c125 = arith.constant 125 : index
    %c0_37 = arith.constant 0 : index
    %31 = vector.load %arg8[%c125, %c0_37] : memref<328x32xf32, #tpu.memory_space<vmem>>, vector<2x32xf32>
    tpu.vector_store %arg8[%c125, %c0_37], %30 {strides = array<i32>} : memref<328x32xf32, #tpu.memory_space<vmem>>, vector<2x32xf32>,
    %c0_38 = arith.constant 0 : index
    %c6 = arith.constant 6 : index
    %c0_39 = arith.constant 0 : index
    %c0_40 = arith.constant 0 : index
    %32 = vector.load %arg1[%c0_38, %c6, %c0_39, %c0_40] : memref<1x16x16x32xf32, #tpu.memory_space<vmem>>, vector<1x1x16x32xf32>
    %33 = vector.shape_cast %32 : vector<1x1x16x32xf32> to vector<16x32xf32>
    %c127 = arith.constant 127 : index
    %c0_41 = arith.constant 0 : index
    %34 = vector.load %arg8[%c127, %c0_41] : memref<328x32xf32, #tpu.memory_space<vmem>>, vector<16x32xf32>
    tpu.vector_store %arg8[%c127, %c0_41], %33 {strides = array<i32>} : memref<328x32xf32, #tpu.memory_space<vmem>>, vector<16x32xf32>,
    %cst_42 = arith.constant 0.000000e+00 : f32
    %35 = vector.broadcast %cst_42 : f32 to vector<2x32xf32>
    %c143 = arith.constant 143 : index
    %c0_43 = arith.constant 0 : index
    %36 = vector.load %arg8[%c143, %c0_43] : memref<328x32xf32, #tpu.memory_space<vmem>>, vector<2x32xf32>
    tpu.vector_store %arg8[%c143, %c0_43], %35 {strides = array<i32>} : memref<328x32xf32, #tpu.memory_space<vmem>>, vector<2x32xf32>,
    %c0_44 = arith.constant 0 : index
    %c7 = arith.constant 7 : index
    %c0_45 = arith.constant 0 : index
    %c0_46 = arith.constant 0 : index
    %37 = vector.load %arg1[%c0_44, %c7, %c0_45, %c0_46] : memref<1x16x16x32xf32, #tpu.memory_space<vmem>>, vector<1x1x16x32xf32>
    %38 = vector.shape_cast %37 : vector<1x1x16x32xf32> to vector<16x32xf32>
    %c145 = arith.constant 145 : index
    %c0_47 = arith.constant 0 : index
    %39 = vector.load %arg8[%c145, %c0_47] : memref<328x32xf32, #tpu.memory_space<vmem>>, vector<16x32xf32>
    tpu.vector_store %arg8[%c145, %c0_47], %38 {strides = array<i32>} : memref<328x32xf32, #tpu.memory_space<vmem>>, vector<16x32xf32>,
    %cst_48 = arith.constant 0.000000e+00 : f32
    %40 = vector.broadcast %cst_48 : f32 to vector<2x32xf32>
    %c161 = arith.constant 161 : index
    %c0_49 = arith.constant 0 : index
    %41 = vector.load %arg8[%c161, %c0_49] : memref<328x32xf32, #tpu.memory_space<vmem>>, vector<2x32xf32>
    tpu.vector_store %arg8[%c161, %c0_49], %40 {strides = array<i32>} : memref<328x32xf32, #tpu.memory_space<vmem>>, vector<2x32xf32>,
    %c0_50 = arith.constant 0 : index
    %c8 = arith.constant 8 : index
    %c0_51 = arith.constant 0 : index
    %c0_52 = arith.constant 0 : index
    %42 = vector.load %arg1[%c0_50, %c8, %c0_51, %c0_52] : memref<1x16x16x32xf32, #tpu.memory_space<vmem>>, vector<1x1x16x32xf32>
    %43 = vector.shape_cast %42 : vector<1x1x16x32xf32> to vector<16x32xf32>
    %c163 = arith.constant 163 : index
    %c0_53 = arith.constant 0 : index
    %44 = vector.load %arg8[%c163, %c0_53] : memref<328x32xf32, #tpu.memory_space<vmem>>, vector<16x32xf32>
    tpu.vector_store %arg8[%c163, %c0_53], %43 {strides = array<i32>} : memref<328x32xf32, #tpu.memory_space<vmem>>, vector<16x32xf32>,
    %cst_54 = arith.constant 0.000000e+00 : f32
    %45 = vector.broadcast %cst_54 : f32 to vector<2x32xf32>
    %c179 = arith.constant 179 : index
    %c0_55 = arith.constant 0 : index
    %46 = vector.load %arg8[%c179, %c0_55] : memref<328x32xf32, #tpu.memory_space<vmem>>, vector<2x32xf32>
    tpu.vector_store %arg8[%c179, %c0_55], %45 {strides = array<i32>} : memref<328x32xf32, #tpu.memory_space<vmem>>, vector<2x32xf32>,
    %c0_56 = arith.constant 0 : index
    %c9 = arith.constant 9 : index
    %c0_57 = arith.constant 0 : index
    %c0_58 = arith.constant 0 : index
    %47 = vector.load %arg1[%c0_56, %c9, %c0_57, %c0_58] : memref<1x16x16x32xf32, #tpu.memory_space<vmem>>, vector<1x1x16x32xf32>
    %48 = vector.shape_cast %47 : vector<1x1x16x32xf32> to vector<16x32xf32>
    %c181 = arith.constant 181 : index
    %c0_59 = arith.constant 0 : index
    %49 = vector.load %arg8[%c181, %c0_59] : memref<328x32xf32, #tpu.memory_space<vmem>>, vector<16x32xf32>
    tpu.vector_store %arg8[%c181, %c0_59], %48 {strides = array<i32>} : memref<328x32xf32, #tpu.memory_space<vmem>>, vector<16x32xf32>,
    %cst_60 = arith.constant 0.000000e+00 : f32
    %50 = vector.broadcast %cst_60 : f32 to vector<2x32xf32>
    %c197 = arith.constant 197 : index
    %c0_61 = arith.constant 0 : index
    %51 = vector.load %arg8[%c197, %c0_61] : memref<328x32xf32, #tpu.memory_space<vmem>>, vector<2x32xf32>
    tpu.vector_store %arg8[%c197, %c0_61], %50 {strides = array<i32>} : memref<328x32xf32, #tpu.memory_space<vmem>>, vector<2x32xf32>,
    %c0_62 = arith.constant 0 : index
    %c10 = arith.constant 10 : index
    %c0_63 = arith.constant 0 : index
    %c0_64 = arith.constant 0 : index
    %52 = vector.load %arg1[%c0_62, %c10, %c0_63, %c0_64] : memref<1x16x16x32xf32, #tpu.memory_space<vmem>>, vector<1x1x16x32xf32>
    %53 = vector.shape_cast %52 : vector<1x1x16x32xf32> to vector<16x32xf32>
    %c199 = arith.constant 199 : index
    %c0_65 = arith.constant 0 : index
    %54 = vector.load %arg8[%c199, %c0_65] : memref<328x32xf32, #tpu.memory_space<vmem>>, vector<16x32xf32>
    tpu.vector_store %arg8[%c199, %c0_65], %53 {strides = array<i32>} : memref<328x32xf32, #tpu.memory_space<vmem>>, vector<16x32xf32>,
    %cst_66 = arith.constant 0.000000e+00 : f32
    %55 = vector.broadcast %cst_66 : f32 to vector<2x32xf32>
    %c215 = arith.constant 215 : index
    %c0_67 = arith.constant 0 : index
    %56 = vector.load %arg8[%c215, %c0_67] : memref<328x32xf32, #tpu.memory_space<vmem>>, vector<2x32xf32>
    tpu.vector_store %arg8[%c215, %c0_67], %55 {strides = array<i32>} : memref<328x32xf32, #tpu.memory_space<vmem>>, vector<2x32xf32>,
    %c0_68 = arith.constant 0 : index
    %c11 = arith.constant 11 : index
    %c0_69 = arith.constant 0 : index
    %c0_70 = arith.constant 0 : index
    %57 = vector.load %arg1[%c0_68, %c11, %c0_69, %c0_70] : memref<1x16x16x32xf32, #tpu.memory_space<vmem>>, vector<1x1x16x32xf32>
    %58 = vector.shape_cast %57 : vector<1x1x16x32xf32> to vector<16x32xf32>
    %c217 = arith.constant 217 : index
    %c0_71 = arith.constant 0 : index
    %59 = vector.load %arg8[%c217, %c0_71] : memref<328x32xf32, #tpu.memory_space<vmem>>, vector<16x32xf32>
    tpu.vector_store %arg8[%c217, %c0_71], %58 {strides = array<i32>} : memref<328x32xf32, #tpu.memory_space<vmem>>, vector<16x32xf32>,
    %cst_72 = arith.constant 0.000000e+00 : f32
    %60 = vector.broadcast %cst_72 : f32 to vector<2x32xf32>
    %c233 = arith.constant 233 : index
    %c0_73 = arith.constant 0 : index
    %61 = vector.load %arg8[%c233, %c0_73] : memref<328x32xf32, #tpu.memory_space<vmem>>, vector<2x32xf32>
    tpu.vector_store %arg8[%c233, %c0_73], %60 {strides = array<i32>} : memref<328x32xf32, #tpu.memory_space<vmem>>, vector<2x32xf32>,
    %c0_74 = arith.constant 0 : index
    %c12 = arith.constant 12 : index
    %c0_75 = arith.constant 0 : index
    %c0_76 = arith.constant 0 : index
    %62 = vector.load %arg1[%c0_74, %c12, %c0_75, %c0_76] : memref<1x16x16x32xf32, #tpu.memory_space<vmem>>, vector<1x1x16x32xf32>
    %63 = vector.shape_cast %62 : vector<1x1x16x32xf32> to vector<16x32xf32>
    %c235 = arith.constant 235 : index
    %c0_77 = arith.constant 0 : index
    %64 = vector.load %arg8[%c235, %c0_77] : memref<328x32xf32, #tpu.memory_space<vmem>>, vector<16x32xf32>
    tpu.vector_store %arg8[%c235, %c0_77], %63 {strides = array<i32>} : memref<328x32xf32, #tpu.memory_space<vmem>>, vector<16x32xf32>,
    %cst_78 = arith.constant 0.000000e+00 : f32
    %65 = vector.broadcast %cst_78 : f32 to vector<2x32xf32>
    %c251 = arith.constant 251 : index
    %c0_79 = arith.constant 0 : index
    %66 = vector.load %arg8[%c251, %c0_79] : memref<328x32xf32, #tpu.memory_space<vmem>>, vector<2x32xf32>
    tpu.vector_store %arg8[%c251, %c0_79], %65 {strides = array<i32>} : memref<328x32xf32, #tpu.memory_space<vmem>>, vector<2x32xf32>,
    %c0_80 = arith.constant 0 : index
    %c13 = arith.constant 13 : index
    %c0_81 = arith.constant 0 : index
    %c0_82 = arith.constant 0 : index
    %67 = vector.load %arg1[%c0_80, %c13, %c0_81, %c0_82] : memref<1x16x16x32xf32, #tpu.memory_space<vmem>>, vector<1x1x16x32xf32>
    %68 = vector.shape_cast %67 : vector<1x1x16x32xf32> to vector<16x32xf32>
    %c253 = arith.constant 253 : index
    %c0_83 = arith.constant 0 : index
    %69 = vector.load %arg8[%c253, %c0_83] : memref<328x32xf32, #tpu.memory_space<vmem>>, vector<16x32xf32>
    tpu.vector_store %arg8[%c253, %c0_83], %68 {strides = array<i32>} : memref<328x32xf32, #tpu.memory_space<vmem>>, vector<16x32xf32>,
    %cst_84 = arith.constant 0.000000e+00 : f32
    %70 = vector.broadcast %cst_84 : f32 to vector<2x32xf32>
    %c269 = arith.constant 269 : index
    %c0_85 = arith.constant 0 : index
    %71 = vector.load %arg8[%c269, %c0_85] : memref<328x32xf32, #tpu.memory_space<vmem>>, vector<2x32xf32>
    tpu.vector_store %arg8[%c269, %c0_85], %70 {strides = array<i32>} : memref<328x32xf32, #tpu.memory_space<vmem>>, vector<2x32xf32>,
    %c0_86 = arith.constant 0 : index
    %c14 = arith.constant 14 : index
    %c0_87 = arith.constant 0 : index
    %c0_88 = arith.constant 0 : index
    %72 = vector.load %arg1[%c0_86, %c14, %c0_87, %c0_88] : memref<1x16x16x32xf32, #tpu.memory_space<vmem>>, vector<1x1x16x32xf32>
    %73 = vector.shape_cast %72 : vector<1x1x16x32xf32> to vector<16x32xf32>
    %c271 = arith.constant 271 : index
    %c0_89 = arith.constant 0 : index
    %74 = vector.load %arg8[%c271, %c0_89] : memref<328x32xf32, #tpu.memory_space<vmem>>, vector<16x32xf32>
    tpu.vector_store %arg8[%c271, %c0_89], %73 {strides = array<i32>} : memref<328x32xf32, #tpu.memory_space<vmem>>, vector<16x32xf32>,
    %cst_90 = arith.constant 0.000000e+00 : f32
    %75 = vector.broadcast %cst_90 : f32 to vector<2x32xf32>
    %c287 = arith.constant 287 : index
    %c0_91 = arith.constant 0 : index
    %76 = vector.load %arg8[%c287, %c0_91] : memref<328x32xf32, #tpu.memory_space<vmem>>, vector<2x32xf32>
    tpu.vector_store %arg8[%c287, %c0_91], %75 {strides = array<i32>} : memref<328x32xf32, #tpu.memory_space<vmem>>, vector<2x32xf32>,
    %c0_92 = arith.constant 0 : index
    %c15 = arith.constant 15 : index
    %c0_93 = arith.constant 0 : index
    %c0_94 = arith.constant 0 : index
    %77 = vector.load %arg1[%c0_92, %c15, %c0_93, %c0_94] : memref<1x16x16x32xf32, #tpu.memory_space<vmem>>, vector<1x1x16x32xf32>
    %78 = vector.shape_cast %77 : vector<1x1x16x32xf32> to vector<16x32xf32>
    %c289 = arith.constant 289 : index
    %c0_95 = arith.constant 0 : index
    %79 = vector.load %arg8[%c289, %c0_95] : memref<328x32xf32, #tpu.memory_space<vmem>>, vector<16x32xf32>
    tpu.vector_store %arg8[%c289, %c0_95], %78 {strides = array<i32>} : memref<328x32xf32, #tpu.memory_space<vmem>>, vector<16x32xf32>,
    %cst_96 = arith.constant 0.000000e+00 : f32
    %80 = vector.broadcast %cst_96 : f32 to vector<23x32xf32>
    %c305 = arith.constant 305 : index
    %c0_97 = arith.constant 0 : index
    %81 = vector.load %arg8[%c305, %c0_97] : memref<328x32xf32, #tpu.memory_space<vmem>>, vector<23x32xf32>
    tpu.vector_store %arg8[%c305, %c0_97], %80 {strides = array<i32>} : memref<328x32xf32, #tpu.memory_space<vmem>>, vector<23x32xf32>,
    %c0_98 = arith.constant 0 : index
    %c0_99 = arith.constant 0 : index
    %82 = vector.load %arg8[%c0_98, %c0_99] : memref<328x32xf32, #tpu.memory_space<vmem>>, vector<288x32xf32>
    %c0_100 = arith.constant 0 : index
    %c0_101 = arith.constant 0 : index
    %83 = vector.load %arg10[%c0_100, %c0_101] : memref<288x288xf32, #tpu.memory_space<vmem>>, vector<288x32xf32>
    tpu.vector_store %arg10[%c0_100, %c0_101], %82 {strides = array<i32>} : memref<288x288xf32, #tpu.memory_space<vmem>>, vector<288x32xf32>,
    %c1_102 = arith.constant 1 : index
    %c0_103 = arith.constant 0 : index
    %84 = vector.load %arg8[%c1_102, %c0_103] : memref<328x32xf32, #tpu.memory_space<vmem>>, vector<288x32xf32>
    %c0_104 = arith.constant 0 : index
    %c32 = arith.constant 32 : index
    %85 = vector.load %arg10[%c0_104, %c32] : memref<288x288xf32, #tpu.memory_space<vmem>>, vector<288x32xf32>
    tpu.vector_store %arg10[%c0_104, %c32], %84 {strides = array<i32>} : memref<288x288xf32, #tpu.memory_space<vmem>>, vector<288x32xf32>,
    %c2_105 = arith.constant 2 : index
    %c0_106 = arith.constant 0 : index
    %86 = vector.load %arg8[%c2_105, %c0_106] : memref<328x32xf32, #tpu.memory_space<vmem>>, vector<288x32xf32>
    %c0_107 = arith.constant 0 : index
    %c64 = arith.constant 64 : index
    %87 = vector.load %arg10[%c0_107, %c64] : memref<288x288xf32, #tpu.memory_space<vmem>>, vector<288x32xf32>
    tpu.vector_store %arg10[%c0_107, %c64], %86 {strides = array<i32>} : memref<288x288xf32, #tpu.memory_space<vmem>>, vector<288x32xf32>,
    %c18 = arith.constant 18 : index
    %c0_108 = arith.constant 0 : index
    %88 = vector.load %arg8[%c18, %c0_108] : memref<328x32xf32, #tpu.memory_space<vmem>>, vector<288x32xf32>
    %c0_109 = arith.constant 0 : index
    %c96 = arith.constant 96 : index
    %89 = vector.load %arg10[%c0_109, %c96] : memref<288x288xf32, #tpu.memory_space<vmem>>, vector<288x32xf32>
    tpu.vector_store %arg10[%c0_109, %c96], %88 {strides = array<i32>} : memref<288x288xf32, #tpu.memory_space<vmem>>, vector<288x32xf32>,
    %c19_110 = arith.constant 19 : index
    %c0_111 = arith.constant 0 : index
    %90 = vector.load %arg8[%c19_110, %c0_111] : memref<328x32xf32, #tpu.memory_space<vmem>>, vector<288x32xf32>
    %c0_112 = arith.constant 0 : index
    %c128 = arith.constant 128 : index
    %91 = vector.load %arg10[%c0_112, %c128] : memref<288x288xf32, #tpu.memory_space<vmem>>, vector<288x32xf32>
    tpu.vector_store %arg10[%c0_112, %c128], %90 {strides = array<i32>} : memref<288x288xf32, #tpu.memory_space<vmem>>, vector<288x32xf32>,
    %c20 = arith.constant 20 : index
    %c0_113 = arith.constant 0 : index
    %92 = vector.load %arg8[%c20, %c0_113] : memref<328x32xf32, #tpu.memory_space<vmem>>, vector<288x32xf32>
    %c0_114 = arith.constant 0 : index
    %c160 = arith.constant 160 : index
    %93 = vector.load %arg10[%c0_114, %c160] : memref<288x288xf32, #tpu.memory_space<vmem>>, vector<288x32xf32>
    tpu.vector_store %arg10[%c0_114, %c160], %92 {strides = array<i32>} : memref<288x288xf32, #tpu.memory_space<vmem>>, vector<288x32xf32>,
    %c36 = arith.constant 36 : index
    %c0_115 = arith.constant 0 : index
    %94 = vector.load %arg8[%c36, %c0_115] : memref<328x32xf32, #tpu.memory_space<vmem>>, vector<288x32xf32>
    %c0_116 = arith.constant 0 : index
    %c192 = arith.constant 192 : index
    %95 = vector.load %arg10[%c0_116, %c192] : memref<288x288xf32, #tpu.memory_space<vmem>>, vector<288x32xf32>
    tpu.vector_store %arg10[%c0_116, %c192], %94 {strides = array<i32>} : memref<288x288xf32, #tpu.memory_space<vmem>>, vector<288x32xf32>,
    %c37_117 = arith.constant 37 : index
    %c0_118 = arith.constant 0 : index
    %96 = vector.load %arg8[%c37_117, %c0_118] : memref<328x32xf32, #tpu.memory_space<vmem>>, vector<288x32xf32>
    %c0_119 = arith.constant 0 : index
    %c224 = arith.constant 224 : index
    %97 = vector.load %arg10[%c0_119, %c224] : memref<288x288xf32, #tpu.memory_space<vmem>>, vector<288x32xf32>
    tpu.vector_store %arg10[%c0_119, %c224], %96 {strides = array<i32>} : memref<288x288xf32, #tpu.memory_space<vmem>>, vector<288x32xf32>,
    %c38 = arith.constant 38 : index
    %c0_120 = arith.constant 0 : index
    %98 = vector.load %arg8[%c38, %c0_120] : memref<328x32xf32, #tpu.memory_space<vmem>>, vector<288x32xf32>
    %c0_121 = arith.constant 0 : index
    %c256 = arith.constant 256 : index
    %99 = vector.load %arg10[%c0_121, %c256] : memref<288x288xf32, #tpu.memory_space<vmem>>, vector<288x32xf32>
    tpu.vector_store %arg10[%c0_121, %c256], %98 {strides = array<i32>} : memref<288x288xf32, #tpu.memory_space<vmem>>, vector<288x32xf32>,
    %c0_122 = arith.constant 0 : index
    %c0_123 = arith.constant 0 : index
    %100 = vector.load %arg10[%c0_122, %c0_123] : memref<288x288xf32, #tpu.memory_space<vmem>>, vector<288x288xf32>
    %c0_124 = arith.constant 0 : index
    %c0_125 = arith.constant 0 : index
    %101 = vector.load %arg2[%c0_124, %c0_125] : memref<288x32xf32, #tpu.memory_space<vmem>>, vector<288x32xf32>
    %cst_126 = arith.constant dense<0.000000e+00> : vector<288x32xf32>
    %102 = tpu.matmul %100, %101, %cst_126 {dimension_numbers = #tpu.dot_dimension_numbers<[1], [0], [0], [1], [0, 0, 1, 1], [], []>} : vector<288x288xf32>, vector<288x32xf32>, vector<288x32xf32> -> vector<288x32xf32>
    %c0_127 = arith.constant 0 : index
    %c0_128 = arith.constant 0 : index
    %103 = vector.load %arg3[%c0_127, %c0_128] : memref<1x32xf32, #tpu.memory_space<vmem>>, vector<1x32xf32>
    %104 = vector.broadcast %103 : vector<1x32xf32> to vector<288x32xf32>
    %105 = arith.addf %102, %104 : vector<288x32xf32>
    %cst_129 = arith.constant 0.000000e+00 : f32
    %106 = vector.broadcast %cst_129 : f32 to vector<288x32xf32>
    %107 = arith.maximumf %105, %106 : vector<288x32xf32>
    %cst_130 = arith.constant 0.000000e+00 : f32
    %108 = vector.broadcast %cst_130 : f32 to vector<19x32xf32>
    %c0_131 = arith.constant 0 : index
    %c0_132 = arith.constant 0 : index
    %109 = vector.load %arg9[%c0_131, %c0_132] : memref<328x32xf32, #tpu.memory_space<vmem>>, vector<19x32xf32>
    tpu.vector_store %arg9[%c0_131, %c0_132], %108 {strides = array<i32>} : memref<328x32xf32, #tpu.memory_space<vmem>>, vector<19x32xf32>,
    %c0_133 = arith.constant 0 : index
    %c0_134 = arith.constant 0 : index
    %110 = vector.load %arg6[%c0_133, %c0_134] : memref<288x1xf32, #tpu.memory_space<vmem>>, vector<288x1xf32>
    %111 = vector.broadcast %110 : vector<288x1xf32> to vector<288x32xf32>
    %112 = arith.mulf %107, %111 : vector<288x32xf32>
    %c19_135 = arith.constant 19 : index
    %c0_136 = arith.constant 0 : index
    %113 = vector.load %arg9[%c19_135, %c0_136] : memref<328x32xf32, #tpu.memory_space<vmem>>, vector<288x32xf32>
    tpu.vector_store %arg9[%c19_135, %c0_136], %112 {strides = array<i32>} : memref<328x32xf32, #tpu.memory_space<vmem>>, vector<288x32xf32>,
    %cst_137 = arith.constant 0.000000e+00 : f32
    %114 = vector.broadcast %cst_137 : f32 to vector<21x32xf32>
    %c307 = arith.constant 307 : index
    %c0_138 = arith.constant 0 : index
    %115 = vector.load %arg9[%c307, %c0_138] : memref<328x32xf32, #tpu.memory_space<vmem>>, vector<21x32xf32>
    tpu.vector_store %arg9[%c307, %c0_138], %114 {strides = array<i32>} : memref<328x32xf32, #tpu.memory_space<vmem>>, vector<21x32xf32>,
    %c0_139 = arith.constant 0 : index
    %c0_140 = arith.constant 0 : index
    %116 = vector.load %arg9[%c0_139, %c0_140] : memref<328x32xf32, #tpu.memory_space<vmem>>, vector<288x32xf32>
    %c0_141 = arith.constant 0 : index
    %c0_142 = arith.constant 0 : index
    %117 = vector.load %arg10[%c0_141, %c0_142] : memref<288x288xf32, #tpu.memory_space<vmem>>, vector<288x32xf32>
    tpu.vector_store %arg10[%c0_141, %c0_142], %116 {strides = array<i32>} : memref<288x288xf32, #tpu.memory_space<vmem>>, vector<288x32xf32>,
    %c1_143 = arith.constant 1 : index
    %c0_144 = arith.constant 0 : index
    %118 = vector.load %arg9[%c1_143, %c0_144] : memref<328x32xf32, #tpu.memory_space<vmem>>, vector<288x32xf32>
    %c0_145 = arith.constant 0 : index
    %c32_146 = arith.constant 32 : index
    %119 = vector.load %arg10[%c0_145, %c32_146] : memref<288x288xf32, #tpu.memory_space<vmem>>, vector<288x32xf32>
    tpu.vector_store %arg10[%c0_145, %c32_146], %118 {strides = array<i32>} : memref<288x288xf32, #tpu.memory_space<vmem>>, vector<288x32xf32>,
    %c2_147 = arith.constant 2 : index
    %c0_148 = arith.constant 0 : index
    %120 = vector.load %arg9[%c2_147, %c0_148] : memref<328x32xf32, #tpu.memory_space<vmem>>, vector<288x32xf32>
    %c0_149 = arith.constant 0 : index
    %c64_150 = arith.constant 64 : index
    %121 = vector.load %arg10[%c0_149, %c64_150] : memref<288x288xf32, #tpu.memory_space<vmem>>, vector<288x32xf32>
    tpu.vector_store %arg10[%c0_149, %c64_150], %120 {strides = array<i32>} : memref<288x288xf32, #tpu.memory_space<vmem>>, vector<288x32xf32>,
    %c18_151 = arith.constant 18 : index
    %c0_152 = arith.constant 0 : index
    %122 = vector.load %arg9[%c18_151, %c0_152] : memref<328x32xf32, #tpu.memory_space<vmem>>, vector<288x32xf32>
    %c0_153 = arith.constant 0 : index
    %c96_154 = arith.constant 96 : index
    %123 = vector.load %arg10[%c0_153, %c96_154] : memref<288x288xf32, #tpu.memory_space<vmem>>, vector<288x32xf32>
    tpu.vector_store %arg10[%c0_153, %c96_154], %122 {strides = array<i32>} : memref<288x288xf32, #tpu.memory_space<vmem>>, vector<288x32xf32>,
    %c19_155 = arith.constant 19 : index
    %c0_156 = arith.constant 0 : index
    %124 = vector.load %arg9[%c19_155, %c0_156] : memref<328x32xf32, #tpu.memory_space<vmem>>, vector<288x32xf32>
    %c0_157 = arith.constant 0 : index
    %c128_158 = arith.constant 128 : index
    %125 = vector.load %arg10[%c0_157, %c128_158] : memref<288x288xf32, #tpu.memory_space<vmem>>, vector<288x32xf32>
    tpu.vector_store %arg10[%c0_157, %c128_158], %124 {strides = array<i32>} : memref<288x288xf32, #tpu.memory_space<vmem>>, vector<288x32xf32>,
    %c20_159 = arith.constant 20 : index
    %c0_160 = arith.constant 0 : index
    %126 = vector.load %arg9[%c20_159, %c0_160] : memref<328x32xf32, #tpu.memory_space<vmem>>, vector<288x32xf32>
    %c0_161 = arith.constant 0 : index
    %c160_162 = arith.constant 160 : index
    %127 = vector.load %arg10[%c0_161, %c160_162] : memref<288x288xf32, #tpu.memory_space<vmem>>, vector<288x32xf32>
    tpu.vector_store %arg10[%c0_161, %c160_162], %126 {strides = array<i32>} : memref<288x288xf32, #tpu.memory_space<vmem>>, vector<288x32xf32>,
    %c36_163 = arith.constant 36 : index
    %c0_164 = arith.constant 0 : index
    %128 = vector.load %arg9[%c36_163, %c0_164] : memref<328x32xf32, #tpu.memory_space<vmem>>, vector<288x32xf32>
    %c0_165 = arith.constant 0 : index
    %c192_166 = arith.constant 192 : index
    %129 = vector.load %arg10[%c0_165, %c192_166] : memref<288x288xf32, #tpu.memory_space<vmem>>, vector<288x32xf32>
    tpu.vector_store %arg10[%c0_165, %c192_166], %128 {strides = array<i32>} : memref<288x288xf32, #tpu.memory_space<vmem>>, vector<288x32xf32>,
    %c37_167 = arith.constant 37 : index
    %c0_168 = arith.constant 0 : index
    %130 = vector.load %arg9[%c37_167, %c0_168] : memref<328x32xf32, #tpu.memory_space<vmem>>, vector<288x32xf32>
    %c0_169 = arith.constant 0 : index
    %c224_170 = arith.constant 224 : index
    %131 = vector.load %arg10[%c0_169, %c224_170] : memref<288x288xf32, #tpu.memory_space<vmem>>, vector<288x32xf32>
    tpu.vector_store %arg10[%c0_169, %c224_170], %130 {strides = array<i32>} : memref<288x288xf32, #tpu.memory_space<vmem>>, vector<288x32xf32>,
    %c38_171 = arith.constant 38 : index
    %c0_172 = arith.constant 0 : index
    %132 = vector.load %arg9[%c38_171, %c0_172] : memref<328x32xf32, #tpu.memory_space<vmem>>, vector<288x32xf32>
    %c0_173 = arith.constant 0 : index
    %c256_174 = arith.constant 256 : index
    %133 = vector.load %arg10[%c0_173, %c256_174] : memref<288x288xf32, #tpu.memory_space<vmem>>, vector<288x32xf32>
    tpu.vector_store %arg10[%c0_173, %c256_174], %132 {strides = array<i32>} : memref<288x288xf32, #tpu.memory_space<vmem>>, vector<288x32xf32>,
    %c0_175 = arith.constant 0 : index
    %c0_176 = arith.constant 0 : index
    %134 = vector.load %arg10[%c0_175, %c0_176] : memref<288x288xf32, #tpu.memory_space<vmem>>, vector<288x288xf32>
    %c0_177 = arith.constant 0 : index
    %c0_178 = arith.constant 0 : index
    %135 = vector.load %arg4[%c0_177, %c0_178] : memref<288x32xf32, #tpu.memory_space<vmem>>, vector<288x32xf32>
    %cst_179 = arith.constant dense<0.000000e+00> : vector<288x32xf32>
    %136 = tpu.matmul %134, %135, %cst_179 {dimension_numbers = #tpu.dot_dimension_numbers<[1], [0], [0], [1], [0, 0, 1, 1], [], []>} : vector<288x288xf32>, vector<288x32xf32>, vector<288x32xf32> -> vector<288x32xf32>
    %c0_180 = arith.constant 0 : index
    %c0_181 = arith.constant 0 : index
    %137 = vector.load %arg5[%c0_180, %c0_181] : memref<1x32xf32, #tpu.memory_space<vmem>>, vector<1x32xf32>
    %138 = vector.broadcast %137 : vector<1x32xf32> to vector<288x32xf32>
    %139 = arith.addf %136, %138 : vector<288x32xf32>
    %c19_182 = arith.constant 19 : index
    %c0_183 = arith.constant 0 : index
    %140 = vector.load %arg8[%c19_182, %c0_183] : memref<328x32xf32, #tpu.memory_space<vmem>>, vector<288x32xf32>
    %141 = arith.addf %139, %140 : vector<288x32xf32>
    %cst_184 = arith.constant 0.000000e+00 : f32
    %142 = vector.broadcast %cst_184 : f32 to vector<288x32xf32>
    %143 = arith.maximumf %141, %142 : vector<288x32xf32>
    %c0_185 = arith.constant 0 : index
    %c0_186 = arith.constant 0 : index
    %c0_187 = arith.constant 0 : index
    %144 = vector.load %arg7[%c0_185, %c0_186, %c0_187] : memref<1x288x32xf32, #tpu.memory_space<vmem>>, vector<1x288x32xf32>
    %145 = vector.shape_cast %144 : vector<1x288x32xf32> to vector<288x32xf32>
    %146 = vector.shape_cast %143 : vector<288x32xf32> to vector<1x288x32xf32>
    tpu.vector_store %arg7[%c0_185, %c0_186, %c0_187], %146 {strides = array<i32>} : memref<1x288x32xf32, #tpu.memory_space<vmem>>, vector<1x288x32xf32>,
    return
  }
  func.func @transform_0(%arg0: i32) -> (i32, i32, i32, i32) {
    %c0_i32 = arith.constant 0 : i32
    %c0_i32_0 = arith.constant 0 : i32
    %c0_i32_1 = arith.constant 0 : i32
    %c0_i32_2 = arith.constant 0 : i32
    return %arg0, %c0_i32, %c0_i32_0, %c0_i32_1 : i32, i32, i32, i32
  }
  func.func @transform_1(%arg0: i32) -> (i32, i32) {
    %c0_i32 = arith.constant 0 : i32
    %c0_i32_0 = arith.constant 0 : i32
    %c0_i32_1 = arith.constant 0 : i32
    return %c0_i32, %c0_i32_0 : i32, i32
  }
  func.func @transform_2(%arg0: i32) -> (i32, i32) {
    %c0_i32 = arith.constant 0 : i32
    %c0_i32_0 = arith.constant 0 : i32
    %c0_i32_1 = arith.constant 0 : i32
    return %c0_i32, %c0_i32_0 : i32, i32
  }
  func.func @transform_3(%arg0: i32) -> (i32, i32) {
    %c0_i32 = arith.constant 0 : i32
    %c0_i32_0 = arith.constant 0 : i32
    %c0_i32_1 = arith.constant 0 : i32
    return %c0_i32, %c0_i32_0 : i32, i32
  }
  func.func @transform_4(%arg0: i32) -> (i32, i32) {
    %c0_i32 = arith.constant 0 : i32
    %c0_i32_0 = arith.constant 0 : i32
    %c0_i32_1 = arith.constant 0 : i32
    return %c0_i32, %c0_i32_0 : i32, i32
  }
  func.func @transform_5(%arg0: i32) -> (i32, i32) {
    %c0_i32 = arith.constant 0 : i32
    %c0_i32_0 = arith.constant 0 : i32
    %c0_i32_1 = arith.constant 0 : i32
    return %c0_i32, %c0_i32_0 : i32, i32
  }
  func.func @transform_6(%arg0: i32) -> (i32, i32, i32) {
    %c0_i32 = arith.constant 0 : i32
    %c0_i32_0 = arith.constant 0 : i32
    %c0_i32_1 = arith.constant 0 : i32
    return %arg0, %c0_i32, %c0_i32_0 : i32, i32, i32
  }
}

</mosaic_0001>

<llo_original>
// kernel: tpu_custom_call.1
$region0: #{tpu_custom_call.1}
  #allocation0 [shape = 'u32[]', space=smem, size = 0x4, offset = 0x4, fixed_abs, tag = 'smem constant byte address 0x4 - core index']
  #allocation1 [shape = 'u32[144,128]{1,0:T(1,128)}', space=vmem, size = 0x12000, scoped, tag = 'internal scratch']
  #allocation2 [shape = 'f32[328,32]{1,0:T(8,128)}', space=vmem, size = 0x29000, scoped, tag = 'scratch operand']
  #allocation3 [shape = 'f32[328,32]{1,0:T(8,128)}', space=vmem, size = 0x29000, scoped, tag = 'scratch operand']
  #allocation4 [shape = 'f32[288,288]{1,0:T(8,128)}', space=vmem, size = 0x6c000, scoped, tag = 'scratch operand']
  %s0 = inlined_call_operand.vmem [shape: f32[2,16,16,32], index: 0, kind: input, shape index: {}]
  %s1 = inlined_call_operand.vmem [shape: f32[288,32], index: 1, kind: input, shape index: {}]
  %s2 = inlined_call_operand.vmem [shape: f32[1,32], index: 2, kind: input, shape index: {}]
  %s3 = inlined_call_operand.vmem [shape: f32[288,32], index: 3, kind: input, shape index: {}]
  %s4 = inlined_call_operand.vmem [shape: f32[1,32], index: 4, kind: input, shape index: {}]
  %s5 = inlined_call_operand.vmem [shape: f32[288,1], index: 5, kind: input, shape index: {}]
  %s6 = inlined_call_operand.vmem [shape: f32[2,288,32], index: 6, kind: output, shape index: {}]
  %s7 = sld [smem:[#allocation0]]
  $region57: #{tpu_custom_call.1} parent=0
    _
  %s9 = ssub.s32 1, %s7
  %s10 = scalar_select 0, %s9, %s7
  loop: start=0, step=1, limit=4
  $region2: #{tpu_custom_call.1} parent=0 // loop_pre_header
    _
  $region3: #{tpu_custom_call.1} parent=0 // loop_header
    %s12 = sphi 0, %s16
    %p13 = scmp.ge.s32.totalorder %s12, 4
    %s22 = sphi 0, %s24
    %s25 = sphi 0, %s22
    %s26 = sphi 0, %s25
    %s42 = sphi 0, %s26
    %s46 = sphi 0, %s46
    %s48 = sphi 0, %s46
    %s49 = sphi 0, %s48
    %s63 = sphi 0, %s49
    %s67 = sphi 0, %s67
    %s69 = sphi 0, %s67
    %s70 = sphi 0, %s69
    %s84 = sphi 0, %s70
    %s88 = sphi 0, %s88
    %s90 = sphi 0, %s88
    %s91 = sphi 0, %s90
    %s105 = sphi 0, %s91
    %s109 = sphi 0, %s109
    %s111 = sphi 0, %s109
    %s112 = sphi 0, %s111
    %s126 = sphi 0, %s112
    %s130 = sphi 0, %s130
    %s132 = sphi 0, %s130
    %s133 = sphi 0, %s132
    %s147 = sphi 0, %s133
    %s153 = sphi 0, %s155
    %s156 = sphi 0, %s153
    %s157 = sphi 0, %s156
    %s173 = sphi 0, %s157
  $region4: #{tpu_custom_call.1} parent=0 // loop_header_branch
    %15 = sbr.rel (%p13) target = $region8
  $region5: #{tpu_custom_call.1} parent=0 // loop_body
    %s17 = ssub.s32 %s12, 1
    %s18 = ssub.s32 %s12, 2
    %s19 = sadd.s32 %s12, 1
    %s20 = ssub.s32 %s12, %s19
    %p21 = scmp.eq.s32.totalorder %s20, 0
    %s23 = sadd.s32 %s22, 1
    %s24 = scalar_select %p21, %s22, %s23
    %p27 = pneg %p21
    %p28 = scmp.eq.s32.totalorder %s12, 1
    %p29 = por %p27, %p28
    %p30 = scmp.ne.s32.totalorder %s22, %s25
    %p31 = scmp.eq.s32.totalorder %s12, 0
    %p32 = por %p30, %p31
    %p33 = scmp.ne.s32.totalorder %s22, %s25
    %p34 = scmp.eq.s32.totalorder %s17, 1
    %p35 = por %p33, %p34
    %p36 = scmp.ne.s32.totalorder %s25, %s26
    %p37 = scmp.eq.s32.totalorder %s17, 0
    %p38 = por %p36, %p37
    %p39 = scmp.ne.s32.totalorder %s25, %s26
    %p40 = scmp.eq.s32.totalorder %s18, 1
    %p41 = por %p39, %p40
    %p43 = scmp.ne.s32.totalorder %s26, %s42
    %p44 = scmp.eq.s32.totalorder %s18, 0
    %p45 = por %p43, %p44
    %s47 = sadd.s32 %s46, 1
    %p50 = scmp.eq.s32.totalorder %s12, 1
    %p51 = scmp.ne.s32.totalorder %s46, %s48
    %p52 = scmp.eq.s32.totalorder %s12, 0
    %p53 = por %p51, %p52
    %p54 = scmp.ne.s32.totalorder %s46, %s48
    %p55 = scmp.eq.s32.totalorder %s17, 1
    %p56 = por %p54, %p55
    %p57 = scmp.ne.s32.totalorder %s48, %s49
    %p58 = scmp.eq.s32.totalorder %s17, 0
    %p59 = por %p57, %p58
    %p60 = scmp.ne.s32.totalorder %s48, %s49
    %p61 = scmp.eq.s32.totalorder %s18, 1
    %p62 = por %p60, %p61
    %p64 = scmp.ne.s32.totalorder %s49, %s63
    %p65 = scmp.eq.s32.totalorder %s18, 0
    %p66 = por %p64, %p65
    %s68 = sadd.s32 %s67, 1
    %p71 = scmp.eq.s32.totalorder %s12, 1
    %p72 = scmp.ne.s32.totalorder %s67, %s69
    %p73 = scmp.eq.s32.totalorder %s12, 0
    %p74 = por %p72, %p73
    %p75 = scmp.ne.s32.totalorder %s67, %s69
    %p76 = scmp.eq.s32.totalorder %s17, 1
    %p77 = por %p75, %p76
    %p78 = scmp.ne.s32.totalorder %s69, %s70
    %p79 = scmp.eq.s32.totalorder %s17, 0
    %p80 = por %p78, %p79
    %p81 = scmp.ne.s32.totalorder %s69, %s70
    %p82 = scmp.eq.s32.totalorder %s18, 1
    %p83 = por %p81, %p82
    %p85 = scmp.ne.s32.totalorder %s70, %s84
    %p86 = scmp.eq.s32.totalorder %s18, 0
    %p87 = por %p85, %p86
    %s89 = sadd.s32 %s88, 1
    %p92 = scmp.eq.s32.totalorder %s12, 1
    %p93 = scmp.ne.s32.totalorder %s88, %s90
    %p94 = scmp.eq.s32.totalorder %s12, 0
    %p95 = por %p93, %p94
    %p96 = scmp.ne.s32.totalorder %s88, %s90
    %p97 = scmp.eq.s32.totalorder %s17, 1
    %p98 = por %p96, %p97
    %p99 = scmp.ne.s32.totalorder %s90, %s91
    %p100 = scmp.eq.s32.totalorder %s17, 0
    %p101 = por %p99, %p100
    %p102 = scmp.ne.s32.totalorder %s90, %s91
    %p103 = scmp.eq.s32.totalorder %s18, 1
    %p104 = por %p102, %p103
    %p106 = scmp.ne.s32.totalorder %s91, %s105
    %p107 = scmp.eq.s32.totalorder %s18, 0
    %p108 = por %p106, %p107
    %s110 = sadd.s32 %s109, 1
    %p113 = scmp.eq.s32.totalorder %s12, 1
    %p114 = scmp.ne.s32.totalorder %s109, %s111
    %p115 = scmp.eq.s32.totalorder %s12, 0
    %p116 = por %p114, %p115
    %p117 = scmp.ne.s32.totalorder %s109, %s111
    %p118 = scmp.eq.s32.totalorder %s17, 1
    %p119 = por %p117, %p118
    %p120 = scmp.ne.s32.totalorder %s111, %s112
    %p121 = scmp.eq.s32.totalorder %s17, 0
    %p122 = por %p120, %p121
    %p123 = scmp.ne.s32.totalorder %s111, %s112
    %p124 = scmp.eq.s32.totalorder %s18, 1
    %p125 = por %p123, %p124
    %p127 = scmp.ne.s32.totalorder %s112, %s126
    %p128 = scmp.eq.s32.totalorder %s18, 0
    %p129 = por %p127, %p128
    %s131 = sadd.s32 %s130, 1
    %p134 = scmp.eq.s32.totalorder %s12, 1
    %p135 = scmp.ne.s32.totalorder %s130, %s132
    %p136 = scmp.eq.s32.totalorder %s12, 0
    %p137 = por %p135, %p136
    %p138 = scmp.ne.s32.totalorder %s130, %s132
    %p139 = scmp.eq.s32.totalorder %s17, 1
    %p140 = por %p138, %p139
    %p141 = scmp.ne.s32.totalorder %s132, %s133
    %p142 = scmp.eq.s32.totalorder %s17, 0
    %p143 = por %p141, %p142
    %p144 = scmp.ne.s32.totalorder %s132, %s133
    %p145 = scmp.eq.s32.totalorder %s18, 1
    %p146 = por %p144, %p145
    %p148 = scmp.ne.s32.totalorder %s133, %s147
    %p149 = scmp.eq.s32.totalorder %s18, 0
    %p150 = por %p148, %p149
    %s151 = ssub.s32 %s12, %s19
    %p152 = scmp.eq.s32.totalorder %s151, 0
    %s154 = sadd.s32 %s153, 1
    %s155 = scalar_select %p152, %s153, %s154
    %p158 = pneg %p152
    %p159 = scmp.eq.s32.totalorder %s12, 1
    %p160 = por %p158, %p159
    %p161 = scmp.ne.s32.totalorder %s153, %s156
    %p162 = scmp.eq.s32.totalorder %s12, 0
    %p163 = por %p161, %p162
    %p164 = scmp.ne.s32.totalorder %s153, %s156
    %p165 = scmp.eq.s32.totalorder %s17, 1
    %p166 = por %p164, %p165
    %p167 = scmp.ne.s32.totalorder %s156, %s157
    %p168 = scmp.eq.s32.totalorder %s17, 0
    %p169 = por %p167, %p168
    %p170 = scmp.ne.s32.totalorder %s156, %s157
    %p171 = scmp.eq.s32.totalorder %s18, 1
    %p172 = por %p170, %p171
    %p174 = scmp.ne.s32.totalorder %s157, %s173
    %p175 = scmp.eq.s32.totalorder %s18, 0
    %p176 = por %p174, %p175
    %p177 = scmp.le.s32.totalorder 1, %s12
    %p178 = scmp.lt.s32.totalorder %s12, 3
    %p179 = pnand %p177, %p178
    %p180 = pneg %p179
    // Predicated region
    $region9: #{tpu_custom_call.1} parent=5 // pred_check
      _
    $region10: #{tpu_custom_call.1} parent=5 // pred_check_branch
      %182 = sbr.rel (%p179) target = $region12
    $region11: #{tpu_custom_call.1} parent=5 // pred_region
      %s183 = ssub.s32 %s12, 1
      // Predicated region
      $region13: #{tpu_custom_call.1} parent=11 // pred_check
        %p184 = pneg %p59
      $region14: #{tpu_custom_call.1} parent=11 // pred_check_branch
        %186 = sbr.rel (%p184) target = $region16
      $region15: #{tpu_custom_call.1} parent=11 // pred_region
        _
      $region16: #{tpu_custom_call.1} parent=11 // pred_fallthru
        _
      // Predicated region
      $region17: #{tpu_custom_call.1} parent=11 // pred_check
        %p187 = pneg %p80
      $region18: #{tpu_custom_call.1} parent=11 // pred_check_branch
        %189 = sbr.rel (%p187) target = $region20
      $region19: #{tpu_custom_call.1} parent=11 // pred_region
        _
      $region20: #{tpu_custom_call.1} parent=11 // pred_fallthru
        _
      // Predicated region
      $region21: #{tpu_custom_call.1} parent=11 // pred_check
        %p190 = pneg %p101
      $region22: #{tpu_custom_call.1} parent=11 // pred_check_branch
        %192 = sbr.rel (%p190) target = $region24
      $region23: #{tpu_custom_call.1} parent=11 // pred_region
        _
      $region24: #{tpu_custom_call.1} parent=11 // pred_fallthru
        _
      // Predicated region
      $region25: #{tpu_custom_call.1} parent=11 // pred_check
        %p193 = pneg %p122
      $region26: #{tpu_custom_call.1} parent=11 // pred_check_branch
        %195 = sbr.rel (%p193) target = $region28
      $region27: #{tpu_custom_call.1} parent=11 // pred_region
        _
      $region28: #{tpu_custom_call.1} parent=11 // pred_fallthru
        _
      // Predicated region
      $region29: #{tpu_custom_call.1} parent=11 // pred_check
        %p196 = pneg %p143
      $region30: #{tpu_custom_call.1} parent=11 // pred_check_branch
        %198 = sbr.rel (%p196) target = $region32
      $region31: #{tpu_custom_call.1} parent=11 // pred_region
        _
      $region32: #{tpu_custom_call.1} parent=11 // pred_fallthru
        _
    $region12: #{tpu_custom_call.1} parent=5 // pred_fallthru
      _
    %p199 = scmp.lt.s32.totalorder %s12, 2
    // Predicated region
    $region33: #{tpu_custom_call.1} parent=5 // pred_check
      %p200 = pneg %p199
    $region34: #{tpu_custom_call.1} parent=5 // pred_check_branch
      %202 = sbr.rel (%p200) target = $region36
    $region35: #{tpu_custom_call.1} parent=5 // pred_region
      // Predicated region
      $region37: #{tpu_custom_call.1} parent=35 // pred_check
        %p203 = pneg %p32
      $region38: #{tpu_custom_call.1} parent=35 // pred_check_branch
        %205 = sbr.rel (%p203) target = $region40
      $region39: #{tpu_custom_call.1} parent=35 // pred_region
        %p206 = scmp.lt.s32.totalorder %s12, 1
        %s207 = scalar_select %p206, %s12, 1
        %s208 = smul.addr %s207, 32
        %s209 = smul.addr %s208, 8
        %s210 = scalar_lea.vmem %s0, %s209
      $region40: #{tpu_custom_call.1} parent=35 // pred_fallthru
        _
    $region36: #{tpu_custom_call.1} parent=5 // pred_fallthru
      _
    %p211 = scmp.le.s32.totalorder 1, %s12
    %p212 = scmp.lt.s32.totalorder %s12, 3
    %p213 = pnand %p211, %p212
    %p214 = pneg %p213
    // Predicated region
    $region41: #{tpu_custom_call.1} parent=5 // pred_check
      _
    $region42: #{tpu_custom_call.1} parent=5 // pred_check_branch
      %216 = sbr.rel (%p213) target = $region44
    $region43: #{tpu_custom_call.1} parent=5 // pred_region
      %s217 = ssub.s32 %s12, 1
      %p218 = scmp.lt.s32.totalorder %s17, 1
      %s219 = scalar_select %p218, %s17, 1
      %s220 = smul.addr %s219, 32
      %s221 = smul.addr %s220, 8
      %s222 = scalar_lea.vmem %s0, %s221
      %p223 = pneg %p38
      %p224 = pneg %p35
      %p225 = pneg %p59
      %p226 = pneg %p56
      %p227 = pneg %p80
      %p228 = pneg %p77
      %p229 = pneg %p101
      %p230 = pneg %p98
      %p231 = pneg %p122
      %p232 = pneg %p119
      %p233 = pneg %p143
      %p234 = pneg %p140
      %p235 = pneg %p169
      %p236 = pneg %p166
      %p237 = scmp.lt.s32.totalorder %s17, 1
      %s238 = scalar_select %p237, %s17, 1
      %s239 = smul.addr %s238, 36
      %s240 = smul.addr %s239, 8
      %s241 = scalar_lea.vmem %s6, %s240
      %p242 = scmp.lt.s32.totalorder %s17, 1
      %s243 = scalar_select %p242, %s17, 1
      %s244 = smul.addr %s243, 32
      %s245 = smul.addr %s244, 8
      %s246 = scalar_lea.vmem %s0, %s245
      %p247 = scmp.lt.s32.totalorder %s17, 1
      %s248 = scalar_select %p247, %s17, 1
      %s249 = smul.addr %s248, 36
      %s250 = smul.addr %s249, 8
      %s251 = scalar_lea.vmem %s6, %s250
      %vm252 = vcmask 261120
      %253 = vst.msk [vmem:[#allocation2] sm:$0xff] %vm252, 0.0
      %254 = vst.msk [vmem:[#allocation2 + $0x8] sm:$0xff] %vm252, 0.0
      %vm255 = vcmask 256000
      %256 = vst.msk [vmem:[#allocation2 + $0x10] sm:$0x7] %vm255, 0.0
      %v257 = vld [vmem:[%s246] sm:$0xff]
      %v258 = vld [vmem:[%s246 + $0x8] sm:$0xff]
      %259 = vst.msk [vmem:[#allocation2 + $0x13] sm:$0xff] %vm252, %v257
      %260 = vst.msk [vmem:[#allocation2 + $0x1b] sm:$0xff] %vm252, %v258
      %vm261 = vcmask 254976
      %262 = vst.msk [vmem:[#allocation2 + $0x23] sm:$0x3] %vm261, 0.0
      %s263 = scalar_lea.vmem %s246, 16
      %v264 = vld [vmem:[%s263] sm:$0xff]
      %v265 = vld [vmem:[%s263 + $0x8] sm:$0xff]
      %266 = vst.msk [vmem:[#allocation2 + $0x25] sm:$0xff] %vm252, %v264
      %267 = vst.msk [vmem:[#allocation2 + $0x2d] sm:$0xff] %vm252, %v265
      %268 = vst.msk [vmem:[#allocation2 + $0x35] sm:$0x3] %vm261, 0.0
      %s269 = scalar_lea.vmem %s246, 32
      %v270 = vld [vmem:[%s269] sm:$0xff]
      %v271 = vld [vmem:[%s269 + $0x8] sm:$0xff]
      %272 = vst.msk [vmem:[#allocation2 + $0x37] sm:$0xff] %vm252, %v270
      %273 = vst.msk [vmem:[#allocation2 + $0x3f] sm:$0xff] %vm252, %v271
      %274 = vst.msk [vmem:[#allocation2 + $0x47] sm:$0x3] %vm261, 0.0
      %s275 = scalar_lea.vmem %s246, 48
      %v276 = vld [vmem:[%s275] sm:$0xff]
      %v277 = vld [vmem:[%s275 + $0x8] sm:$0xff]
      %278 = vst.msk [vmem:[#allocation2 + $0x49] sm:$0xff] %vm252, %v276
      %279 = vst.msk [vmem:[#allocation2 + $0x51] sm:$0xff] %vm252, %v277
      %280 = vst.msk [vmem:[#allocation2 + $0x59] sm:$0x3] %vm261, 0.0
      %s281 = scalar_lea.vmem %s246, 64
      %v282 = vld [vmem:[%s281] sm:$0xff]
      %v283 = vld [vmem:[%s281 + $0x8] sm:$0xff]
      %284 = vst.msk [vmem:[#allocation2 + $0x5b] sm:$0xff] %vm252, %v282
      %285 = vst.msk [vmem:[#allocation2 + $0x63] sm:$0xff] %vm252, %v283
      %286 = vst.msk [vmem:[#allocation2 + $0x6b] sm:$0x3] %vm261, 0.0
      %s287 = scalar_lea.vmem %s246, 80
      %v288 = vld [vmem:[%s287] sm:$0xff]
      %v289 = vld [vmem:[%s287 + $0x8] sm:$0xff]
      %290 = vst.msk [vmem:[#allocation2 + $0x6d] sm:$0xff] %vm252, %v288
      %291 = vst.msk [vmem:[#allocation2 + $0x75] sm:$0xff] %vm252, %v289
      %292 = vst.msk [vmem:[#allocation2 + $0x7d] sm:$0x3] %vm261, 0.0
      %s293 = scalar_lea.vmem %s246, 96
      %v294 = vld [vmem:[%s293] sm:$0xff]
      %v295 = vld [vmem:[%s293 + $0x8] sm:$0xff]
      %296 = vst.msk [vmem:[#allocation2 + $0x7f] sm:$0xff] %vm252, %v294
      %297 = vst.msk [vmem:[#allocation2 + $0x87] sm:$0xff] %vm252, %v295
      %298 = vst.msk [vmem:[#allocation2 + $0x8f] sm:$0x3] %vm261, 0.0
      %s299 = scalar_lea.vmem %s246, 112
      %v300 = vld [vmem:[%s299] sm:$0xff]
      %v301 = vld [vmem:[%s299 + $0x8] sm:$0xff]
      %302 = vst.msk [vmem:[#allocation2 + $0x91] sm:$0xff] %vm252, %v300
      %303 = vst.msk [vmem:[#allocation2 + $0x99] sm:$0xff] %vm252, %v301
      %304 = vst.msk [vmem:[#allocation2 + $0xa1] sm:$0x3] %vm261, 0.0
      %s305 = scalar_lea.vmem %s246, 128
      %v306 = vld [vmem:[%s305] sm:$0xff]
      %v307 = vld [vmem:[%s305 + $0x8] sm:$0xff]
      %308 = vst.msk [vmem:[#allocation2 + $0xa3] sm:$0xff] %vm252, %v306
      %309 = vst.msk [vmem:[#allocation2 + $0xab] sm:$0xff] %vm252, %v307
      %310 = vst.msk [vmem:[#allocation2 + $0xb3] sm:$0x3] %vm261, 0.0
      %s311 = scalar_lea.vmem %s246, 144
      %v312 = vld [vmem:[%s311] sm:$0xff]
      %v313 = vld [vmem:[%s311 + $0x8] sm:$0xff]
      %314 = vst.msk [vmem:[#allocation2 + $0xb5] sm:$0xff] %vm252, %v312
      %315 = vst.msk [vmem:[#allocation2 + $0xbd] sm:$0xff] %vm252, %v313
      %316 = vst.msk [vmem:[#allocation2 + $0xc5] sm:$0x3] %vm261, 0.0
      %s317 = scalar_lea.vmem %s246, 160
      %v318 = vld [vmem:[%s317] sm:$0xff]
      %v319 = vld [vmem:[%s317 + $0x8] sm:$0xff]
      %320 = vst.msk [vmem:[#allocation2 + $0xc7] sm:$0xff] %vm252, %v318
      %321 = vst.msk [vmem:[#allocation2 + $0xcf] sm:$0xff] %vm252, %v319
      %322 = vst.msk [vmem:[#allocation2 + $0xd7] sm:$0x3] %vm261, 0.0
      %s323 = scalar_lea.vmem %s246, 176
      %v324 = vld [vmem:[%s323] sm:$0xff]
      %v325 = vld [vmem:[%s323 + $0x8] sm:$0xff]
      %326 = vst.msk [vmem:[#allocation2 + $0xd9] sm:$0xff] %vm252, %v324
      %327 = vst.msk [vmem:[#allocation2 + $0xe1] sm:$0xff] %vm252, %v325
      %328 = vst.msk [vmem:[#allocation2 + $0xe9] sm:$0x3] %vm261, 0.0
      %s329 = scalar_lea.vmem %s246, 192
      %v330 = vld [vmem:[%s329] sm:$0xff]
      %v331 = vld [vmem:[%s329 + $0x8] sm:$0xff]
      %332 = vst.msk [vmem:[#allocation2 + $0xeb] sm:$0xff] %vm252, %v330
      %333 = vst.msk [vmem:[#allocation2 + $0xf3] sm:$0xff] %vm252, %v331
      %334 = vst.msk [vmem:[#allocation2 + $0xfb] sm:$0x3] %vm261, 0.0
      %s335 = scalar_lea.vmem %s246, 208
      %v336 = vld [vmem:[%s335] sm:$0xff]
      %v337 = vld [vmem:[%s335 + $0x8] sm:$0xff]
      %338 = vst.msk [vmem:[#allocation2 + $0xfd] sm:$0xff] %vm252, %v336
      %339 = vst.msk [vmem:[#allocation2 + $0x105] sm:$0xff] %vm252, %v337
      %340 = vst.msk [vmem:[#allocation2 + $0x10d] sm:$0x3] %vm261, 0.0
      %s341 = scalar_lea.vmem %s246, 224
      %v342 = vld [vmem:[%s341] sm:$0xff]
      %v343 = vld [vmem:[%s341 + $0x8] sm:$0xff]
      %344 = vst.msk [vmem:[#allocation2 + $0x10f] sm:$0xff] %vm252, %v342
      %345 = vst.msk [vmem:[#allocation2 + $0x117] sm:$0xff] %vm252, %v343
      %346 = vst.msk [vmem:[#allocation2 + $0x11f] sm:$0x3] %vm261, 0.0
      %s347 = scalar_lea.vmem %s246, 240
      %v348 = vld [vmem:[%s347] sm:$0xff]
      %v349 = vld [vmem:[%s347 + $0x8] sm:$0xff]
      %350 = vst.msk [vmem:[#allocation2 + $0x121] sm:$0xff] %vm252, %v348
      %351 = vst.msk [vmem:[#allocation2 + $0x129] sm:$0xff] %vm252, %v349
      %352 = vst.msk [vmem:[#allocation2 + $0x131] sm:$0xff] %vm252, 0.0
      %353 = vst.msk [vmem:[#allocation2 + $0x139] sm:$0xff] %vm252, 0.0
      %vm354 = vcmask 260096
      %355 = vst.msk [vmem:[#allocation2 + $0x141] sm:$0x7f] %vm354, 0.0
      %v356 = vld [vmem:[#allocation2] sm:$0xff]
      %v357 = vld [vmem:[#allocation2 + $0x8] sm:$0xff]
      %v358 = vld [vmem:[#allocation2 + $0x10] sm:$0xff]
      %v359 = vld [vmem:[#allocation2 + $0x18] sm:$0xff]
      %v360 = vld [vmem:[#allocation2 + $0x20] sm:$0xff]
      %v361 = vld [vmem:[#allocation2 + $0x28] sm:$0xff]
      %v362 = vld [vmem:[#allocation2 + $0x30] sm:$0xff]
      %v363 = vld [vmem:[#allocation2 + $0x38] sm:$0xff]
      %v364 = vld [vmem:[#allocation2 + $0x40] sm:$0xff]
      %v365 = vld [vmem:[#allocation2 + $0x48] sm:$0xff]
      %v366 = vld [vmem:[#allocation2 + $0x50] sm:$0xff]
      %v367 = vld [vmem:[#allocation2 + $0x58] sm:$0xff]
      %v368 = vld [vmem:[#allocation2 + $0x60] sm:$0xff]
      %v369 = vld [vmem:[#allocation2 + $0x68] sm:$0xff]
      %v370 = vld [vmem:[#allocation2 + $0x70] sm:$0xff]
      %v371 = vld [vmem:[#allocation2 + $0x78] sm:$0xff]
      %v372 = vld [vmem:[#allocation2 + $0x80] sm:$0xff]
      %v373 = vld [vmem:[#allocation2 + $0x88] sm:$0xff]
      %v374 = vld [vmem:[#allocation2 + $0x90] sm:$0xff]
      %v375 = vld [vmem:[#allocation2 + $0x98] sm:$0xff]
      %v376 = vld [vmem:[#allocation2 + $0xa0] sm:$0xff]
      %v377 = vld [vmem:[#allocation2 + $0xa8] sm:$0xff]
      %v378 = vld [vmem:[#allocation2 + $0xb0] sm:$0xff]
      %v379 = vld [vmem:[#allocation2 + $0xb8] sm:$0xff]
      %v380 = vld [vmem:[#allocation2 + $0xc0] sm:$0xff]
      %v381 = vld [vmem:[#allocation2 + $0xc8] sm:$0xff]
      %v382 = vld [vmem:[#allocation2 + $0xd0] sm:$0xff]
      %v383 = vld [vmem:[#allocation2 + $0xd8] sm:$0xff]
      %v384 = vld [vmem:[#allocation2 + $0xe0] sm:$0xff]
      %v385 = vld [vmem:[#allocation2 + $0xe8] sm:$0xff]
      %v386 = vld [vmem:[#allocation2 + $0xf0] sm:$0xff]
      %v387 = vld [vmem:[#allocation2 + $0xf8] sm:$0xff]
      %v388 = vld [vmem:[#allocation2 + $0x100] sm:$0xff]
      %v389 = vld [vmem:[#allocation2 + $0x108] sm:$0xff]
      %v390 = vld [vmem:[#allocation2 + $0x110] sm:$0xff]
      %v391 = vld [vmem:[#allocation2 + $0x118] sm:$0xff]
      %392 = vst.msk [vmem:[#allocation4] sm:$0xff] %vm252, %v356
      %393 = vst.msk [vmem:[#allocation4 + $0x18] sm:$0xff] %vm252, %v357
      %394 = vst.msk [vmem:[#allocation4 + $0x30] sm:$0xff] %vm252, %v358
      %395 = vst.msk [vmem:[#allocation4 + $0x48] sm:$0xff] %vm252, %v359
      %396 = vst.msk [vmem:[#allocation4 + $0x60] sm:$0xff] %vm252, %v360
      %397 = vst.msk [vmem:[#allocation4 + $0x78] sm:$0xff] %vm252, %v361
      %398 = vst.msk [vmem:[#allocation4 + $0x90] sm:$0xff] %vm252, %v362
      %399 = vst.msk [vmem:[#allocation4 + $0xa8] sm:$0xff] %vm252, %v363
      %400 = vst.msk [vmem:[#allocation4 + $0xc0] sm:$0xff] %vm252, %v364
      %401 = vst.msk [vmem:[#allocation4 + $0xd8] sm:$0xff] %vm252, %v365
      %402 = vst.msk [vmem:[#allocation4 + $0xf0] sm:$0xff] %vm252, %v366
      %403 = vst.msk [vmem:[#allocation4 + $0x108] sm:$0xff] %vm252, %v367
      %404 = vst.msk [vmem:[#allocation4 + $0x120] sm:$0xff] %vm252, %v368
      %405 = vst.msk [vmem:[#allocation4 + $0x138] sm:$0xff] %vm252, %v369
      %406 = vst.msk [vmem:[#allocation4 + $0x150] sm:$0xff] %vm252, %v370
      %407 = vst.msk [vmem:[#allocation4 + $0x168] sm:$0xff] %vm252, %v371
      %408 = vst.msk [vmem:[#allocation4 + $0x180] sm:$0xff] %vm252, %v372
      %409 = vst.msk [vmem:[#allocation4 + $0x198] sm:$0xff] %vm252, %v373
      %410 = vst.msk [vmem:[#allocation4 + $0x1b0] sm:$0xff] %vm252, %v374
      %411 = vst.msk [vmem:[#allocation4 + $0x1c8] sm:$0xff] %vm252, %v375
      %412 = vst.msk [vmem:[#allocation4 + $0x1e0] sm:$0xff] %vm252, %v376
      %413 = vst.msk [vmem:[#allocation4 + $0x1f8] sm:$0xff] %vm252, %v377
      %414 = vst.msk [vmem:[#allocation4 + $0x210] sm:$0xff] %vm252, %v378
      %415 = vst.msk [vmem:[#allocation4 + $0x228] sm:$0xff] %vm252, %v379
      %416 = vst.msk [vmem:[#allocation4 + $0x240] sm:$0xff] %vm252, %v380
      %417 = vst.msk [vmem:[#allocation4 + $0x258] sm:$0xff] %vm252, %v381
      %418 = vst.msk [vmem:[#allocation4 + $0x270] sm:$0xff] %vm252, %v382
      %419 = vst.msk [vmem:[#allocation4 + $0x288] sm:$0xff] %vm252, %v383
      %420 = vst.msk [vmem:[#allocation4 + $0x2a0] sm:$0xff] %vm252, %v384
      %421 = vst.msk [vmem:[#allocation4 + $0x2b8] sm:$0xff] %vm252, %v385
      %422 = vst.msk [vmem:[#allocation4 + $0x2d0] sm:$0xff] %vm252, %v386
      %423 = vst.msk [vmem:[#allocation4 + $0x2e8] sm:$0xff] %vm252, %v387
      %424 = vst.msk [vmem:[#allocation4 + $0x300] sm:$0xff] %vm252, %v388
      %425 = vst.msk [vmem:[#allocation4 + $0x318] sm:$0xff] %vm252, %v389
      %426 = vst.msk [vmem:[#allocation4 + $0x330] sm:$0xff] %vm252, %v390
      %427 = vst.msk [vmem:[#allocation4 + $0x348] sm:$0xff] %vm252, %v391
      %v428 = vld [vmem:[#allocation2 + $0x1] sm:$0xff]
      %v429 = vld [vmem:[#allocation2 + $0x9] sm:$0xff]
      %v430 = vld [vmem:[#allocation2 + $0x11] sm:$0xff]
      %v431 = vld [vmem:[#allocation2 + $0x19] sm:$0xff]
      %v432 = vld [vmem:[#allocation2 + $0x21] sm:$0xff]
      %v433 = vld [vmem:[#allocation2 + $0x29] sm:$0xff]
      %v434 = vld [vmem:[#allocation2 + $0x31] sm:$0xff]
      %v435 = vld [vmem:[#allocation2 + $0x39] sm:$0xff]
      %v436 = vld [vmem:[#allocation2 + $0x41] sm:$0xff]
      %v437 = vld [vmem:[#allocation2 + $0x49] sm:$0xff]
      %v438 = vld [vmem:[#allocation2 + $0x51] sm:$0xff]
      %v439 = vld [vmem:[#allocation2 + $0x59] sm:$0xff]
      %v440 = vld [vmem:[#allocation2 + $0x61] sm:$0xff]
      %v441 = vld [vmem:[#allocation2 + $0x69] sm:$0xff]
      %v442 = vld [vmem:[#allocation2 + $0x71] sm:$0xff]
      %v443 = vld [vmem:[#allocation2 + $0x79] sm:$0xff]
      %v444 = vld [vmem:[#allocation2 + $0x81] sm:$0xff]
      %v445 = vld [vmem:[#allocation2 + $0x89] sm:$0xff]
      %v446 = vld [vmem:[#allocation2 + $0x91] sm:$0xff]
      %v447 = vld [vmem:[#allocation2 + $0x99] sm:$0xff]
      %v448 = vld [vmem:[#allocation2 + $0xa1] sm:$0xff]
      %v449 = vld [vmem:[#allocation2 + $0xa9] sm:$0xff]
      %v450 = vld [vmem:[#allocation2 + $0xb1] sm:$0xff]
      %v451 = vld [vmem:[#allocation2 + $0xb9] sm:$0xff]
      %v452 = vld [vmem:[#allocation2 + $0xc1] sm:$0xff]
      %v453 = vld [vmem:[#allocation2 + $0xc9] sm:$0xff]
      %v454 = vld [vmem:[#allocation2 + $0xd1] sm:$0xff]
      %v455 = vld [vmem:[#allocation2 + $0xd9] sm:$0xff]
      %v456 = vld [vmem:[#allocation2 + $0xe1] sm:$0xff]
      %v457 = vld [vmem:[#allocation2 + $0xe9] sm:$0xff]
      %v458 = vld [vmem:[#allocation2 + $0xf1] sm:$0xff]
      %v459 = vld [vmem:[#allocation2 + $0xf9] sm:$0xff]
      %v460 = vld [vmem:[#allocation2 + $0x101] sm:$0xff]
      %v461 = vld [vmem:[#allocation2 + $0x109] sm:$0xff]
      %v462 = vld [vmem:[#allocation2 + $0x111] sm:$0xff]
      %v463 = vld [vmem:[#allocation2 + $0x119] sm:$0xff]
      %500 = vrot.lane.b32.xlu0 %v428, 32
      %v501 = vpop.permute.xlu0 %500
      %502 = vrot.lane.b32.xlu0 %v429, 32
      %v503 = vpop.permute.xlu0 %502
      %504 = vrot.lane.b32.xlu0 %v430, 32
      %v505 = vpop.permute.xlu0 %504
      %506 = vrot.lane.b32.xlu0 %v431, 32
      %v507 = vpop.permute.xlu0 %506
      %508 = vrot.lane.b32.xlu0 %v432, 32
      %v509 = vpop.permute.xlu0 %508
      %510 = vrot.lane.b32.xlu0 %v433, 32
      %v511 = vpop.permute.xlu0 %510
      %512 = vrot.lane.b32.xlu0 %v434, 32
      %v513 = vpop.permute.xlu0 %512
      %514 = vrot.lane.b32.xlu0 %v435, 32
      %v515 = vpop.permute.xlu0 %514
      %516 = vrot.lane.b32.xlu0 %v436, 32
      %v517 = vpop.permute.xlu0 %516
      %518 = vrot.lane.b32.xlu0 %v437, 32
      %v519 = vpop.permute.xlu0 %518
      %520 = vrot.lane.b32.xlu0 %v438, 32
      %v521 = vpop.permute.xlu0 %520
      %522 = vrot.lane.b32.xlu0 %v439, 32
      %v523 = vpop.permute.xlu0 %522
      %524 = vrot.lane.b32.xlu0 %v440, 32
      %v525 = vpop.permute.xlu0 %524
      %526 = vrot.lane.b32.xlu0 %v441, 32
      %v527 = vpop.permute.xlu0 %526
      %528 = vrot.lane.b32.xlu0 %v442, 32
      %v529 = vpop.permute.xlu0 %528
      %530 = vrot.lane.b32.xlu0 %v443, 32
      %v531 = vpop.permute.xlu0 %530
      %532 = vrot.lane.b32.xlu0 %v444, 32
      %v533 = vpop.permute.xlu0 %532
      %534 = vrot.lane.b32.xlu0 %v445, 32
      %v535 = vpop.permute.xlu0 %534
      %536 = vrot.lane.b32.xlu0 %v446, 32
      %v537 = vpop.permute.xlu0 %536
      %538 = vrot.lane.b32.xlu0 %v447, 32
      %v539 = vpop.permute.xlu0 %538
      %540 = vrot.lane.b32.xlu0 %v448, 32
      %v541 = vpop.permute.xlu0 %540
      %542 = vrot.lane.b32.xlu0 %v449, 32
      %v543 = vpop.permute.xlu0 %542
      %544 = vrot.lane.b32.xlu0 %v450, 32
      %v545 = vpop.permute.xlu0 %544
      %546 = vrot.lane.b32.xlu0 %v451, 32
      %v547 = vpop.permute.xlu0 %546
      %548 = vrot.lane.b32.xlu0 %v452, 32
      %v549 = vpop.permute.xlu0 %548
      %550 = vrot.lane.b32.xlu0 %v453, 32
      %v551 = vpop.permute.xlu0 %550
      %552 = vrot.lane.b32.xlu0 %v454, 32
      %v553 = vpop.permute.xlu0 %552
      %554 = vrot.lane.b32.xlu0 %v455, 32
      %v555 = vpop.permute.xlu0 %554
      %556 = vrot.lane.b32.xlu0 %v456, 32
      %v557 = vpop.permute.xlu0 %556
      %558 = vrot.lane.b32.xlu0 %v457, 32
      %v559 = vpop.permute.xlu0 %558
      %560 = vrot.lane.b32.xlu0 %v458, 32
      %v561 = vpop.permute.xlu0 %560
      %562 = vrot.lane.b32.xlu0 %v459, 32
      %v563 = vpop.permute.xlu0 %562
      %564 = vrot.lane.b32.xlu0 %v460, 32
      %v565 = vpop.permute.xlu0 %564
      %566 = vrot.lane.b32.xlu0 %v461, 32
      %v567 = vpop.permute.xlu0 %566
      %568 = vrot.lane.b32.xlu0 %v462, 32
      %v569 = vpop.permute.xlu0 %568
      %570 = vrot.lane.b32.xlu0 %v463, 32
      %v571 = vpop.permute.xlu0 %570
      %vm608 = vcmask 523520
      %609 = vst.msk [vmem:[#allocation4] sm:$0xff] %vm608, %v501
      %610 = vst.msk [vmem:[#allocation4 + $0x18] sm:$0xff] %vm608, %v503
      %611 = vst.msk [vmem:[#allocation4 + $0x30] sm:$0xff] %vm608, %v505
      %612 = vst.msk [vmem:[#allocation4 + $0x48] sm:$0xff] %vm608, %v507
      %613 = vst.msk [vmem:[#allocation4 + $0x60] sm:$0xff] %vm608, %v509
      %614 = vst.msk [vmem:[#allocation4 + $0x78] sm:$0xff] %vm608, %v511
      %615 = vst.msk [vmem:[#allocation4 + $0x90] sm:$0xff] %vm608, %v513
      %616 = vst.msk [vmem:[#allocation4 + $0xa8] sm:$0xff] %vm608, %v515
      %617 = vst.msk [vmem:[#allocation4 + $0xc0] sm:$0xff] %vm608, %v517
      %618 = vst.msk [vmem:[#allocation4 + $0xd8] sm:$0xff] %vm608, %v519
      %619 = vst.msk [vmem:[#allocation4 + $0xf0] sm:$0xff] %vm608, %v521
      %620 = vst.msk [vmem:[#allocation4 + $0x108] sm:$0xff] %vm608, %v523
      %621 = vst.msk [vmem:[#allocation4 + $0x120] sm:$0xff] %vm608, %v525
      %622 = vst.msk [vmem:[#allocation4 + $0x138] sm:$0xff] %vm608, %v527
      %623 = vst.msk [vmem:[#allocation4 + $0x150] sm:$0xff] %vm608, %v529
      %624 = vst.msk [vmem:[#allocation4 + $0x168] sm:$0xff] %vm608, %v531
      %625 = vst.msk [vmem:[#allocation4 + $0x180] sm:$0xff] %vm608, %v533
      %626 = vst.msk [vmem:[#allocation4 + $0x198] sm:$0xff] %vm608, %v535
      %627 = vst.msk [vmem:[#allocation4 + $0x1b0] sm:$0xff] %vm608, %v537
      %628 = vst.msk [vmem:[#allocation4 + $0x1c8] sm:$0xff] %vm608, %v539
      %629 = vst.msk [vmem:[#allocation4 + $0x1e0] sm:$0xff] %vm608, %v541
      %630 = vst.msk [vmem:[#allocation4 + $0x1f8] sm:$0xff] %vm608, %v543
      %631 = vst.msk [vmem:[#allocation4 + $0x210] sm:$0xff] %vm608, %v545
      %632 = vst.msk [vmem:[#allocation4 + $0x228] sm:$0xff] %vm608, %v547
      %633 = vst.msk [vmem:[#allocation4 + $0x240] sm:$0xff] %vm608, %v549
      %634 = vst.msk [vmem:[#allocation4 + $0x258] sm:$0xff] %vm608, %v551
      %635 = vst.msk [vmem:[#allocation4 + $0x270] sm:$0xff] %vm608, %v553
      %636 = vst.msk [vmem:[#allocation4 + $0x288] sm:$0xff] %vm608, %v555
      %637 = vst.msk [vmem:[#allocation4 + $0x2a0] sm:$0xff] %vm608, %v557
      %638 = vst.msk [vmem:[#allocation4 + $0x2b8] sm:$0xff] %vm608, %v559
      %639 = vst.msk [vmem:[#allocation4 + $0x2d0] sm:$0xff] %vm608, %v561
      %640 = vst.msk [vmem:[#allocation4 + $0x2e8] sm:$0xff] %vm608, %v563
      %641 = vst.msk [vmem:[#allocation4 + $0x300] sm:$0xff] %vm608, %v565
      %642 = vst.msk [vmem:[#allocation4 + $0x318] sm:$0xff] %vm608, %v567
      %643 = vst.msk [vmem:[#allocation4 + $0x330] sm:$0xff] %vm608, %v569
      %644 = vst.msk [vmem:[#allocation4 + $0x348] sm:$0xff] %vm608, %v571
      %v645 = vld [vmem:[#allocation2 + $0x2] sm:$0xff]
      %v646 = vld [vmem:[#allocation2 + $0xa] sm:$0xff]
      %v647 = vld [vmem:[#allocation2 + $0x12] sm:$0xff]
      %v648 = vld [vmem:[#allocation2 + $0x1a] sm:$0xff]
      %v649 = vld [vmem:[#allocation2 + $0x22] sm:$0xff]
      %v650 = vld [vmem:[#allocation2 + $0x2a] sm:$0xff]
      %v651 = vld [vmem:[#allocation2 + $0x32] sm:$0xff]
      %v652 = vld [vmem:[#allocation2 + $0x3a] sm:$0xff]
      %v653 = vld [vmem:[#allocation2 + $0x42] sm:$0xff]
      %v654 = vld [vmem:[#allocation2 + $0x4a] sm:$0xff]
      %v655 = vld [vmem:[#allocation2 + $0x52] sm:$0xff]
      %v656 = vld [vmem:[#allocation2 + $0x5a] sm:$0xff]
      %v657 = vld [vmem:[#allocation2 + $0x62] sm:$0xff]
      %v658 = vld [vmem:[#allocation2 + $0x6a] sm:$0xff]
      %v659 = vld [vmem:[#allocation2 + $0x72] sm:$0xff]
      %v660 = vld [vmem:[#allocation2 + $0x7a] sm:$0xff]
      %v661 = vld [vmem:[#allocation2 + $0x82] sm:$0xff]
      %v662 = vld [vmem:[#allocation2 + $0x8a] sm:$0xff]
      %v663 = vld [vmem:[#allocation2 + $0x92] sm:$0xff]
      %v664 = vld [vmem:[#allocation2 + $0x9a] sm:$0xff]
      %v665 = vld [vmem:[#allocation2 + $0xa2] sm:$0xff]
      %v666 = vld [vmem:[#allocation2 + $0xaa] sm:$0xff]
      %v667 = vld [vmem:[#allocation2 + $0xb2] sm:$0xff]
      %v668 = vld [vmem:[#allocation2 + $0xba] sm:$0xff]
      %v669 = vld [vmem:[#allocation2 + $0xc2] sm:$0xff]
      %v670 = vld [vmem:[#allocation2 + $0xca] sm:$0xff]
      %v671 = vld [vmem:[#allocation2 + $0xd2] sm:$0xff]
      %v672 = vld [vmem:[#allocation2 + $0xda] sm:$0xff]
      %v673 = vld [vmem:[#allocation2 + $0xe2] sm:$0xff]
      %v674 = vld [vmem:[#allocation2 + $0xea] sm:$0xff]
      %v675 = vld [vmem:[#allocation2 + $0xf2] sm:$0xff]
      %v676 = vld [vmem:[#allocation2 + $0xfa] sm:$0xff]
      %v677 = vld [vmem:[#allocation2 + $0x102] sm:$0xff]
      %v678 = vld [vmem:[#allocation2 + $0x10a] sm:$0xff]
      %v679 = vld [vmem:[#allocation2 + $0x112] sm:$0xff]
      %v680 = vld [vmem:[#allocation2 + $0x11a] sm:$0xff]
      %717 = vrot.lane.b32.xlu0 %v645, 64
      %v718 = vpop.permute.xlu0 %717
      %719 = vrot.lane.b32.xlu0 %v646, 64
      %v720 = vpop.permute.xlu0 %719
      %721 = vrot.lane.b32.xlu0 %v647, 64
      %v722 = vpop.permute.xlu0 %721
      %723 = vrot.lane.b32.xlu0 %v648, 64
      %v724 = vpop.permute.xlu0 %723
      %725 = vrot.lane.b32.xlu0 %v649, 64
      %v726 = vpop.permute.xlu0 %725
      %727 = vrot.lane.b32.xlu0 %v650, 64
      %v728 = vpop.permute.xlu0 %727
      %729 = vrot.lane.b32.xlu0 %v651, 64
      %v730 = vpop.permute.xlu0 %729
      %731 = vrot.lane.b32.xlu0 %v652, 64
      %v732 = vpop.permute.xlu0 %731
      %733 = vrot.lane.b32.xlu0 %v653, 64
      %v734 = vpop.permute.xlu0 %733
      %735 = vrot.lane.b32.xlu0 %v654, 64
      %v736 = vpop.permute.xlu0 %735
      %737 = vrot.lane.b32.xlu0 %v655, 64
      %v738 = vpop.permute.xlu0 %737
      %739 = vrot.lane.b32.xlu0 %v656, 64
      %v740 = vpop.permute.xlu0 %739
      %741 = vrot.lane.b32.xlu0 %v657, 64
      %v742 = vpop.permute.xlu0 %741
      %743 = vrot.lane.b32.xlu0 %v658, 64
      %v744 = vpop.permute.xlu0 %743
      %745 = vrot.lane.b32.xlu0 %v659, 64
      %v746 = vpop.permute.xlu0 %745
      %747 = vrot.lane.b32.xlu0 %v660, 64
      %v748 = vpop.permute.xlu0 %747
      %749 = vrot.lane.b32.xlu0 %v661, 64
      %v750 = vpop.permute.xlu0 %749
      %751 = vrot.lane.b32.xlu0 %v662, 64
      %v752 = vpop.permute.xlu0 %751
      %753 = vrot.lane.b32.xlu0 %v663, 64
      %v754 = vpop.permute.xlu0 %753
      %755 = vrot.lane.b32.xlu0 %v664, 64
      %v756 = vpop.permute.xlu0 %755
      %757 = vrot.lane.b32.xlu0 %v665, 64
      %v758 = vpop.permute.xlu0 %757
      %759 = vrot.lane.b32.xlu0 %v666, 64
      %v760 = vpop.permute.xlu0 %759
      %761 = vrot.lane.b32.xlu0 %v667, 64
      %v762 = vpop.permute.xlu0 %761
      %763 = vrot.lane.b32.xlu0 %v668, 64
      %v764 = vpop.permute.xlu0 %763
      %765 = vrot.lane.b32.xlu0 %v669, 64
      %v766 = vpop.permute.xlu0 %765
      %767 = vrot.lane.b32.xlu0 %v670, 64
      %v768 = vpop.permute.xlu0 %767
      %769 = vrot.lane.b32.xlu0 %v671, 64
      %v770 = vpop.permute.xlu0 %769
      %771 = vrot.lane.b32.xlu0 %v672, 64
      %v772 = vpop.permute.xlu0 %771
      %773 = vrot.lane.b32.xlu0 %v673, 64
      %v774 = vpop.permute.xlu0 %773
      %775 = vrot.lane.b32.xlu0 %v674, 64
      %v776 = vpop.permute.xlu0 %775
      %777 = vrot.lane.b32.xlu0 %v675, 64
      %v778 = vpop.permute.xlu0 %777
      %779 = vrot.lane.b32.xlu0 %v676, 64
      %v780 = vpop.permute.xlu0 %779
      %781 = vrot.lane.b32.xlu0 %v677, 64
      %v782 = vpop.permute.xlu0 %781
      %783 = vrot.lane.b32.xlu0 %v678, 64
      %v784 = vpop.permute.xlu0 %783
      %785 = vrot.lane.b32.xlu0 %v679, 64
      %v786 = vpop.permute.xlu0 %785
      %787 = vrot.lane.b32.xlu0 %v680, 64
      %v788 = vpop.permute.xlu0 %787
      %vm825 = vcmask 785920
      %826 = vst.msk [vmem:[#allocation4] sm:$0xff] %vm825, %v718
      %827 = vst.msk [vmem:[#allocation4 + $0x18] sm:$0xff] %vm825, %v720
      %828 = vst.msk [vmem:[#allocation4 + $0x30] sm:$0xff] %vm825, %v722
      %829 = vst.msk [vmem:[#allocation4 + $0x48] sm:$0xff] %vm825, %v724
      %830 = vst.msk [vmem:[#allocation4 + $0x60] sm:$0xff] %vm825, %v726
      %831 = vst.msk [vmem:[#allocation4 + $0x78] sm:$0xff] %vm825, %v728
      %832 = vst.msk [vmem:[#allocation4 + $0x90] sm:$0xff] %vm825, %v730
      %833 = vst.msk [vmem:[#allocation4 + $0xa8] sm:$0xff] %vm825, %v732
      %834 = vst.msk [vmem:[#allocation4 + $0xc0] sm:$0xff] %vm825, %v734
      %835 = vst.msk [vmem:[#allocation4 + $0xd8] sm:$0xff] %vm825, %v736
      %836 = vst.msk [vmem:[#allocation4 + $0xf0] sm:$0xff] %vm825, %v738
      %837 = vst.msk [vmem:[#allocation4 + $0x108] sm:$0xff] %vm825, %v740
      %838 = vst.msk [vmem:[#allocation4 + $0x120] sm:$0xff] %vm825, %v742
      %839 = vst.msk [vmem:[#allocation4 + $0x138] sm:$0xff] %vm825, %v744
      %840 = vst.msk [vmem:[#allocation4 + $0x150] sm:$0xff] %vm825, %v746
      %841 = vst.msk [vmem:[#allocation4 + $0x168] sm:$0xff] %vm825, %v748
      %842 = vst.msk [vmem:[#allocation4 + $0x180] sm:$0xff] %vm825, %v750
      %843 = vst.msk [vmem:[#allocation4 + $0x198] sm:$0xff] %vm825, %v752
      %844 = vst.msk [vmem:[#allocation4 + $0x1b0] sm:$0xff] %vm825, %v754
      %845 = vst.msk [vmem:[#allocation4 + $0x1c8] sm:$0xff] %vm825, %v756
      %846 = vst.msk [vmem:[#allocation4 + $0x1e0] sm:$0xff] %vm825, %v758
      %847 = vst.msk [vmem:[#allocation4 + $0x1f8] sm:$0xff] %vm825, %v760
      %848 = vst.msk [vmem:[#allocation4 + $0x210] sm:$0xff] %vm825, %v762
      %849 = vst.msk [vmem:[#allocation4 + $0x228] sm:$0xff] %vm825, %v764
      %850 = vst.msk [vmem:[#allocation4 + $0x240] sm:$0xff] %vm825, %v766
      %851 = vst.msk [vmem:[#allocation4 + $0x258] sm:$0xff] %vm825, %v768
      %852 = vst.msk [vmem:[#allocation4 + $0x270] sm:$0xff] %vm825, %v770
      %853 = vst.msk [vmem:[#allocation4 + $0x288] sm:$0xff] %vm825, %v772
      %854 = vst.msk [vmem:[#allocation4 + $0x2a0] sm:$0xff] %vm825, %v774
      %855 = vst.msk [vmem:[#allocation4 + $0x2b8] sm:$0xff] %vm825, %v776
      %856 = vst.msk [vmem:[#allocation4 + $0x2d0] sm:$0xff] %vm825, %v778
      %857 = vst.msk [vmem:[#allocation4 + $0x2e8] sm:$0xff] %vm825, %v780
      %858 = vst.msk [vmem:[#allocation4 + $0x300] sm:$0xff] %vm825, %v782
      %859 = vst.msk [vmem:[#allocation4 + $0x318] sm:$0xff] %vm825, %v784
      %860 = vst.msk [vmem:[#allocation4 + $0x330] sm:$0xff] %vm825, %v786
      %861 = vst.msk [vmem:[#allocation4 + $0x348] sm:$0xff] %vm825, %v788
      %v862 = vld [vmem:[#allocation2 + $0x12] sm:$0xff]
      %v863 = vld [vmem:[#allocation2 + $0x1a] sm:$0xff]
      %v864 = vld [vmem:[#allocation2 + $0x22] sm:$0xff]
      %v865 = vld [vmem:[#allocation2 + $0x2a] sm:$0xff]
      %v866 = vld [vmem:[#allocation2 + $0x32] sm:$0xff]
      %v867 = vld [vmem:[#allocation2 + $0x3a] sm:$0xff]
      %v868 = vld [vmem:[#allocation2 + $0x42] sm:$0xff]
      %v869 = vld [vmem:[#allocation2 + $0x4a] sm:$0xff]
      %v870 = vld [vmem:[#allocation2 + $0x52] sm:$0xff]
      %v871 = vld [vmem:[#allocation2 + $0x5a] sm:$0xff]
      %v872 = vld [vmem:[#allocation2 + $0x62] sm:$0xff]
      %v873 = vld [vmem:[#allocation2 + $0x6a] sm:$0xff]
      %v874 = vld [vmem:[#allocation2 + $0x72] sm:$0xff]
      %v875 = vld [vmem:[#allocation2 + $0x7a] sm:$0xff]
      %v876 = vld [vmem:[#allocation2 + $0x82] sm:$0xff]
      %v877 = vld [vmem:[#allocation2 + $0x8a] sm:$0xff]
      %v878 = vld [vmem:[#allocation2 + $0x92] sm:$0xff]
      %v879 = vld [vmem:[#allocation2 + $0x9a] sm:$0xff]
      %v880 = vld [vmem:[#allocation2 + $0xa2] sm:$0xff]
      %v881 = vld [vmem:[#allocation2 + $0xaa] sm:$0xff]
      %v882 = vld [vmem:[#allocation2 + $0xb2] sm:$0xff]
      %v883 = vld [vmem:[#allocation2 + $0xba] sm:$0xff]
      %v884 = vld [vmem:[#allocation2 + $0xc2] sm:$0xff]
      %v885 = vld [vmem:[#allocation2 + $0xca] sm:$0xff]
      %v886 = vld [vmem:[#allocation2 + $0xd2] sm:$0xff]
      %v887 = vld [vmem:[#allocation2 + $0xda] sm:$0xff]
      %v888 = vld [vmem:[#allocation2 + $0xe2] sm:$0xff]
      %v889 = vld [vmem:[#allocation2 + $0xea] sm:$0xff]
      %v890 = vld [vmem:[#allocation2 + $0xf2] sm:$0xff]
      %v891 = vld [vmem:[#allocation2 + $0xfa] sm:$0xff]
      %v892 = vld [vmem:[#allocation2 + $0x102] sm:$0xff]
      %v893 = vld [vmem:[#allocation2 + $0x10a] sm:$0xff]
      %v894 = vld [vmem:[#allocation2 + $0x112] sm:$0xff]
      %v895 = vld [vmem:[#allocation2 + $0x11a] sm:$0xff]
      %v896 = vld [vmem:[#allocation2 + $0x122] sm:$0xff]
      %v897 = vld [vmem:[#allocation2 + $0x12a] sm:$0xff]
      %934 = vrot.lane.b32.xlu0 %v862, 96
      %v935 = vpop.permute.xlu0 %934
      %936 = vrot.lane.b32.xlu0 %v863, 96
      %v937 = vpop.permute.xlu0 %936
      %938 = vrot.lane.b32.xlu0 %v864, 96
      %v939 = vpop.permute.xlu0 %938
      %940 = vrot.lane.b32.xlu0 %v865, 96
      %v941 = vpop.permute.xlu0 %940
      %942 = vrot.lane.b32.xlu0 %v866, 96
      %v943 = vpop.permute.xlu0 %942
      %944 = vrot.lane.b32.xlu0 %v867, 96
      %v945 = vpop.permute.xlu0 %944
      %946 = vrot.lane.b32.xlu0 %v868, 96
      %v947 = vpop.permute.xlu0 %946
      %948 = vrot.lane.b32.xlu0 %v869, 96
      %v949 = vpop.permute.xlu0 %948
      %950 = vrot.lane.b32.xlu0 %v870, 96
      %v951 = vpop.permute.xlu0 %950
      %952 = vrot.lane.b32.xlu0 %v871, 96
      %v953 = vpop.permute.xlu0 %952
      %954 = vrot.lane.b32.xlu0 %v872, 96
      %v955 = vpop.permute.xlu0 %954
      %956 = vrot.lane.b32.xlu0 %v873, 96
      %v957 = vpop.permute.xlu0 %956
      %958 = vrot.lane.b32.xlu0 %v874, 96
      %v959 = vpop.permute.xlu0 %958
      %960 = vrot.lane.b32.xlu0 %v875, 96
      %v961 = vpop.permute.xlu0 %960
      %962 = vrot.lane.b32.xlu0 %v876, 96
      %v963 = vpop.permute.xlu0 %962
      %964 = vrot.lane.b32.xlu0 %v877, 96
      %v965 = vpop.permute.xlu0 %964
      %966 = vrot.lane.b32.xlu0 %v878, 96
      %v967 = vpop.permute.xlu0 %966
      %968 = vrot.lane.b32.xlu0 %v879, 96
      %v969 = vpop.permute.xlu0 %968
      %970 = vrot.lane.b32.xlu0 %v880, 96
      %v971 = vpop.permute.xlu0 %970
      %972 = vrot.lane.b32.xlu0 %v881, 96
      %v973 = vpop.permute.xlu0 %972
      %974 = vrot.lane.b32.xlu0 %v882, 96
      %v975 = vpop.permute.xlu0 %974
      %976 = vrot.lane.b32.xlu0 %v883, 96
      %v977 = vpop.permute.xlu0 %976
      %978 = vrot.lane.b32.xlu0 %v884, 96
      %v979 = vpop.permute.xlu0 %978
      %980 = vrot.lane.b32.xlu0 %v885, 96
      %v981 = vpop.permute.xlu0 %980
      %982 = vrot.lane.b32.xlu0 %v886, 96
      %v983 = vpop.permute.xlu0 %982
      %984 = vrot.lane.b32.xlu0 %v887, 96
      %v985 = vpop.permute.xlu0 %984
      %986 = vrot.lane.b32.xlu0 %v888, 96
      %v987 = vpop.permute.xlu0 %986
      %988 = vrot.lane.b32.xlu0 %v889, 96
      %v989 = vpop.permute.xlu0 %988
      %990 = vrot.lane.b32.xlu0 %v890, 96
      %v991 = vpop.permute.xlu0 %990
      %992 = vrot.lane.b32.xlu0 %v891, 96
      %v993 = vpop.permute.xlu0 %992
      %994 = vrot.lane.b32.xlu0 %v892, 96
      %v995 = vpop.permute.xlu0 %994
      %996 = vrot.lane.b32.xlu0 %v893, 96
      %v997 = vpop.permute.xlu0 %996
      %998 = vrot.lane.b32.xlu0 %v894, 96
      %v999 = vpop.permute.xlu0 %998
      %1000 = vrot.lane.b32.xlu0 %v895, 96
      %v1001 = vpop.permute.xlu0 %1000
      %1002 = vrot.lane.b32.xlu0 %v896, 96
      %v1003 = vpop.permute.xlu0 %1002
      %1004 = vrot.lane.b32.xlu0 %v897, 96
      %v1005 = vpop.permute.xlu0 %1004
      %vm1042 = vcmask 1048320
      %1043 = vst.msk [vmem:[#allocation4] sm:$0xff] %vm1042, %v935
      %1044 = vst.msk [vmem:[#allocation4 + $0x18] sm:$0xff] %vm1042, %v937
      %1045 = vst.msk [vmem:[#allocation4 + $0x30] sm:$0xff] %vm1042, %v939
      %1046 = vst.msk [vmem:[#allocation4 + $0x48] sm:$0xff] %vm1042, %v941
      %1047 = vst.msk [vmem:[#allocation4 + $0x60] sm:$0xff] %vm1042, %v943
      %1048 = vst.msk [vmem:[#allocation4 + $0x78] sm:$0xff] %vm1042, %v945
      %1049 = vst.msk [vmem:[#allocation4 + $0x90] sm:$0xff] %vm1042, %v947
      %1050 = vst.msk [vmem:[#allocation4 + $0xa8] sm:$0xff] %vm1042, %v949
      %1051 = vst.msk [vmem:[#allocation4 + $0xc0] sm:$0xff] %vm1042, %v951
      %1052 = vst.msk [vmem:[#allocation4 + $0xd8] sm:$0xff] %vm1042, %v953
      %1053 = vst.msk [vmem:[#allocation4 + $0xf0] sm:$0xff] %vm1042, %v955
      %1054 = vst.msk [vmem:[#allocation4 + $0x108] sm:$0xff] %vm1042, %v957
      %1055 = vst.msk [vmem:[#allocation4 + $0x120] sm:$0xff] %vm1042, %v959
      %1056 = vst.msk [vmem:[#allocation4 + $0x138] sm:$0xff] %vm1042, %v961
      %1057 = vst.msk [vmem:[#allocation4 + $0x150] sm:$0xff] %vm1042, %v963
      %1058 = vst.msk [vmem:[#allocation4 + $0x168] sm:$0xff] %vm1042, %v965
      %1059 = vst.msk [vmem:[#allocation4 + $0x180] sm:$0xff] %vm1042, %v967
      %1060 = vst.msk [vmem:[#allocation4 + $0x198] sm:$0xff] %vm1042, %v969
      %1061 = vst.msk [vmem:[#allocation4 + $0x1b0] sm:$0xff] %vm1042, %v971
      %1062 = vst.msk [vmem:[#allocation4 + $0x1c8] sm:$0xff] %vm1042, %v973
      %1063 = vst.msk [vmem:[#allocation4 + $0x1e0] sm:$0xff] %vm1042, %v975
      %1064 = vst.msk [vmem:[#allocation4 + $0x1f8] sm:$0xff] %vm1042, %v977
      %1065 = vst.msk [vmem:[#allocation4 + $0x210] sm:$0xff] %vm1042, %v979
      %1066 = vst.msk [vmem:[#allocation4 + $0x228] sm:$0xff] %vm1042, %v981
      %1067 = vst.msk [vmem:[#allocation4 + $0x240] sm:$0xff] %vm1042, %v983
      %1068 = vst.msk [vmem:[#allocation4 + $0x258] sm:$0xff] %vm1042, %v985
      %1069 = vst.msk [vmem:[#allocation4 + $0x270] sm:$0xff] %vm1042, %v987
      %1070 = vst.msk [vmem:[#allocation4 + $0x288] sm:$0xff] %vm1042, %v989
      %1071 = vst.msk [vmem:[#allocation4 + $0x2a0] sm:$0xff] %vm1042, %v991
      %1072 = vst.msk [vmem:[#allocation4 + $0x2b8] sm:$0xff] %vm1042, %v993
      %1073 = vst.msk [vmem:[#allocation4 + $0x2d0] sm:$0xff] %vm1042, %v995
      %1074 = vst.msk [vmem:[#allocation4 + $0x2e8] sm:$0xff] %vm1042, %v997
      %1075 = vst.msk [vmem:[#allocation4 + $0x300] sm:$0xff] %vm1042, %v999
      %1076 = vst.msk [vmem:[#allocation4 + $0x318] sm:$0xff] %vm1042, %v1001
      %1077 = vst.msk [vmem:[#allocation4 + $0x330] sm:$0xff] %vm1042, %v1003
      %1078 = vst.msk [vmem:[#allocation4 + $0x348] sm:$0xff] %vm1042, %v1005
      %v1079 = vld [vmem:[#allocation2 + $0x13] sm:$0xff]
      %v1080 = vld [vmem:[#allocation2 + $0x1b] sm:$0xff]
      %v1081 = vld [vmem:[#allocation2 + $0x23] sm:$0xff]
      %v1082 = vld [vmem:[#allocation2 + $0x2b] sm:$0xff]
      %v1083 = vld [vmem:[#allocation2 + $0x33] sm:$0xff]
      %v1084 = vld [vmem:[#allocation2 + $0x3b] sm:$0xff]
      %v1085 = vld [vmem:[#allocation2 + $0x43] sm:$0xff]
      %v1086 = vld [vmem:[#allocation2 + $0x4b] sm:$0xff]
      %v1087 = vld [vmem:[#allocation2 + $0x53] sm:$0xff]
      %v1088 = vld [vmem:[#allocation2 + $0x5b] sm:$0xff]
      %v1089 = vld [vmem:[#allocation2 + $0x63] sm:$0xff]
      %v1090 = vld [vmem:[#allocation2 + $0x6b] sm:$0xff]
      %v1091 = vld [vmem:[#allocation2 + $0x73] sm:$0xff]
      %v1092 = vld [vmem:[#allocation2 + $0x7b] sm:$0xff]
      %v1093 = vld [vmem:[#allocation2 + $0x83] sm:$0xff]
      %v1094 = vld [vmem:[#allocation2 + $0x8b] sm:$0xff]
      %v1095 = vld [vmem:[#allocation2 + $0x93] sm:$0xff]
      %v1096 = vld [vmem:[#allocation2 + $0x9b] sm:$0xff]
      %v1097 = vld [vmem:[#allocation2 + $0xa3] sm:$0xff]
      %v1098 = vld [vmem:[#allocation2 + $0xab] sm:$0xff]
      %v1099 = vld [vmem:[#allocation2 + $0xb3] sm:$0xff]
      %v1100 = vld [vmem:[#allocation2 + $0xbb] sm:$0xff]
      %v1101 = vld [vmem:[#allocation2 + $0xc3] sm:$0xff]
      %v1102 = vld [vmem:[#allocation2 + $0xcb] sm:$0xff]
      %v1103 = vld [vmem:[#allocation2 + $0xd3] sm:$0xff]
      %v1104 = vld [vmem:[#allocation2 + $0xdb] sm:$0xff]
      %v1105 = vld [vmem:[#allocation2 + $0xe3] sm:$0xff]
      %v1106 = vld [vmem:[#allocation2 + $0xeb] sm:$0xff]
      %v1107 = vld [vmem:[#allocation2 + $0xf3] sm:$0xff]
      %v1108 = vld [vmem:[#allocation2 + $0xfb] sm:$0xff]
      %v1109 = vld [vmem:[#allocation2 + $0x103] sm:$0xff]
      %v1110 = vld [vmem:[#allocation2 + $0x10b] sm:$0xff]
      %v1111 = vld [vmem:[#allocation2 + $0x113] sm:$0xff]
      %v1112 = vld [vmem:[#allocation2 + $0x11b] sm:$0xff]
      %v1113 = vld [vmem:[#allocation2 + $0x123] sm:$0xff]
      %v1114 = vld [vmem:[#allocation2 + $0x12b] sm:$0xff]
      %1115 = vst.msk [vmem:[#allocation4 + $0x8] sm:$0xff] %vm252, %v1079
      %1116 = vst.msk [vmem:[#allocation4 + $0x20] sm:$0xff] %vm252, %v1080
      %1117 = vst.msk [vmem:[#allocation4 + $0x38] sm:$0xff] %vm252, %v1081
      %1118 = vst.msk [vmem:[#allocation4 + $0x50] sm:$0xff] %vm252, %v1082
      %1119 = vst.msk [vmem:[#allocation4 + $0x68] sm:$0xff] %vm252, %v1083
      %1120 = vst.msk [vmem:[#allocation4 + $0x80] sm:$0xff] %vm252, %v1084
      %1121 = vst.msk [vmem:[#allocation4 + $0x98] sm:$0xff] %vm252, %v1085
      %1122 = vst.msk [vmem:[#allocation4 + $0xb0] sm:$0xff] %vm252, %v1086
      %1123 = vst.msk [vmem:[#allocation4 + $0xc8] sm:$0xff] %vm252, %v1087
      %1124 = vst.msk [vmem:[#allocation4 + $0xe0] sm:$0xff] %vm252, %v1088
      %1125 = vst.msk [vmem:[#allocation4 + $0xf8] sm:$0xff] %vm252, %v1089
      %1126 = vst.msk [vmem:[#allocation4 + $0x110] sm:$0xff] %vm252, %v1090
      %1127 = vst.msk [vmem:[#allocation4 + $0x128] sm:$0xff] %vm252, %v1091
      %1128 = vst.msk [vmem:[#allocation4 + $0x140] sm:$0xff] %vm252, %v1092
      %1129 = vst.msk [vmem:[#allocation4 + $0x158] sm:$0xff] %vm252, %v1093
      %1130 = vst.msk [vmem:[#allocation4 + $0x170] sm:$0xff] %vm252, %v1094
      %1131 = vst.msk [vmem:[#allocation4 + $0x188] sm:$0xff] %vm252, %v1095
      %1132 = vst.msk [vmem:[#allocation4 + $0x1a0] sm:$0xff] %vm252, %v1096
      %1133 = vst.msk [vmem:[#allocation4 + $0x1b8] sm:$0xff] %vm252, %v1097
      %1134 = vst.msk [vmem:[#allocation4 + $0x1d0] sm:$0xff] %vm252, %v1098
      %1135 = vst.msk [vmem:[#allocation4 + $0x1e8] sm:$0xff] %vm252, %v1099
      %1136 = vst.msk [vmem:[#allocation4 + $0x200] sm:$0xff] %vm252, %v1100
      %1137 = vst.msk [vmem:[#allocation4 + $0x218] sm:$0xff] %vm252, %v1101
      %1138 = vst.msk [vmem:[#allocation4 + $0x230] sm:$0xff] %vm252, %v1102
      %1139 = vst.msk [vmem:[#allocation4 + $0x248] sm:$0xff] %vm252, %v1103
      %1140 = vst.msk [vmem:[#allocation4 + $0x260] sm:$0xff] %vm252, %v1104
      %1141 = vst.msk [vmem:[#allocation4 + $0x278] sm:$0xff] %vm252, %v1105
      %1142 = vst.msk [vmem:[#allocation4 + $0x290] sm:$0xff] %vm252, %v1106
      %1143 = vst.msk [vmem:[#allocation4 + $0x2a8] sm:$0xff] %vm252, %v1107
      %1144 = vst.msk [vmem:[#allocation4 + $0x2c0] sm:$0xff] %vm252, %v1108
      %1145 = vst.msk [vmem:[#allocation4 + $0x2d8] sm:$0xff] %vm252, %v1109
      %1146 = vst.msk [vmem:[#allocation4 + $0x2f0] sm:$0xff] %vm252, %v1110
      %1147 = vst.msk [vmem:[#allocation4 + $0x308] sm:$0xff] %vm252, %v1111
      %1148 = vst.msk [vmem:[#allocation4 + $0x320] sm:$0xff] %vm252, %v1112
      %1149 = vst.msk [vmem:[#allocation4 + $0x338] sm:$0xff] %vm252, %v1113
      %1150 = vst.msk [vmem:[#allocation4 + $0x350] sm:$0xff] %vm252, %v1114
      %v1151 = vld [vmem:[#allocation2 + $0x14] sm:$0xff]
      %v1152 = vld [vmem:[#allocation2 + $0x1c] sm:$0xff]
      %v1153 = vld [vmem:[#allocation2 + $0x24] sm:$0xff]
      %v1154 = vld [vmem:[#allocation2 + $0x2c] sm:$0xff]
      %v1155 = vld [vmem:[#allocation2 + $0x34] sm:$0xff]
      %v1156 = vld [vmem:[#allocation2 + $0x3c] sm:$0xff]
      %v1157 = vld [vmem:[#allocation2 + $0x44] sm:$0xff]
      %v1158 = vld [vmem:[#allocation2 + $0x4c] sm:$0xff]
      %v1159 = vld [vmem:[#allocation2 + $0x54] sm:$0xff]
      %v1160 = vld [vmem:[#allocation2 + $0x5c] sm:$0xff]
      %v1161 = vld [vmem:[#allocation2 + $0x64] sm:$0xff]
      %v1162 = vld [vmem:[#allocation2 + $0x6c] sm:$0xff]
      %v1163 = vld [vmem:[#allocation2 + $0x74] sm:$0xff]
      %v1164 = vld [vmem:[#allocation2 + $0x7c] sm:$0xff]
      %v1165 = vld [vmem:[#allocation2 + $0x84] sm:$0xff]
      %v1166 = vld [vmem:[#allocation2 + $0x8c] sm:$0xff]
      %v1167 = vld [vmem:[#allocation2 + $0x94] sm:$0xff]
      %v1168 = vld [vmem:[#allocation2 + $0x9c] sm:$0xff]
      %v1169 = vld [vmem:[#allocation2 + $0xa4] sm:$0xff]
      %v1170 = vld [vmem:[#allocation2 + $0xac] sm:$0xff]
      %v1171 = vld [vmem:[#allocation2 + $0xb4] sm:$0xff]
      %v1172 = vld [vmem:[#allocation2 + $0xbc] sm:$0xff]
      %v1173 = vld [vmem:[#allocation2 + $0xc4] sm:$0xff]
      %v1174 = vld [vmem:[#allocation2 + $0xcc] sm:$0xff]
      %v1175 = vld [vmem:[#allocation2 + $0xd4] sm:$0xff]
      %v1176 = vld [vmem:[#allocation2 + $0xdc] sm:$0xff]
      %v1177 = vld [vmem:[#allocation2 + $0xe4] sm:$0xff]
      %v1178 = vld [vmem:[#allocation2 + $0xec] sm:$0xff]
      %v1179 = vld [vmem:[#allocation2 + $0xf4] sm:$0xff]
      %v1180 = vld [vmem:[#allocation2 + $0xfc] sm:$0xff]
      %v1181 = vld [vmem:[#allocation2 + $0x104] sm:$0xff]
      %v1182 = vld [vmem:[#allocation2 + $0x10c] sm:$0xff]
      %v1183 = vld [vmem:[#allocation2 + $0x114] sm:$0xff]
      %v1184 = vld [vmem:[#allocation2 + $0x11c] sm:$0xff]
      %v1185 = vld [vmem:[#allocation2 + $0x124] sm:$0xff]
      %v1186 = vld [vmem:[#allocation2 + $0x12c] sm:$0xff]
      %1223 = vrot.lane.b32.xlu0 %v1151, 32
      %v1224 = vpop.permute.xlu0 %1223
      %1225 = vrot.lane.b32.xlu0 %v1152, 32
      %v1226 = vpop.permute.xlu0 %1225
      %1227 = vrot.lane.b32.xlu0 %v1153, 32
      %v1228 = vpop.permute.xlu0 %1227
      %1229 = vrot.lane.b32.xlu0 %v1154, 32
      %v1230 = vpop.permute.xlu0 %1229
      %1231 = vrot.lane.b32.xlu0 %v1155, 32
      %v1232 = vpop.permute.xlu0 %1231
      %1233 = vrot.lane.b32.xlu0 %v1156, 32
      %v1234 = vpop.permute.xlu0 %1233
      %1235 = vrot.lane.b32.xlu0 %v1157, 32
      %v1236 = vpop.permute.xlu0 %1235
      %1237 = vrot.lane.b32.xlu0 %v1158, 32
      %v1238 = vpop.permute.xlu0 %1237
      %1239 = vrot.lane.b32.xlu0 %v1159, 32
      %v1240 = vpop.permute.xlu0 %1239
      %1241 = vrot.lane.b32.xlu0 %v1160, 32
      %v1242 = vpop.permute.xlu0 %1241
      %1243 = vrot.lane.b32.xlu0 %v1161, 32
      %v1244 = vpop.permute.xlu0 %1243
      %1245 = vrot.lane.b32.xlu0 %v1162, 32
      %v1246 = vpop.permute.xlu0 %1245
      %1247 = vrot.lane.b32.xlu0 %v1163, 32
      %v1248 = vpop.permute.xlu0 %1247
      %1249 = vrot.lane.b32.xlu0 %v1164, 32
      %v1250 = vpop.permute.xlu0 %1249
      %1251 = vrot.lane.b32.xlu0 %v1165, 32
      %v1252 = vpop.permute.xlu0 %1251
      %1253 = vrot.lane.b32.xlu0 %v1166, 32
      %v1254 = vpop.permute.xlu0 %1253
      %1255 = vrot.lane.b32.xlu0 %v1167, 32
      %v1256 = vpop.permute.xlu0 %1255
      %1257 = vrot.lane.b32.xlu0 %v1168, 32
      %v1258 = vpop.permute.xlu0 %1257
      %1259 = vrot.lane.b32.xlu0 %v1169, 32
      %v1260 = vpop.permute.xlu0 %1259
      %1261 = vrot.lane.b32.xlu0 %v1170, 32
      %v1262 = vpop.permute.xlu0 %1261
      %1263 = vrot.lane.b32.xlu0 %v1171, 32
      %v1264 = vpop.permute.xlu0 %1263
      %1265 = vrot.lane.b32.xlu0 %v1172, 32
      %v1266 = vpop.permute.xlu0 %1265
      %1267 = vrot.lane.b32.xlu0 %v1173, 32
      %v1268 = vpop.permute.xlu0 %1267
      %1269 = vrot.lane.b32.xlu0 %v1174, 32
      %v1270 = vpop.permute.xlu0 %1269
      %1271 = vrot.lane.b32.xlu0 %v1175, 32
      %v1272 = vpop.permute.xlu0 %1271
      %1273 = vrot.lane.b32.xlu0 %v1176, 32
      %v1274 = vpop.permute.xlu0 %1273
      %1275 = vrot.lane.b32.xlu0 %v1177, 32
      %v1276 = vpop.permute.xlu0 %1275
      %1277 = vrot.lane.b32.xlu0 %v1178, 32
      %v1278 = vpop.permute.xlu0 %1277
      %1279 = vrot.lane.b32.xlu0 %v1179, 32
      %v1280 = vpop.permute.xlu0 %1279
      %1281 = vrot.lane.b32.xlu0 %v1180, 32
      %v1282 = vpop.permute.xlu0 %1281
      %1283 = vrot.lane.b32.xlu0 %v1181, 32
      %v1284 = vpop.permute.xlu0 %1283
      %1285 = vrot.lane.b32.xlu0 %v1182, 32
      %v1286 = vpop.permute.xlu0 %1285
      %1287 = vrot.lane.b32.xlu0 %v1183, 32
      %v1288 = vpop.permute.xlu0 %1287
      %1289 = vrot.lane.b32.xlu0 %v1184, 32
      %v1290 = vpop.permute.xlu0 %1289
      %1291 = vrot.lane.b32.xlu0 %v1185, 32
      %v1292 = vpop.permute.xlu0 %1291
      %1293 = vrot.lane.b32.xlu0 %v1186, 32
      %v1294 = vpop.permute.xlu0 %1293
      %1331 = vst.msk [vmem:[#allocation4 + $0x8] sm:$0xff] %vm608, %v1224
      %1332 = vst.msk [vmem:[#allocation4 + $0x20] sm:$0xff] %vm608, %v1226
      %1333 = vst.msk [vmem:[#allocation4 + $0x38] sm:$0xff] %vm608, %v1228
      %1334 = vst.msk [vmem:[#allocation4 + $0x50] sm:$0xff] %vm608, %v1230
      %1335 = vst.msk [vmem:[#allocation4 + $0x68] sm:$0xff] %vm608, %v1232
      %1336 = vst.msk [vmem:[#allocation4 + $0x80] sm:$0xff] %vm608, %v1234
      %1337 = vst.msk [vmem:[#allocation4 + $0x98] sm:$0xff] %vm608, %v1236
      %1338 = vst.msk [vmem:[#allocation4 + $0xb0] sm:$0xff] %vm608, %v1238
      %1339 = vst.msk [vmem:[#allocation4 + $0xc8] sm:$0xff] %vm608, %v1240
      %1340 = vst.msk [vmem:[#allocation4 + $0xe0] sm:$0xff] %vm608, %v1242
      %1341 = vst.msk [vmem:[#allocation4 + $0xf8] sm:$0xff] %vm608, %v1244
      %1342 = vst.msk [vmem:[#allocation4 + $0x110] sm:$0xff] %vm608, %v1246
      %1343 = vst.msk [vmem:[#allocation4 + $0x128] sm:$0xff] %vm608, %v1248
      %1344 = vst.msk [vmem:[#allocation4 + $0x140] sm:$0xff] %vm608, %v1250
      %1345 = vst.msk [vmem:[#allocation4 + $0x158] sm:$0xff] %vm608, %v1252
      %1346 = vst.msk [vmem:[#allocation4 + $0x170] sm:$0xff] %vm608, %v1254
      %1347 = vst.msk [vmem:[#allocation4 + $0x188] sm:$0xff] %vm608, %v1256
      %1348 = vst.msk [vmem:[#allocation4 + $0x1a0] sm:$0xff] %vm608, %v1258
      %1349 = vst.msk [vmem:[#allocation4 + $0x1b8] sm:$0xff] %vm608, %v1260
      %1350 = vst.msk [vmem:[#allocation4 + $0x1d0] sm:$0xff] %vm608, %v1262
      %1351 = vst.msk [vmem:[#allocation4 + $0x1e8] sm:$0xff] %vm608, %v1264
      %1352 = vst.msk [vmem:[#allocation4 + $0x200] sm:$0xff] %vm608, %v1266
      %1353 = vst.msk [vmem:[#allocation4 + $0x218] sm:$0xff] %vm608, %v1268
      %1354 = vst.msk [vmem:[#allocation4 + $0x230] sm:$0xff] %vm608, %v1270
      %1355 = vst.msk [vmem:[#allocation4 + $0x248] sm:$0xff] %vm608, %v1272
      %1356 = vst.msk [vmem:[#allocation4 + $0x260] sm:$0xff] %vm608, %v1274
      %1357 = vst.msk [vmem:[#allocation4 + $0x278] sm:$0xff] %vm608, %v1276
      %1358 = vst.msk [vmem:[#allocation4 + $0x290] sm:$0xff] %vm608, %v1278
      %1359 = vst.msk [vmem:[#allocation4 + $0x2a8] sm:$0xff] %vm608, %v1280
      %1360 = vst.msk [vmem:[#allocation4 + $0x2c0] sm:$0xff] %vm608, %v1282
      %1361 = vst.msk [vmem:[#allocation4 + $0x2d8] sm:$0xff] %vm608, %v1284
      %1362 = vst.msk [vmem:[#allocation4 + $0x2f0] sm:$0xff] %vm608, %v1286
      %1363 = vst.msk [vmem:[#allocation4 + $0x308] sm:$0xff] %vm608, %v1288
      %1364 = vst.msk [vmem:[#allocation4 + $0x320] sm:$0xff] %vm608, %v1290
      %1365 = vst.msk [vmem:[#allocation4 + $0x338] sm:$0xff] %vm608, %v1292
      %1366 = vst.msk [vmem:[#allocation4 + $0x350] sm:$0xff] %vm608, %v1294
      %v1367 = vld [vmem:[#allocation2 + $0x24] sm:$0xff]
      %v1368 = vld [vmem:[#allocation2 + $0x2c] sm:$0xff]
      %v1369 = vld [vmem:[#allocation2 + $0x34] sm:$0xff]
      %v1370 = vld [vmem:[#allocation2 + $0x3c] sm:$0xff]
      %v1371 = vld [vmem:[#allocation2 + $0x44] sm:$0xff]
      %v1372 = vld [vmem:[#allocation2 + $0x4c] sm:$0xff]
      %v1373 = vld [vmem:[#allocation2 + $0x54] sm:$0xff]
      %v1374 = vld [vmem:[#allocation2 + $0x5c] sm:$0xff]
      %v1375 = vld [vmem:[#allocation2 + $0x64] sm:$0xff]
      %v1376 = vld [vmem:[#allocation2 + $0x6c] sm:$0xff]
      %v1377 = vld [vmem:[#allocation2 + $0x74] sm:$0xff]
      %v1378 = vld [vmem:[#allocation2 + $0x7c] sm:$0xff]
      %v1379 = vld [vmem:[#allocation2 + $0x84] sm:$0xff]
      %v1380 = vld [vmem:[#allocation2 + $0x8c] sm:$0xff]
      %v1381 = vld [vmem:[#allocation2 + $0x94] sm:$0xff]
      %v1382 = vld [vmem:[#allocation2 + $0x9c] sm:$0xff]
      %v1383 = vld [vmem:[#allocation2 + $0xa4] sm:$0xff]
      %v1384 = vld [vmem:[#allocation2 + $0xac] sm:$0xff]
      %v1385 = vld [vmem:[#allocation2 + $0xb4] sm:$0xff]
      %v1386 = vld [vmem:[#allocation2 + $0xbc] sm:$0xff]
      %v1387 = vld [vmem:[#allocation2 + $0xc4] sm:$0xff]
      %v1388 = vld [vmem:[#allocation2 + $0xcc] sm:$0xff]
      %v1389 = vld [vmem:[#allocation2 + $0xd4] sm:$0xff]
      %v1390 = vld [vmem:[#allocation2 + $0xdc] sm:$0xff]
      %v1391 = vld [vmem:[#allocation2 + $0xe4] sm:$0xff]
      %v1392 = vld [vmem:[#allocation2 + $0xec] sm:$0xff]
      %v1393 = vld [vmem:[#allocation2 + $0xf4] sm:$0xff]
      %v1394 = vld [vmem:[#allocation2 + $0xfc] sm:$0xff]
      %v1395 = vld [vmem:[#allocation2 + $0x104] sm:$0xff]
      %v1396 = vld [vmem:[#allocation2 + $0x10c] sm:$0xff]
      %v1397 = vld [vmem:[#allocation2 + $0x114] sm:$0xff]
      %v1398 = vld [vmem:[#allocation2 + $0x11c] sm:$0xff]
      %v1399 = vld [vmem:[#allocation2 + $0x124] sm:$0xff]
      %v1400 = vld [vmem:[#allocation2 + $0x12c] sm:$0xff]
      %v1401 = vld [vmem:[#allocation2 + $0x134] sm:$0xff]
      %v1402 = vld [vmem:[#allocation2 + $0x13c] sm:$0xff]
      %1439 = vrot.lane.b32.xlu0 %v1367, 64
      %v1440 = vpop.permute.xlu0 %1439
      %1441 = vrot.lane.b32.xlu0 %v1368, 64
      %v1442 = vpop.permute.xlu0 %1441
      %1443 = vrot.lane.b32.xlu0 %v1369, 64
      %v1444 = vpop.permute.xlu0 %1443
      %1445 = vrot.lane.b32.xlu0 %v1370, 64
      %v1446 = vpop.permute.xlu0 %1445
      %1447 = vrot.lane.b32.xlu0 %v1371, 64
      %v1448 = vpop.permute.xlu0 %1447
      %1449 = vrot.lane.b32.xlu0 %v1372, 64
      %v1450 = vpop.permute.xlu0 %1449
      %1451 = vrot.lane.b32.xlu0 %v1373, 64
      %v1452 = vpop.permute.xlu0 %1451
      %1453 = vrot.lane.b32.xlu0 %v1374, 64
      %v1454 = vpop.permute.xlu0 %1453
      %1455 = vrot.lane.b32.xlu0 %v1375, 64
      %v1456 = vpop.permute.xlu0 %1455
      %1457 = vrot.lane.b32.xlu0 %v1376, 64
      %v1458 = vpop.permute.xlu0 %1457
      %1459 = vrot.lane.b32.xlu0 %v1377, 64
      %v1460 = vpop.permute.xlu0 %1459
      %1461 = vrot.lane.b32.xlu0 %v1378, 64
      %v1462 = vpop.permute.xlu0 %1461
      %1463 = vrot.lane.b32.xlu0 %v1379, 64
      %v1464 = vpop.permute.xlu0 %1463
      %1465 = vrot.lane.b32.xlu0 %v1380, 64
      %v1466 = vpop.permute.xlu0 %1465
      %1467 = vrot.lane.b32.xlu0 %v1381, 64
      %v1468 = vpop.permute.xlu0 %1467
      %1469 = vrot.lane.b32.xlu0 %v1382, 64
      %v1470 = vpop.permute.xlu0 %1469
      %1471 = vrot.lane.b32.xlu0 %v1383, 64
      %v1472 = vpop.permute.xlu0 %1471
      %1473 = vrot.lane.b32.xlu0 %v1384, 64
      %v1474 = vpop.permute.xlu0 %1473
      %1475 = vrot.lane.b32.xlu0 %v1385, 64
      %v1476 = vpop.permute.xlu0 %1475
      %1477 = vrot.lane.b32.xlu0 %v1386, 64
      %v1478 = vpop.permute.xlu0 %1477
      %1479 = vrot.lane.b32.xlu0 %v1387, 64
      %v1480 = vpop.permute.xlu0 %1479
      %1481 = vrot.lane.b32.xlu0 %v1388, 64
      %v1482 = vpop.permute.xlu0 %1481
      %1483 = vrot.lane.b32.xlu0 %v1389, 64
      %v1484 = vpop.permute.xlu0 %1483
      %1485 = vrot.lane.b32.xlu0 %v1390, 64
      %v1486 = vpop.permute.xlu0 %1485
      %1487 = vrot.lane.b32.xlu0 %v1391, 64
      %v1488 = vpop.permute.xlu0 %1487
      %1489 = vrot.lane.b32.xlu0 %v1392, 64
      %v1490 = vpop.permute.xlu0 %1489
      %1491 = vrot.lane.b32.xlu0 %v1393, 64
      %v1492 = vpop.permute.xlu0 %1491
      %1493 = vrot.lane.b32.xlu0 %v1394, 64
      %v1494 = vpop.permute.xlu0 %1493
      %1495 = vrot.lane.b32.xlu0 %v1395, 64
      %v1496 = vpop.permute.xlu0 %1495
      %1497 = vrot.lane.b32.xlu0 %v1396, 64
      %v1498 = vpop.permute.xlu0 %1497
      %1499 = vrot.lane.b32.xlu0 %v1397, 64
      %v1500 = vpop.permute.xlu0 %1499
      %1501 = vrot.lane.b32.xlu0 %v1398, 64
      %v1502 = vpop.permute.xlu0 %1501
      %1503 = vrot.lane.b32.xlu0 %v1399, 64
      %v1504 = vpop.permute.xlu0 %1503
      %1505 = vrot.lane.b32.xlu0 %v1400, 64
      %v1506 = vpop.permute.xlu0 %1505
      %1507 = vrot.lane.b32.xlu0 %v1401, 64
      %v1508 = vpop.permute.xlu0 %1507
      %1509 = vrot.lane.b32.xlu0 %v1402, 64
      %v1510 = vpop.permute.xlu0 %1509
      %1547 = vst.msk [vmem:[#allocation4 + $0x8] sm:$0xff] %vm825, %v1440
      %1548 = vst.msk [vmem:[#allocation4 + $0x20] sm:$0xff] %vm825, %v1442
      %1549 = vst.msk [vmem:[#allocation4 + $0x38] sm:$0xff] %vm825, %v1444
      %1550 = vst.msk [vmem:[#allocation4 + $0x50] sm:$0xff] %vm825, %v1446
      %1551 = vst.msk [vmem:[#allocation4 + $0x68] sm:$0xff] %vm825, %v1448
      %1552 = vst.msk [vmem:[#allocation4 + $0x80] sm:$0xff] %vm825, %v1450
      %1553 = vst.msk [vmem:[#allocation4 + $0x98] sm:$0xff] %vm825, %v1452
      %1554 = vst.msk [vmem:[#allocation4 + $0xb0] sm:$0xff] %vm825, %v1454
      %1555 = vst.msk [vmem:[#allocation4 + $0xc8] sm:$0xff] %vm825, %v1456
      %1556 = vst.msk [vmem:[#allocation4 + $0xe0] sm:$0xff] %vm825, %v1458
      %1557 = vst.msk [vmem:[#allocation4 + $0xf8] sm:$0xff] %vm825, %v1460
      %1558 = vst.msk [vmem:[#allocation4 + $0x110] sm:$0xff] %vm825, %v1462
      %1559 = vst.msk [vmem:[#allocation4 + $0x128] sm:$0xff] %vm825, %v1464
      %1560 = vst.msk [vmem:[#allocation4 + $0x140] sm:$0xff] %vm825, %v1466
      %1561 = vst.msk [vmem:[#allocation4 + $0x158] sm:$0xff] %vm825, %v1468
      %1562 = vst.msk [vmem:[#allocation4 + $0x170] sm:$0xff] %vm825, %v1470
      %1563 = vst.msk [vmem:[#allocation4 + $0x188] sm:$0xff] %vm825, %v1472
      %1564 = vst.msk [vmem:[#allocation4 + $0x1a0] sm:$0xff] %vm825, %v1474
      %1565 = vst.msk [vmem:[#allocation4 + $0x1b8] sm:$0xff] %vm825, %v1476
      %1566 = vst.msk [vmem:[#allocation4 + $0x1d0] sm:$0xff] %vm825, %v1478
      %1567 = vst.msk [vmem:[#allocation4 + $0x1e8] sm:$0xff] %vm825, %v1480
      %1568 = vst.msk [vmem:[#allocation4 + $0x200] sm:$0xff] %vm825, %v1482
      %1569 = vst.msk [vmem:[#allocation4 + $0x218] sm:$0xff] %vm825, %v1484
      %1570 = vst.msk [vmem:[#allocation4 + $0x230] sm:$0xff] %vm825, %v1486
      %1571 = vst.msk [vmem:[#allocation4 + $0x248] sm:$0xff] %vm825, %v1488
      %1572 = vst.msk [vmem:[#allocation4 + $0x260] sm:$0xff] %vm825, %v1490
      %1573 = vst.msk [vmem:[#allocation4 + $0x278] sm:$0xff] %vm825, %v1492
      %1574 = vst.msk [vmem:[#allocation4 + $0x290] sm:$0xff] %vm825, %v1494
      %1575 = vst.msk [vmem:[#allocation4 + $0x2a8] sm:$0xff] %vm825, %v1496
      %1576 = vst.msk [vmem:[#allocation4 + $0x2c0] sm:$0xff] %vm825, %v1498
      %1577 = vst.msk [vmem:[#allocation4 + $0x2d8] sm:$0xff] %vm825, %v1500
      %1578 = vst.msk [vmem:[#allocation4 + $0x2f0] sm:$0xff] %vm825, %v1502
      %1579 = vst.msk [vmem:[#allocation4 + $0x308] sm:$0xff] %vm825, %v1504
      %1580 = vst.msk [vmem:[#allocation4 + $0x320] sm:$0xff] %vm825, %v1506
      %1581 = vst.msk [vmem:[#allocation4 + $0x338] sm:$0xff] %vm825, %v1508
      %1582 = vst.msk [vmem:[#allocation4 + $0x350] sm:$0xff] %vm825, %v1510
      %v1583 = vld [vmem:[#allocation2 + $0x25] sm:$0xff]
      %v1584 = vld [vmem:[#allocation2 + $0x2d] sm:$0xff]
      %v1585 = vld [vmem:[#allocation2 + $0x35] sm:$0xff]
      %v1586 = vld [vmem:[#allocation2 + $0x3d] sm:$0xff]
      %v1587 = vld [vmem:[#allocation2 + $0x45] sm:$0xff]
      %v1588 = vld [vmem:[#allocation2 + $0x4d] sm:$0xff]
      %v1589 = vld [vmem:[#allocation2 + $0x55] sm:$0xff]
      %v1590 = vld [vmem:[#allocation2 + $0x5d] sm:$0xff]
      %v1591 = vld [vmem:[#allocation2 + $0x65] sm:$0xff]
      %v1592 = vld [vmem:[#allocation2 + $0x6d] sm:$0xff]
      %v1593 = vld [vmem:[#allocation2 + $0x75] sm:$0xff]
      %v1594 = vld [vmem:[#allocation2 + $0x7d] sm:$0xff]
      %v1595 = vld [vmem:[#allocation2 + $0x85] sm:$0xff]
      %v1596 = vld [vmem:[#allocation2 + $0x8d] sm:$0xff]
      %v1597 = vld [vmem:[#allocation2 + $0x95] sm:$0xff]
      %v1598 = vld [vmem:[#allocation2 + $0x9d] sm:$0xff]
      %v1599 = vld [vmem:[#allocation2 + $0xa5] sm:$0xff]
      %v1600 = vld [vmem:[#allocation2 + $0xad] sm:$0xff]
      %v1601 = vld [vmem:[#allocation2 + $0xb5] sm:$0xff]
      %v1602 = vld [vmem:[#allocation2 + $0xbd] sm:$0xff]
      %v1603 = vld [vmem:[#allocation2 + $0xc5] sm:$0xff]
      %v1604 = vld [vmem:[#allocation2 + $0xcd] sm:$0xff]
      %v1605 = vld [vmem:[#allocation2 + $0xd5] sm:$0xff]
      %v1606 = vld [vmem:[#allocation2 + $0xdd] sm:$0xff]
      %v1607 = vld [vmem:[#allocation2 + $0xe5] sm:$0xff]
      %v1608 = vld [vmem:[#allocation2 + $0xed] sm:$0xff]
      %v1609 = vld [vmem:[#allocation2 + $0xf5] sm:$0xff]
      %v1610 = vld [vmem:[#allocation2 + $0xfd] sm:$0xff]
      %v1611 = vld [vmem:[#allocation2 + $0x105] sm:$0xff]
      %v1612 = vld [vmem:[#allocation2 + $0x10d] sm:$0xff]
      %v1613 = vld [vmem:[#allocation2 + $0x115] sm:$0xff]
      %v1614 = vld [vmem:[#allocation2 + $0x11d] sm:$0xff]
      %v1615 = vld [vmem:[#allocation2 + $0x125] sm:$0xff]
      %v1616 = vld [vmem:[#allocation2 + $0x12d] sm:$0xff]
      %v1617 = vld [vmem:[#allocation2 + $0x135] sm:$0xff]
      %v1618 = vld [vmem:[#allocation2 + $0x13d] sm:$0xff]
      %1655 = vrot.lane.b32.xlu0 %v1583, 96
      %v1656 = vpop.permute.xlu0 %1655
      %1657 = vrot.lane.b32.xlu0 %v1584, 96
      %v1658 = vpop.permute.xlu0 %1657
      %1659 = vrot.lane.b32.xlu0 %v1585, 96
      %v1660 = vpop.permute.xlu0 %1659
      %1661 = vrot.lane.b32.xlu0 %v1586, 96
      %v1662 = vpop.permute.xlu0 %1661
      %1663 = vrot.lane.b32.xlu0 %v1587, 96
      %v1664 = vpop.permute.xlu0 %1663
      %1665 = vrot.lane.b32.xlu0 %v1588, 96
      %v1666 = vpop.permute.xlu0 %1665
      %1667 = vrot.lane.b32.xlu0 %v1589, 96
      %v1668 = vpop.permute.xlu0 %1667
      %1669 = vrot.lane.b32.xlu0 %v1590, 96
      %v1670 = vpop.permute.xlu0 %1669
      %1671 = vrot.lane.b32.xlu0 %v1591, 96
      %v1672 = vpop.permute.xlu0 %1671
      %1673 = vrot.lane.b32.xlu0 %v1592, 96
      %v1674 = vpop.permute.xlu0 %1673
      %1675 = vrot.lane.b32.xlu0 %v1593, 96
      %v1676 = vpop.permute.xlu0 %1675
      %1677 = vrot.lane.b32.xlu0 %v1594, 96
      %v1678 = vpop.permute.xlu0 %1677
      %1679 = vrot.lane.b32.xlu0 %v1595, 96
      %v1680 = vpop.permute.xlu0 %1679
      %1681 = vrot.lane.b32.xlu0 %v1596, 96
      %v1682 = vpop.permute.xlu0 %1681
      %1683 = vrot.lane.b32.xlu0 %v1597, 96
      %v1684 = vpop.permute.xlu0 %1683
      %1685 = vrot.lane.b32.xlu0 %v1598, 96
      %v1686 = vpop.permute.xlu0 %1685
      %1687 = vrot.lane.b32.xlu0 %v1599, 96
      %v1688 = vpop.permute.xlu0 %1687
      %1689 = vrot.lane.b32.xlu0 %v1600, 96
      %v1690 = vpop.permute.xlu0 %1689
      %1691 = vrot.lane.b32.xlu0 %v1601, 96
      %v1692 = vpop.permute.xlu0 %1691
      %1693 = vrot.lane.b32.xlu0 %v1602, 96
      %v1694 = vpop.permute.xlu0 %1693
      %1695 = vrot.lane.b32.xlu0 %v1603, 96
      %v1696 = vpop.permute.xlu0 %1695
      %1697 = vrot.lane.b32.xlu0 %v1604, 96
      %v1698 = vpop.permute.xlu0 %1697
      %1699 = vrot.lane.b32.xlu0 %v1605, 96
      %v1700 = vpop.permute.xlu0 %1699
      %1701 = vrot.lane.b32.xlu0 %v1606, 96
      %v1702 = vpop.permute.xlu0 %1701
      %1703 = vrot.lane.b32.xlu0 %v1607, 96
      %v1704 = vpop.permute.xlu0 %1703
      %1705 = vrot.lane.b32.xlu0 %v1608, 96
      %v1706 = vpop.permute.xlu0 %1705
      %1707 = vrot.lane.b32.xlu0 %v1609, 96
      %v1708 = vpop.permute.xlu0 %1707
      %1709 = vrot.lane.b32.xlu0 %v1610, 96
      %v1710 = vpop.permute.xlu0 %1709
      %1711 = vrot.lane.b32.xlu0 %v1611, 96
      %v1712 = vpop.permute.xlu0 %1711
      %1713 = vrot.lane.b32.xlu0 %v1612, 96
      %v1714 = vpop.permute.xlu0 %1713
      %1715 = vrot.lane.b32.xlu0 %v1613, 96
      %v1716 = vpop.permute.xlu0 %1715
      %1717 = vrot.lane.b32.xlu0 %v1614, 96
      %v1718 = vpop.permute.xlu0 %1717
      %1719 = vrot.lane.b32.xlu0 %v1615, 96
      %v1720 = vpop.permute.xlu0 %1719
      %1721 = vrot.lane.b32.xlu0 %v1616, 96
      %v1722 = vpop.permute.xlu0 %1721
      %1723 = vrot.lane.b32.xlu0 %v1617, 96
      %v1724 = vpop.permute.xlu0 %1723
      %1725 = vrot.lane.b32.xlu0 %v1618, 96
      %v1726 = vpop.permute.xlu0 %1725
      %1763 = vst.msk [vmem:[#allocation4 + $0x8] sm:$0xff] %vm1042, %v1656
      %1764 = vst.msk [vmem:[#allocation4 + $0x20] sm:$0xff] %vm1042, %v1658
      %1765 = vst.msk [vmem:[#allocation4 + $0x38] sm:$0xff] %vm1042, %v1660
      %1766 = vst.msk [vmem:[#allocation4 + $0x50] sm:$0xff] %vm1042, %v1662
      %1767 = vst.msk [vmem:[#allocation4 + $0x68] sm:$0xff] %vm1042, %v1664
      %1768 = vst.msk [vmem:[#allocation4 + $0x80] sm:$0xff] %vm1042, %v1666
      %1769 = vst.msk [vmem:[#allocation4 + $0x98] sm:$0xff] %vm1042, %v1668
      %1770 = vst.msk [vmem:[#allocation4 + $0xb0] sm:$0xff] %vm1042, %v1670
      %1771 = vst.msk [vmem:[#allocation4 + $0xc8] sm:$0xff] %vm1042, %v1672
      %1772 = vst.msk [vmem:[#allocation4 + $0xe0] sm:$0xff] %vm1042, %v1674
      %1773 = vst.msk [vmem:[#allocation4 + $0xf8] sm:$0xff] %vm1042, %v1676
      %1774 = vst.msk [vmem:[#allocation4 + $0x110] sm:$0xff] %vm1042, %v1678
      %1775 = vst.msk [vmem:[#allocation4 + $0x128] sm:$0xff] %vm1042, %v1680
      %1776 = vst.msk [vmem:[#allocation4 + $0x140] sm:$0xff] %vm1042, %v1682
      %1777 = vst.msk [vmem:[#allocation4 + $0x158] sm:$0xff] %vm1042, %v1684
      %1778 = vst.msk [vmem:[#allocation4 + $0x170] sm:$0xff] %vm1042, %v1686
      %1779 = vst.msk [vmem:[#allocation4 + $0x188] sm:$0xff] %vm1042, %v1688
      %1780 = vst.msk [vmem:[#allocation4 + $0x1a0] sm:$0xff] %vm1042, %v1690
      %1781 = vst.msk [vmem:[#allocation4 + $0x1b8] sm:$0xff] %vm1042, %v1692
      %1782 = vst.msk [vmem:[#allocation4 + $0x1d0] sm:$0xff] %vm1042, %v1694
      %1783 = vst.msk [vmem:[#allocation4 + $0x1e8] sm:$0xff] %vm1042, %v1696
      %1784 = vst.msk [vmem:[#allocation4 + $0x200] sm:$0xff] %vm1042, %v1698
      %1785 = vst.msk [vmem:[#allocation4 + $0x218] sm:$0xff] %vm1042, %v1700
      %1786 = vst.msk [vmem:[#allocation4 + $0x230] sm:$0xff] %vm1042, %v1702
      %1787 = vst.msk [vmem:[#allocation4 + $0x248] sm:$0xff] %vm1042, %v1704
      %1788 = vst.msk [vmem:[#allocation4 + $0x260] sm:$0xff] %vm1042, %v1706
      %1789 = vst.msk [vmem:[#allocation4 + $0x278] sm:$0xff] %vm1042, %v1708
      %1790 = vst.msk [vmem:[#allocation4 + $0x290] sm:$0xff] %vm1042, %v1710
      %1791 = vst.msk [vmem:[#allocation4 + $0x2a8] sm:$0xff] %vm1042, %v1712
      %1792 = vst.msk [vmem:[#allocation4 + $0x2c0] sm:$0xff] %vm1042, %v1714
      %1793 = vst.msk [vmem:[#allocation4 + $0x2d8] sm:$0xff] %vm1042, %v1716
      %1794 = vst.msk [vmem:[#allocation4 + $0x2f0] sm:$0xff] %vm1042, %v1718
      %1795 = vst.msk [vmem:[#allocation4 + $0x308] sm:$0xff] %vm1042, %v1720
      %1796 = vst.msk [vmem:[#allocation4 + $0x320] sm:$0xff] %vm1042, %v1722
      %1797 = vst.msk [vmem:[#allocation4 + $0x338] sm:$0xff] %vm1042, %v1724
      %1798 = vst.msk [vmem:[#allocation4 + $0x350] sm:$0xff] %vm1042, %v1726
      %v1799 = vld [vmem:[#allocation2 + $0x26] sm:$0xff]
      %v1800 = vld [vmem:[#allocation2 + $0x2e] sm:$0xff]
      %v1801 = vld [vmem:[#allocation2 + $0x36] sm:$0xff]
      %v1802 = vld [vmem:[#allocation2 + $0x3e] sm:$0xff]
      %v1803 = vld [vmem:[#allocation2 + $0x46] sm:$0xff]
      %v1804 = vld [vmem:[#allocation2 + $0x4e] sm:$0xff]
      %v1805 = vld [vmem:[#allocation2 + $0x56] sm:$0xff]
      %v1806 = vld [vmem:[#allocation2 + $0x5e] sm:$0xff]
      %v1807 = vld [vmem:[#allocation2 + $0x66] sm:$0xff]
      %v1808 = vld [vmem:[#allocation2 + $0x6e] sm:$0xff]
      %v1809 = vld [vmem:[#allocation2 + $0x76] sm:$0xff]
      %v1810 = vld [vmem:[#allocation2 + $0x7e] sm:$0xff]
      %v1811 = vld [vmem:[#allocation2 + $0x86] sm:$0xff]
      %v1812 = vld [vmem:[#allocation2 + $0x8e] sm:$0xff]
      %v1813 = vld [vmem:[#allocation2 + $0x96] sm:$0xff]
      %v1814 = vld [vmem:[#allocation2 + $0x9e] sm:$0xff]
      %v1815 = vld [vmem:[#allocation2 + $0xa6] sm:$0xff]
      %v1816 = vld [vmem:[#allocation2 + $0xae] sm:$0xff]
      %v1817 = vld [vmem:[#allocation2 + $0xb6] sm:$0xff]
      %v1818 = vld [vmem:[#allocation2 + $0xbe] sm:$0xff]
      %v1819 = vld [vmem:[#allocation2 + $0xc6] sm:$0xff]
      %v1820 = vld [vmem:[#allocation2 + $0xce] sm:$0xff]
      %v1821 = vld [vmem:[#allocation2 + $0xd6] sm:$0xff]
      %v1822 = vld [vmem:[#allocation2 + $0xde] sm:$0xff]
      %v1823 = vld [vmem:[#allocation2 + $0xe6] sm:$0xff]
      %v1824 = vld [vmem:[#allocation2 + $0xee] sm:$0xff]
      %v1825 = vld [vmem:[#allocation2 + $0xf6] sm:$0xff]
      %v1826 = vld [vmem:[#allocation2 + $0xfe] sm:$0xff]
      %v1827 = vld [vmem:[#allocation2 + $0x106] sm:$0xff]
      %v1828 = vld [vmem:[#allocation2 + $0x10e] sm:$0xff]
      %v1829 = vld [vmem:[#allocation2 + $0x116] sm:$0xff]
      %v1830 = vld [vmem:[#allocation2 + $0x11e] sm:$0xff]
      %v1831 = vld [vmem:[#allocation2 + $0x126] sm:$0xff]
      %v1832 = vld [vmem:[#allocation2 + $0x12e] sm:$0xff]
      %v1833 = vld [vmem:[#allocation2 + $0x136] sm:$0xff]
      %v1834 = vld [vmem:[#allocation2 + $0x13e] sm:$0xff]
      %1835 = vst.msk [vmem:[#allocation4 + $0x10] sm:$0xff] %vm252, %v1799
      %1836 = vst.msk [vmem:[#allocation4 + $0x28] sm:$0xff] %vm252, %v1800
      %1837 = vst.msk [vmem:[#allocation4 + $0x40] sm:$0xff] %vm252, %v1801
      %1838 = vst.msk [vmem:[#allocation4 + $0x58] sm:$0xff] %vm252, %v1802
      %1839 = vst.msk [vmem:[#allocation4 + $0x70] sm:$0xff] %vm252, %v1803
      %1840 = vst.msk [vmem:[#allocation4 + $0x88] sm:$0xff] %vm252, %v1804
      %1841 = vst.msk [vmem:[#allocation4 + $0xa0] sm:$0xff] %vm252, %v1805
      %1842 = vst.msk [vmem:[#allocation4 + $0xb8] sm:$0xff] %vm252, %v1806
      %1843 = vst.msk [vmem:[#allocation4 + $0xd0] sm:$0xff] %vm252, %v1807
      %1844 = vst.msk [vmem:[#allocation4 + $0xe8] sm:$0xff] %vm252, %v1808
      %1845 = vst.msk [vmem:[#allocation4 + $0x100] sm:$0xff] %vm252, %v1809
      %1846 = vst.msk [vmem:[#allocation4 + $0x118] sm:$0xff] %vm252, %v1810
      %1847 = vst.msk [vmem:[#allocation4 + $0x130] sm:$0xff] %vm252, %v1811
      %1848 = vst.msk [vmem:[#allocation4 + $0x148] sm:$0xff] %vm252, %v1812
      %1849 = vst.msk [vmem:[#allocation4 + $0x160] sm:$0xff] %vm252, %v1813
      %1850 = vst.msk [vmem:[#allocation4 + $0x178] sm:$0xff] %vm252, %v1814
      %1851 = vst.msk [vmem:[#allocation4 + $0x190] sm:$0xff] %vm252, %v1815
      %1852 = vst.msk [vmem:[#allocation4 + $0x1a8] sm:$0xff] %vm252, %v1816
      %1853 = vst.msk [vmem:[#allocation4 + $0x1c0] sm:$0xff] %vm252, %v1817
      %1854 = vst.msk [vmem:[#allocation4 + $0x1d8] sm:$0xff] %vm252, %v1818
      %1855 = vst.msk [vmem:[#allocation4 + $0x1f0] sm:$0xff] %vm252, %v1819
      %1856 = vst.msk [vmem:[#allocation4 + $0x208] sm:$0xff] %vm252, %v1820
      %1857 = vst.msk [vmem:[#allocation4 + $0x220] sm:$0xff] %vm252, %v1821
      %1858 = vst.msk [vmem:[#allocation4 + $0x238] sm:$0xff] %vm252, %v1822
      %1859 = vst.msk [vmem:[#allocation4 + $0x250] sm:$0xff] %vm252, %v1823
      %1860 = vst.msk [vmem:[#allocation4 + $0x268] sm:$0xff] %vm252, %v1824
      %1861 = vst.msk [vmem:[#allocation4 + $0x280] sm:$0xff] %vm252, %v1825
      %1862 = vst.msk [vmem:[#allocation4 + $0x298] sm:$0xff] %vm252, %v1826
      %1863 = vst.msk [vmem:[#allocation4 + $0x2b0] sm:$0xff] %vm252, %v1827
      %1864 = vst.msk [vmem:[#allocation4 + $0x2c8] sm:$0xff] %vm252, %v1828
      %1865 = vst.msk [vmem:[#allocation4 + $0x2e0] sm:$0xff] %vm252, %v1829
      %1866 = vst.msk [vmem:[#allocation4 + $0x2f8] sm:$0xff] %vm252, %v1830
      %1867 = vst.msk [vmem:[#allocation4 + $0x310] sm:$0xff] %vm252, %v1831
      %1868 = vst.msk [vmem:[#allocation4 + $0x328] sm:$0xff] %vm252, %v1832
      %1869 = vst.msk [vmem:[#allocation4 + $0x340] sm:$0xff] %vm252, %v1833
      %1870 = vst.msk [vmem:[#allocation4 + $0x358] sm:$0xff] %vm252, %v1834
      %v1871 = vld [vmem:[#allocation4] sm:$0xff]
      %v1872 = vld [vmem:[#allocation4 + $0x8] sm:$0xff]
      %v1873 = vld [vmem:[#allocation4 + $0x10] sm:$0xff]
      %v1874 = vld [vmem:[#allocation4 + $0x18] sm:$0xff]
      %v1875 = vld [vmem:[#allocation4 + $0x20] sm:$0xff]
      %v1876 = vld [vmem:[#allocation4 + $0x28] sm:$0xff]
      %v1877 = vld [vmem:[#allocation4 + $0x30] sm:$0xff]
      %v1878 = vld [vmem:[#allocation4 + $0x38] sm:$0xff]
      %v1879 = vld [vmem:[#allocation4 + $0x40] sm:$0xff]
      %v1880 = vld [vmem:[#allocation4 + $0x48] sm:$0xff]
      %v1881 = vld [vmem:[#allocation4 + $0x50] sm:$0xff]
      %v1882 = vld [vmem:[#allocation4 + $0x58] sm:$0xff]
      %v1883 = vld [vmem:[#allocation4 + $0x60] sm:$0xff]
      %v1884 = vld [vmem:[#allocation4 + $0x68] sm:$0xff]
      %v1885 = vld [vmem:[#allocation4 + $0x70] sm:$0xff]
      %v1886 = vld [vmem:[#allocation4 + $0x78] sm:$0xff]
      %v1887 = vld [vmem:[#allocation4 + $0x80] sm:$0xff]
      %v1888 = vld [vmem:[#allocation4 + $0x88] sm:$0xff]
      %v1889 = vld [vmem:[#allocation4 + $0x90] sm:$0xff]
      %v1890 = vld [vmem:[#allocation4 + $0x98] sm:$0xff]
      %v1891 = vld [vmem:[#allocation4 + $0xa0] sm:$0xff]
      %v1892 = vld [vmem:[#allocation4 + $0xa8] sm:$0xff]
      %v1893 = vld [vmem:[#allocation4 + $0xb0] sm:$0xff]
      %v1894 = vld [vmem:[#allocation4 + $0xb8] sm:$0xff]
      %v1895 = vld [vmem:[#allocation4 + $0xc0] sm:$0xff]
      %v1896 = vld [vmem:[#allocation4 + $0xc8] sm:$0xff]
      %v1897 = vld [vmem:[#allocation4 + $0xd0] sm:$0xff]
      %v1898 = vld [vmem:[#allocation4 + $0xd8] sm:$0xff]
      %v1899 = vld [vmem:[#allocation4 + $0xe0] sm:$0xff]
      %v1900 = vld [vmem:[#allocation4 + $0xe8] sm:$0xff]
      %v1901 = vld [vmem:[#allocation4 + $0xf0] sm:$0xff]
      %v1902 = vld [vmem:[#allocation4 + $0xf8] sm:$0xff]
      %v1903 = vld [vmem:[#allocation4 + $0x100] sm:$0xff]
      %v1904 = vld [vmem:[#allocation4 + $0x108] sm:$0xff]
      %v1905 = vld [vmem:[#allocation4 + $0x110] sm:$0xff]
      %v1906 = vld [vmem:[#allocation4 + $0x118] sm:$0xff]
      %v1907 = vld [vmem:[#allocation4 + $0x120] sm:$0xff]
      %v1908 = vld [vmem:[#allocation4 + $0x128] sm:$0xff]
      %v1909 = vld [vmem:[#allocation4 + $0x130] sm:$0xff]
      %v1910 = vld [vmem:[#allocation4 + $0x138] sm:$0xff]
      %v1911 = vld [vmem:[#allocation4 + $0x140] sm:$0xff]
      %v1912 = vld [vmem:[#allocation4 + $0x148] sm:$0xff]
      %v1913 = vld [vmem:[#allocation4 + $0x150] sm:$0xff]
      %v1914 = vld [vmem:[#allocation4 + $0x158] sm:$0xff]
      %v1915 = vld [vmem:[#allocation4 + $0x160] sm:$0xff]
      %v1916 = vld [vmem:[#allocation4 + $0x168] sm:$0xff]
      %v1917 = vld [vmem:[#allocation4 + $0x170] sm:$0xff]
      %v1918 = vld [vmem:[#allocation4 + $0x178] sm:$0xff]
      %v1919 = vld [vmem:[#allocation4 + $0x180] sm:$0xff]
      %v1920 = vld [vmem:[#allocation4 + $0x188] sm:$0xff]
      %v1921 = vld [vmem:[#allocation4 + $0x190] sm:$0xff]
      %v1922 = vld [vmem:[#allocation4 + $0x198] sm:$0xff]
      %v1923 = vld [vmem:[#allocation4 + $0x1a0] sm:$0xff]
      %v1924 = vld [vmem:[#allocation4 + $0x1a8] sm:$0xff]
      %v1925 = vld [vmem:[#allocation4 + $0x1b0] sm:$0xff]
      %v1926 = vld [vmem:[#allocation4 + $0x1b8] sm:$0xff]
      %v1927 = vld [vmem:[#allocation4 + $0x1c0] sm:$0xff]
      %v1928 = vld [vmem:[#allocation4 + $0x1c8] sm:$0xff]
      %v1929 = vld [vmem:[#allocation4 + $0x1d0] sm:$0xff]
      %v1930 = vld [vmem:[#allocation4 + $0x1d8] sm:$0xff]
      %v1931 = vld [vmem:[#allocation4 + $0x1e0] sm:$0xff]
      %v1932 = vld [vmem:[#allocation4 + $0x1e8] sm:$0xff]
      %v1933 = vld [vmem:[#allocation4 + $0x1f0] sm:$0xff]
      %v1934 = vld [vmem:[#allocation4 + $0x1f8] sm:$0xff]
      %v1935 = vld [vmem:[#allocation4 + $0x200] sm:$0xff]
      %v1936 = vld [vmem:[#allocation4 + $0x208] sm:$0xff]
      %v1937 = vld [vmem:[#allocation4 + $0x210] sm:$0xff]
      %v1938 = vld [vmem:[#allocation4 + $0x218] sm:$0xff]
      %v1939 = vld [vmem:[#allocation4 + $0x220] sm:$0xff]
      %v1940 = vld [vmem:[#allocation4 + $0x228] sm:$0xff]
      %v1941 = vld [vmem:[#allocation4 + $0x230] sm:$0xff]
      %v1942 = vld [vmem:[#allocation4 + $0x238] sm:$0xff]
      %v1943 = vld [vmem:[#allocation4 + $0x240] sm:$0xff]
      %v1944 = vld [vmem:[#allocation4 + $0x248] sm:$0xff]
      %v1945 = vld [vmem:[#allocation4 + $0x250] sm:$0xff]
      %v1946 = vld [vmem:[#allocation4 + $0x258] sm:$0xff]
      %v1947 = vld [vmem:[#allocation4 + $0x260] sm:$0xff]
      %v1948 = vld [vmem:[#allocation4 + $0x268] sm:$0xff]
      %v1949 = vld [vmem:[#allocation4 + $0x270] sm:$0xff]
      %v1950 = vld [vmem:[#allocation4 + $0x278] sm:$0xff]
      %v1951 = vld [vmem:[#allocation4 + $0x280] sm:$0xff]
      %v1952 = vld [vmem:[#allocation4 + $0x288] sm:$0xff]
      %v1953 = vld [vmem:[#allocation4 + $0x290] sm:$0xff]
      %v1954 = vld [vmem:[#allocation4 + $0x298] sm:$0xff]
      %v1955 = vld [vmem:[#allocation4 + $0x2a0] sm:$0xff]
      %v1956 = vld [vmem:[#allocation4 + $0x2a8] sm:$0xff]
      %v1957 = vld [vmem:[#allocation4 + $0x2b0] sm:$0xff]
      %v1958 = vld [vmem:[#allocation4 + $0x2b8] sm:$0xff]
      %v1959 = vld [vmem:[#allocation4 + $0x2c0] sm:$0xff]
      %v1960 = vld [vmem:[#allocation4 + $0x2c8] sm:$0xff]
      %v1961 = vld [vmem:[#allocation4 + $0x2d0] sm:$0xff]
      %v1962 = vld [vmem:[#allocation4 + $0x2d8] sm:$0xff]
      %v1963 = vld [vmem:[#allocation4 + $0x2e0] sm:$0xff]
      %v1964 = vld [vmem:[#allocation4 + $0x2e8] sm:$0xff]
      %v1965 = vld [vmem:[#allocation4 + $0x2f0] sm:$0xff]
      %v1966 = vld [vmem:[#allocation4 + $0x2f8] sm:$0xff]
      %v1967 = vld [vmem:[#allocation4 + $0x300] sm:$0xff]
      %v1968 = vld [vmem:[#allocation4 + $0x308] sm:$0xff]
      %v1969 = vld [vmem:[#allocation4 + $0x310] sm:$0xff]
      %v1970 = vld [vmem:[#allocation4 + $0x318] sm:$0xff]
      %v1971 = vld [vmem:[#allocation4 + $0x320] sm:$0xff]
      %v1972 = vld [vmem:[#allocation4 + $0x328] sm:$0xff]
      %v1973 = vld [vmem:[#allocation4 + $0x330] sm:$0xff]
      %v1974 = vld [vmem:[#allocation4 + $0x338] sm:$0xff]
      %v1975 = vld [vmem:[#allocation4 + $0x340] sm:$0xff]
      %v1976 = vld [vmem:[#allocation4 + $0x348] sm:$0xff]
      %v1977 = vld [vmem:[#allocation4 + $0x350] sm:$0xff]
      %v1978 = vld [vmem:[#allocation4 + $0x358] sm:$0xff]
      %v1979 = vld [vmem:[%s1] sm:$0xff]
      %v1980 = vld [vmem:[%s1 + $0x8] sm:$0xff]
      %v1981 = vld [vmem:[%s1 + $0x10] sm:$0xff]
      %v1982 = vld [vmem:[%s1 + $0x18] sm:$0xff]
      %v1983 = vld [vmem:[%s1 + $0x20] sm:$0xff]
      %v1984 = vld [vmem:[%s1 + $0x28] sm:$0xff]
      %v1985 = vld [vmem:[%s1 + $0x30] sm:$0xff]
      %v1986 = vld [vmem:[%s1 + $0x38] sm:$0xff]
      %v1987 = vld [vmem:[%s1 + $0x40] sm:$0xff]
      %v1988 = vld [vmem:[%s1 + $0x48] sm:$0xff]
      %v1989 = vld [vmem:[%s1 + $0x50] sm:$0xff]
      %v1990 = vld [vmem:[%s1 + $0x58] sm:$0xff]
      %v1991 = vld [vmem:[%s1 + $0x60] sm:$0xff]
      %v1992 = vld [vmem:[%s1 + $0x68] sm:$0xff]
      %v1993 = vld [vmem:[%s1 + $0x70] sm:$0xff]
      %v1994 = vld [vmem:[%s1 + $0x78] sm:$0xff]
      %v1995 = vld [vmem:[%s1 + $0x80] sm:$0xff]
      %v1996 = vld [vmem:[%s1 + $0x88] sm:$0xff]
      %v1997 = vld [vmem:[%s1 + $0x90] sm:$0xff]
      %v1998 = vld [vmem:[%s1 + $0x98] sm:$0xff]
      %v1999 = vld [vmem:[%s1 + $0xa0] sm:$0xff]
      %v2000 = vld [vmem:[%s1 + $0xa8] sm:$0xff]
      %v2001 = vld [vmem:[%s1 + $0xb0] sm:$0xff]
      %v2002 = vld [vmem:[%s1 + $0xb8] sm:$0xff]
      %v2003 = vld [vmem:[%s1 + $0xc0] sm:$0xff]
      %v2004 = vld [vmem:[%s1 + $0xc8] sm:$0xff]
      %v2005 = vld [vmem:[%s1 + $0xd0] sm:$0xff]
      %v2006 = vld [vmem:[%s1 + $0xd8] sm:$0xff]
      %v2007 = vld [vmem:[%s1 + $0xe0] sm:$0xff]
      %v2008 = vld [vmem:[%s1 + $0xe8] sm:$0xff]
      %v2009 = vld [vmem:[%s1 + $0xf0] sm:$0xff]
      %v2010 = vld [vmem:[%s1 + $0xf8] sm:$0xff]
      %v2011 = vld [vmem:[%s1 + $0x100] sm:$0xff]
      %v2012 = vld [vmem:[%s1 + $0x108] sm:$0xff]
      %v2013 = vld [vmem:[%s1 + $0x110] sm:$0xff]
      %v2014 = vld [vmem:[%s1 + $0x118] sm:$0xff]
      %v2015 = vld [vmem:[%s2] sm:$0x1]
      %v2017 = vlaneseq
      %v2018 = vshrl.u32 %v2017, 7
      %v2019 = vsub.s32 0, %v2018
      %v2020 = vrot.slane %v2015, %v2019
      %v2023 = vsel %vm252, %v1873, 0
      %v2026 = vsel %vm252, %v1876, 0
      %v2029 = vsel %vm252, %v1879, 0
      %v2032 = vsel %vm252, %v1882, 0
      %v2035 = vsel %vm252, %v1885, 0
      %v2038 = vsel %vm252, %v1888, 0
      %v2041 = vsel %vm252, %v1891, 0
      %v2044 = vsel %vm252, %v1894, 0
      %v2047 = vsel %vm252, %v1897, 0
      %v2050 = vsel %vm252, %v1900, 0
      %v2053 = vsel %vm252, %v1903, 0
      %v2056 = vsel %vm252, %v1906, 0
      %v2059 = vsel %vm252, %v1909, 0
      %v2062 = vsel %vm252, %v1912, 0
      %v2065 = vsel %vm252, %v1915, 0
      %v2068 = vsel %vm252, %v1918, 0
      %v2071 = vsel %vm252, %v1921, 0
      %v2074 = vsel %vm252, %v1924, 0
      %v2077 = vsel %vm252, %v1927, 0
      %v2080 = vsel %vm252, %v1930, 0
      %v2083 = vsel %vm252, %v1933, 0
      %v2086 = vsel %vm252, %v1936, 0
      %v2089 = vsel %vm252, %v1939, 0
      %v2092 = vsel %vm252, %v1942, 0
      %v2095 = vsel %vm252, %v1945, 0
      %v2098 = vsel %vm252, %v1948, 0
      %v2101 = vsel %vm252, %v1951, 0
      %v2104 = vsel %vm252, %v1954, 0
      %v2107 = vsel %vm252, %v1957, 0
      %v2110 = vsel %vm252, %v1960, 0
      %v2113 = vsel %vm252, %v1963, 0
      %v2116 = vsel %vm252, %v1966, 0
      %v2119 = vsel %vm252, %v1969, 0
      %v2122 = vsel %vm252, %v1972, 0
      %v2125 = vsel %vm252, %v1975, 0
      %v2128 = vsel %vm252, %v1978, 0
      %2130 = vmatprep.subr.mxu0 0.0
      %2131 = vmatpush1.msra.mxu0 %v1979
      %2132 = vmatprep.subr.mxu0 0.0
      %2133 = vmatpush1.msra.mxu0 %v1980
      %2134 = vmatprep.subr.mxu0 0.0
      %2135 = vmatpush1.msra.mxu0 %v1981
      %2136 = vmatprep.subr.mxu0 0.0
      %2137 = vmatpush1.msra.mxu0 %v1982
      %2138 = vmatprep.subr.mxu0 0.0
      %2139 = vmatpush1.msra.mxu0 %v1983
      %2140 = vmatprep.subr.mxu0 0.0
      %2141 = vmatpush1.msra.mxu0 %v1984
      %2142 = vmatprep.subr.mxu0 0.0
      %2143 = vmatpush1.msra.mxu0 %v1985
      %2144 = vmatprep.subr.mxu0 0.0
      %2145 = vmatpush1.msra.mxu0 %v1986
      %2146 = vmatprep.subr.mxu0 0.0
      %2147 = vmatpush1.msra.mxu0 %v1987
      %2148 = vmatprep.subr.mxu0 0.0
      %2149 = vmatpush1.msra.mxu0 %v1988
      %2150 = vmatprep.subr.mxu0 0.0
      %2151 = vmatpush1.msra.mxu0 %v1989
      %2152 = vmatprep.subr.mxu0 0.0
      %2153 = vmatpush1.msra.mxu0 %v1990
      %2154 = vmatprep.subr.mxu0 0.0
      %2155 = vmatpush1.msra.mxu0 %v1991
      %2156 = vmatprep.subr.mxu0 0.0
      %2157 = vmatpush1.msra.mxu0 %v1992
      %2158 = vmatprep.subr.mxu0 0.0
      %2159 = vmatpush1.msra.mxu0 %v1993
      %2160 = vmatprep.subr.mxu0 0.0
      %2161 = vmatpush1.msra.mxu0 %v1994
      %2162 = vmatprep.subr.mxu0 0.0
      %2163 = vmatpush1.msra.mxu0 %v1995
      %2164 = vmatprep.subr.mxu0 0.0
      %2165 = vmatpush1.msra.mxu0 %v1996
      %2166 = vmatprep.subr.mxu0 0.0
      %2167 = vmatpush1.msra.mxu0 %v1997
      %2168 = vmatprep.subr.mxu0 0.0
      %2169 = vmatpush1.msra.mxu0 %v1998
      %2170 = vmatprep.subr.mxu0 0.0
      %2171 = vmatpush1.msra.mxu0 %v1999
      %2172 = vmatprep.subr.mxu0 0.0
      %2173 = vmatpush1.msra.mxu0 %v2000
      %2174 = vmatprep.subr.mxu0 0.0
      %2175 = vmatpush1.msra.mxu0 %v2001
      %2176 = vmatprep.subr.mxu0 0.0
      %2177 = vmatpush1.msra.mxu0 %v2002
      %2178 = vmatprep.subr.mxu0 0.0
      %2179 = vmatpush1.msra.mxu0 %v2003
      %2180 = vmatprep.subr.mxu0 0.0
      %2181 = vmatpush1.msra.mxu0 %v2004
      %2182 = vmatprep.subr.mxu0 0.0
      %2183 = vmatpush1.msra.mxu0 %v2005
      %2184 = vmatprep.subr.mxu0 0.0
      %2185 = vmatpush1.msra.mxu0 %v2006
      %2186 = vmatprep.subr.mxu0 0.0
      %2187 = vmatpush1.msra.mxu0 %v2007
      %2188 = vmatprep.subr.mxu0 0.0
      %2189 = vmatpush1.msra.mxu0 %v2008
      %2190 = vmatprep.subr.mxu0 0.0
      %2191 = vmatpush1.msra.mxu0 %v2009
      %2192 = vmatprep.subr.mxu0 0.0
      %2193 = vmatpush1.msra.mxu0 %v2010
      %2194 = vmatprep.mubr.f32.mxu0 %v1872
      %2195 = vmatmul.mubr.f32.gmra.mrb[0].mxu0 %v1871
      %v2196 = vpop.f32.mrb[0].mxu0
      %v2197 = vadd.f32 %v2020, %v2196
      %v2198 = vpop.f32.mrb[0].mxu0
      %2199 = vmatprep.mubr.f32.mxu0 %v1875
      %2200 = vmatmul.mubr.f32.gmra.mrb[0].mxu0 %v1874
      %v2201 = vpop.f32.mrb[0].mxu0
      %v2202 = vadd.f32 %v2020, %v2201
      %v2203 = vpop.f32.mrb[0].mxu0
      %2204 = vmatprep.mubr.f32.mxu0 %v1878
      %2205 = vmatmul.mubr.f32.gmra.mrb[0].mxu0 %v1877
      %v2206 = vpop.f32.mrb[0].mxu0
      %v2207 = vadd.f32 %v2020, %v2206
      %v2208 = vpop.f32.mrb[0].mxu0
      %2209 = vmatprep.mubr.f32.mxu0 %v1881
      %2210 = vmatmul.mubr.f32.gmra.mrb[0].mxu0 %v1880
      %v2211 = vpop.f32.mrb[0].mxu0
      %v2212 = vadd.f32 %v2020, %v2211
      %v2213 = vpop.f32.mrb[0].mxu0
      %2214 = vmatprep.mubr.f32.mxu0 %v1884
      %2215 = vmatmul.mubr.f32.gmra.mrb[0].mxu0 %v1883
      %v2216 = vpop.f32.mrb[0].mxu0
      %v2217 = vadd.f32 %v2020, %v2216
      %v2218 = vpop.f32.mrb[0].mxu0
      %2219 = vmatprep.mubr.f32.mxu0 %v1887
      %2220 = vmatmul.mubr.f32.gmra.mrb[0].mxu0 %v1886
      %v2221 = vpop.f32.mrb[0].mxu0
      %v2222 = vadd.f32 %v2020, %v2221
      %v2223 = vpop.f32.mrb[0].mxu0
      %2224 = vmatprep.mubr.f32.mxu0 %v1890
      %2225 = vmatmul.mubr.f32.gmra.mrb[0].mxu0 %v1889
      %v2226 = vpop.f32.mrb[0].mxu0
      %v2227 = vadd.f32 %v2020, %v2226
      %v2228 = vpop.f32.mrb[0].mxu0
      %2229 = vmatprep.mubr.f32.mxu0 %v1893
      %2230 = vmatmul.mubr.f32.gmra.mrb[0].mxu0 %v1892
      %v2231 = vpop.f32.mrb[0].mxu0
      %v2232 = vadd.f32 %v2020, %v2231
      %v2233 = vpop.f32.mrb[0].mxu0
      %2234 = vmatprep.mubr.f32.mxu0 %v1896
      %2235 = vmatmul.mubr.f32.gmra.mrb[0].mxu0 %v1895
      %v2236 = vpop.f32.mrb[0].mxu0
      %v2237 = vadd.f32 %v2020, %v2236
      %v2238 = vpop.f32.mrb[0].mxu0
      %2239 = vmatprep.mubr.f32.mxu0 %v1899
      %2240 = vmatmul.mubr.f32.gmra.mrb[0].mxu0 %v1898
      %v2241 = vpop.f32.mrb[0].mxu0
      %v2242 = vadd.f32 %v2020, %v2241
      %v2243 = vpop.f32.mrb[0].mxu0
      %2244 = vmatprep.mubr.f32.mxu0 %v1902
      %2245 = vmatmul.mubr.f32.gmra.mrb[0].mxu0 %v1901
      %v2246 = vpop.f32.mrb[0].mxu0
      %v2247 = vadd.f32 %v2020, %v2246
      %v2248 = vpop.f32.mrb[0].mxu0
      %2249 = vmatprep.mubr.f32.mxu0 %v1905
      %2250 = vmatmul.mubr.f32.gmra.mrb[0].mxu0 %v1904
      %v2251 = vpop.f32.mrb[0].mxu0
      %v2252 = vadd.f32 %v2020, %v2251
      %v2253 = vpop.f32.mrb[0].mxu0
      %2254 = vmatprep.mubr.f32.mxu0 %v1908
      %2255 = vmatmul.mubr.f32.gmra.mrb[0].mxu0 %v1907
      %v2256 = vpop.f32.mrb[0].mxu0
      %v2257 = vadd.f32 %v2020, %v2256
      %v2258 = vpop.f32.mrb[0].mxu0
      %2259 = vmatprep.mubr.f32.mxu0 %v1911
      %2260 = vmatmul.mubr.f32.gmra.mrb[0].mxu0 %v1910
      %v2261 = vpop.f32.mrb[0].mxu0
      %v2262 = vadd.f32 %v2020, %v2261
      %v2263 = vpop.f32.mrb[0].mxu0
      %2264 = vmatprep.mubr.f32.mxu0 %v1914
      %2265 = vmatmul.mubr.f32.gmra.mrb[0].mxu0 %v1913
      %v2266 = vpop.f32.mrb[0].mxu0
      %v2267 = vadd.f32 %v2020, %v2266
      %v2268 = vpop.f32.mrb[0].mxu0
      %2269 = vmatprep.mubr.f32.mxu0 %v1917
      %2270 = vmatmul.mubr.f32.gmra.mrb[0].mxu0 %v1916
      %v2271 = vpop.f32.mrb[0].mxu0
      %v2272 = vadd.f32 %v2020, %v2271
      %v2273 = vpop.f32.mrb[0].mxu0
      %2274 = vmatprep.mubr.f32.mxu0 %v1920
      %2275 = vmatmul.mubr.f32.gmra.mrb[0].mxu0 %v1919
      %v2276 = vpop.f32.mrb[0].mxu0
      %v2277 = vadd.f32 %v2020, %v2276
      %v2278 = vpop.f32.mrb[0].mxu0
      %2279 = vmatprep.mubr.f32.mxu0 %v1923
      %2280 = vmatmul.mubr.f32.gmra.mrb[0].mxu0 %v1922
      %v2281 = vpop.f32.mrb[0].mxu0
      %v2282 = vadd.f32 %v2020, %v2281
      %v2283 = vpop.f32.mrb[0].mxu0
      %2284 = vmatprep.mubr.f32.mxu0 %v1926
      %2285 = vmatmul.mubr.f32.gmra.mrb[0].mxu0 %v1925
      %v2286 = vpop.f32.mrb[0].mxu0
      %v2287 = vadd.f32 %v2020, %v2286
      %v2288 = vpop.f32.mrb[0].mxu0
      %2289 = vmatprep.mubr.f32.mxu0 %v1929
      %2290 = vmatmul.mubr.f32.gmra.mrb[0].mxu0 %v1928
      %v2291 = vpop.f32.mrb[0].mxu0
      %v2292 = vadd.f32 %v2020, %v2291
      %v2293 = vpop.f32.mrb[0].mxu0
      %2294 = vmatprep.mubr.f32.mxu0 %v1932
      %2295 = vmatmul.mubr.f32.gmra.mrb[0].mxu0 %v1931
      %v2296 = vpop.f32.mrb[0].mxu0
      %v2297 = vadd.f32 %v2020, %v2296
      %v2298 = vpop.f32.mrb[0].mxu0
      %2299 = vmatprep.mubr.f32.mxu0 %v1935
      %2300 = vmatmul.mubr.f32.gmra.mrb[0].mxu0 %v1934
      %v2301 = vpop.f32.mrb[0].mxu0
      %v2302 = vadd.f32 %v2020, %v2301
      %v2303 = vpop.f32.mrb[0].mxu0
      %2304 = vmatprep.mubr.f32.mxu0 %v1938
      %2305 = vmatmul.mubr.f32.gmra.mrb[0].mxu0 %v1937
      %v2306 = vpop.f32.mrb[0].mxu0
      %v2307 = vadd.f32 %v2020, %v2306
      %v2308 = vpop.f32.mrb[0].mxu0
      %2309 = vmatprep.mubr.f32.mxu0 %v1941
      %2310 = vmatmul.mubr.f32.gmra.mrb[0].mxu0 %v1940
      %v2311 = vpop.f32.mrb[0].mxu0
      %v2312 = vadd.f32 %v2020, %v2311
      %v2313 = vpop.f32.mrb[0].mxu0
      %2314 = vmatprep.mubr.f32.mxu0 %v1944
      %2315 = vmatmul.mubr.f32.gmra.mrb[0].mxu0 %v1943
      %v2316 = vpop.f32.mrb[0].mxu0
      %v2317 = vadd.f32 %v2020, %v2316
      %v2318 = vpop.f32.mrb[0].mxu0
      %2319 = vmatprep.mubr.f32.mxu0 %v1947
      %2320 = vmatmul.mubr.f32.gmra.mrb[0].mxu0 %v1946
      %v2321 = vpop.f32.mrb[0].mxu0
      %v2322 = vadd.f32 %v2020, %v2321
      %v2323 = vpop.f32.mrb[0].mxu0
      %2324 = vmatprep.mubr.f32.mxu0 %v1950
      %2325 = vmatmul.mubr.f32.gmra.mrb[0].mxu0 %v1949
      %v2326 = vpop.f32.mrb[0].mxu0
      %v2327 = vadd.f32 %v2020, %v2326
      %v2328 = vpop.f32.mrb[0].mxu0
      %2329 = vmatprep.mubr.f32.mxu0 %v1953
      %2330 = vmatmul.mubr.f32.gmra.mrb[0].mxu0 %v1952
      %v2331 = vpop.f32.mrb[0].mxu0
      %v2332 = vadd.f32 %v2020, %v2331
      %v2333 = vpop.f32.mrb[0].mxu0
      %2334 = vmatprep.mubr.f32.mxu0 %v1956
      %2335 = vmatmul.mubr.f32.gmra.mrb[0].mxu0 %v1955
      %v2336 = vpop.f32.mrb[0].mxu0
      %v2337 = vadd.f32 %v2020, %v2336
      %v2338 = vpop.f32.mrb[0].mxu0
      %2339 = vmatprep.mubr.f32.mxu0 %v1959
      %2340 = vmatmul.mubr.f32.gmra.mrb[0].mxu0 %v1958
      %v2341 = vpop.f32.mrb[0].mxu0
      %v2342 = vadd.f32 %v2020, %v2341
      %v2343 = vpop.f32.mrb[0].mxu0
      %2344 = vmatprep.mubr.f32.mxu0 %v1962
      %2345 = vmatmul.mubr.f32.gmra.mrb[0].mxu0 %v1961
      %v2346 = vpop.f32.mrb[0].mxu0
      %v2347 = vadd.f32 %v2020, %v2346
      %v2348 = vpop.f32.mrb[0].mxu0
      %2349 = vmatprep.mubr.f32.mxu0 %v1965
      %2350 = vmatmul.mubr.f32.gmra.mrb[0].mxu0 %v1964
      %v2351 = vpop.f32.mrb[0].mxu0
      %v2352 = vadd.f32 %v2020, %v2351
      %v2353 = vpop.f32.mrb[0].mxu0
      %2354 = vmatprep.mubr.f32.mxu0 %v1968
      %2355 = vmatmul.mubr.f32.gmra.mrb[0].mxu0 %v1967
      %v2356 = vpop.f32.mrb[0].mxu0
      %v2357 = vadd.f32 %v2020, %v2356
      %v2358 = vpop.f32.mrb[0].mxu0
      %2359 = vmatprep.mubr.f32.mxu0 %v1971
      %2360 = vmatmul.mubr.f32.gmra.mrb[0].mxu0 %v1970
      %v2361 = vpop.f32.mrb[0].mxu0
      %v2362 = vadd.f32 %v2020, %v2361
      %v2363 = vpop.f32.mrb[0].mxu0
      %2364 = vmatprep.mubr.f32.mxu0 %v1974
      %2365 = vmatmul.mubr.f32.gmra.mrb[0].mxu0 %v1973
      %v2366 = vpop.f32.mrb[0].mxu0
      %v2367 = vadd.f32 %v2020, %v2366
      %v2368 = vpop.f32.mrb[0].mxu0
      %2369 = vmatprep.mubr.f32.mxu0 %v1977
      %2370 = vmatmul.mubr.f32.gmra.mrb[0].mxu0 %v1976
      %v2371 = vpop.f32.mrb[0].mxu0
      %v2372 = vadd.f32 %v2020, %v2371
      %v2373 = vpop.f32.mrb[0].mxu0
      %2374 = vdwg.mxu0
      %2375 = vmatprep.subr.mxu0 0.0
      %2376 = vmatpush1.msra.mxu0 %v2011
      %2377 = vmatprep.subr.mxu0 0.0
      %2378 = vmatpush1.msra.mxu0 %v2012
      %2379 = vmatprep.subr.mxu0 0.0
      %2380 = vmatpush1.msra.mxu0 %v2013
      %2381 = vmatprep.subr.mxu0 0.0
      %2382 = vmatpush1.msra.mxu0 %v2014
      %2383 = vmatprep.subr.mxu0 0.0
      %2384 = vmatpush1.msra.mxu0 0.0
      %2385 = vmatprep.subr.mxu0 0.0
      %2386 = vmatpush1.msra.mxu0 0.0
      %2387 = vmatprep.subr.mxu0 0.0
      %2388 = vmatpush1.msra.mxu0 0.0
      %2389 = vmatprep.subr.mxu0 0.0
      %2390 = vmatpush1.msra.mxu0 0.0
      %2391 = vmatprep.subr.mxu0 0.0
      %2392 = vmatpush1.msra.mxu0 0.0
      %2393 = vmatprep.subr.mxu0 0.0
      %2394 = vmatpush1.msra.mxu0 0.0
      %2395 = vmatprep.subr.mxu0 0.0
      %2396 = vmatpush1.msra.mxu0 0.0
      %2397 = vmatprep.subr.mxu0 0.0
      %2398 = vmatpush1.msra.mxu0 0.0
      %2399 = vmatprep.subr.mxu0 0.0
      %2400 = vmatpush1.msra.mxu0 0.0
      %2401 = vmatprep.subr.mxu0 0.0
      %2402 = vmatpush1.msra.mxu0 0.0
      %2403 = vmatprep.subr.mxu0 0.0
      %2404 = vmatpush1.msra.mxu0 0.0
      %2405 = vmatprep.subr.mxu0 0.0
      %2406 = vmatpush1.msra.mxu0 0.0
      %2407 = vmatprep.subr.mxu0 0.0
      %2408 = vmatpush1.msra.mxu0 0.0
      %2409 = vmatprep.subr.mxu0 0.0
      %2410 = vmatpush1.msra.mxu0 0.0
      %2411 = vmatprep.subr.mxu0 0.0
      %2412 = vmatpush1.msra.mxu0 0.0
      %2413 = vmatprep.subr.mxu0 0.0
      %2414 = vmatpush1.msra.mxu0 0.0
      %2415 = vmatprep.subr.mxu0 0.0
      %2416 = vmatpush1.msra.mxu0 0.0
      %2417 = vmatprep.subr.mxu0 0.0
      %2418 = vmatpush1.msra.mxu0 0.0
      %2419 = vmatprep.subr.mxu0 0.0
      %2420 = vmatpush1.msra.mxu0 0.0
      %2421 = vmatprep.subr.mxu0 0.0
      %2422 = vmatpush1.msra.mxu0 0.0
      %2423 = vmatprep.subr.mxu0 0.0
      %2424 = vmatpush1.msra.mxu0 0.0
      %2425 = vmatprep.subr.mxu0 0.0
      %2426 = vmatpush1.msra.mxu0 0.0
      %2427 = vmatprep.subr.mxu0 0.0
      %2428 = vmatpush1.msra.mxu0 0.0
      %2429 = vmatprep.subr.mxu0 0.0
      %2430 = vmatpush1.msra.mxu0 0.0
      %2431 = vmatprep.subr.mxu0 0.0
      %2432 = vmatpush1.msra.mxu0 0.0
      %2433 = vmatprep.subr.mxu0 0.0
      %2434 = vmatpush1.msra.mxu0 0.0
      %2435 = vmatprep.subr.mxu0 0.0
      %2436 = vmatpush1.msra.mxu0 0.0
      %2437 = vmatprep.subr.mxu0 0.0
      %2438 = vmatpush1.msra.mxu0 0.0
      %2439 = vmatprep.mubr.f32.mxu0 0.0
      %2440 = vmatmul.mubr.f32.gmra.mrb[0].mxu0 %v2023
      %v2441 = vpop.f32.mrb[0].mxu0
      %v2442 = vadd.f32 %v2197, %v2441
      %v2443 = vpop.f32.mrb[0].mxu0
      %2444 = vmatprep.mubr.f32.mxu0 0.0
      %2445 = vmatmul.mubr.f32.gmra.mrb[0].mxu0 %v2026
      %v2446 = vpop.f32.mrb[0].mxu0
      %v2447 = vadd.f32 %v2202, %v2446
      %v2448 = vpop.f32.mrb[0].mxu0
      %2449 = vmatprep.mubr.f32.mxu0 0.0
      %2450 = vmatmul.mubr.f32.gmra.mrb[0].mxu0 %v2029
      %v2451 = vpop.f32.mrb[0].mxu0
      %v2452 = vadd.f32 %v2207, %v2451
      %v2453 = vpop.f32.mrb[0].mxu0
      %2454 = vmatprep.mubr.f32.mxu0 0.0
      %2455 = vmatmul.mubr.f32.gmra.mrb[0].mxu0 %v2032
      %v2456 = vpop.f32.mrb[0].mxu0
      %v2457 = vadd.f32 %v2212, %v2456
      %v2458 = vpop.f32.mrb[0].mxu0
      %2459 = vmatprep.mubr.f32.mxu0 0.0
      %2460 = vmatmul.mubr.f32.gmra.mrb[0].mxu0 %v2035
      %v2461 = vpop.f32.mrb[0].mxu0
      %v2462 = vadd.f32 %v2217, %v2461
      %v2463 = vpop.f32.mrb[0].mxu0
      %2464 = vmatprep.mubr.f32.mxu0 0.0
      %2465 = vmatmul.mubr.f32.gmra.mrb[0].mxu0 %v2038
      %v2466 = vpop.f32.mrb[0].mxu0
      %v2467 = vadd.f32 %v2222, %v2466
      %v2468 = vpop.f32.mrb[0].mxu0
      %2469 = vmatprep.mubr.f32.mxu0 0.0
      %2470 = vmatmul.mubr.f32.gmra.mrb[0].mxu0 %v2041
      %v2471 = vpop.f32.mrb[0].mxu0
      %v2472 = vadd.f32 %v2227, %v2471
      %v2473 = vpop.f32.mrb[0].mxu0
      %2474 = vmatprep.mubr.f32.mxu0 0.0
      %2475 = vmatmul.mubr.f32.gmra.mrb[0].mxu0 %v2044
      %v2476 = vpop.f32.mrb[0].mxu0
      %v2477 = vadd.f32 %v2232, %v2476
      %v2478 = vpop.f32.mrb[0].mxu0
      %2479 = vmatprep.mubr.f32.mxu0 0.0
      %2480 = vmatmul.mubr.f32.gmra.mrb[0].mxu0 %v2047
      %v2481 = vpop.f32.mrb[0].mxu0
      %v2482 = vadd.f32 %v2237, %v2481
      %v2483 = vpop.f32.mrb[0].mxu0
      %2484 = vmatprep.mubr.f32.mxu0 0.0
      %2485 = vmatmul.mubr.f32.gmra.mrb[0].mxu0 %v2050
      %v2486 = vpop.f32.mrb[0].mxu0
      %v2487 = vadd.f32 %v2242, %v2486
      %v2488 = vpop.f32.mrb[0].mxu0
      %2489 = vmatprep.mubr.f32.mxu0 0.0
      %2490 = vmatmul.mubr.f32.gmra.mrb[0].mxu0 %v2053
      %v2491 = vpop.f32.mrb[0].mxu0
      %v2492 = vadd.f32 %v2247, %v2491
      %v2493 = vpop.f32.mrb[0].mxu0
      %2494 = vmatprep.mubr.f32.mxu0 0.0
      %2495 = vmatmul.mubr.f32.gmra.mrb[0].mxu0 %v2056
      %v2496 = vpop.f32.mrb[0].mxu0
      %v2497 = vadd.f32 %v2252, %v2496
      %v2498 = vpop.f32.mrb[0].mxu0
      %2499 = vmatprep.mubr.f32.mxu0 0.0
      %2500 = vmatmul.mubr.f32.gmra.mrb[0].mxu0 %v2059
      %v2501 = vpop.f32.mrb[0].mxu0
      %v2502 = vadd.f32 %v2257, %v2501
      %v2503 = vpop.f32.mrb[0].mxu0
      %2504 = vmatprep.mubr.f32.mxu0 0.0
      %2505 = vmatmul.mubr.f32.gmra.mrb[0].mxu0 %v2062
      %v2506 = vpop.f32.mrb[0].mxu0
      %v2507 = vadd.f32 %v2262, %v2506
      %v2508 = vpop.f32.mrb[0].mxu0
      %2509 = vmatprep.mubr.f32.mxu0 0.0
      %2510 = vmatmul.mubr.f32.gmra.mrb[0].mxu0 %v2065
      %v2511 = vpop.f32.mrb[0].mxu0
      %v2512 = vadd.f32 %v2267, %v2511
      %v2513 = vpop.f32.mrb[0].mxu0
      %2514 = vmatprep.mubr.f32.mxu0 0.0
      %2515 = vmatmul.mubr.f32.gmra.mrb[0].mxu0 %v2068
      %v2516 = vpop.f32.mrb[0].mxu0
      %v2517 = vadd.f32 %v2272, %v2516
      %v2518 = vpop.f32.mrb[0].mxu0
      %2519 = vmatprep.mubr.f32.mxu0 0.0
      %2520 = vmatmul.mubr.f32.gmra.mrb[0].mxu0 %v2071
      %v2521 = vpop.f32.mrb[0].mxu0
      %v2522 = vadd.f32 %v2277, %v2521
      %v2523 = vpop.f32.mrb[0].mxu0
      %2524 = vmatprep.mubr.f32.mxu0 0.0
      %2525 = vmatmul.mubr.f32.gmra.mrb[0].mxu0 %v2074
      %v2526 = vpop.f32.mrb[0].mxu0
      %v2527 = vadd.f32 %v2282, %v2526
      %v2528 = vpop.f32.mrb[0].mxu0
      %2529 = vmatprep.mubr.f32.mxu0 0.0
      %2530 = vmatmul.mubr.f32.gmra.mrb[0].mxu0 %v2077
      %v2531 = vpop.f32.mrb[0].mxu0
      %v2532 = vadd.f32 %v2287, %v2531
      %v2533 = vpop.f32.mrb[0].mxu0
      %2534 = vmatprep.mubr.f32.mxu0 0.0
      %2535 = vmatmul.mubr.f32.gmra.mrb[0].mxu0 %v2080
      %v2536 = vpop.f32.mrb[0].mxu0
      %v2537 = vadd.f32 %v2292, %v2536
      %v2538 = vpop.f32.mrb[0].mxu0
      %2539 = vmatprep.mubr.f32.mxu0 0.0
      %2540 = vmatmul.mubr.f32.gmra.mrb[0].mxu0 %v2083
      %v2541 = vpop.f32.mrb[0].mxu0
      %v2542 = vadd.f32 %v2297, %v2541
      %v2543 = vpop.f32.mrb[0].mxu0
      %2544 = vmatprep.mubr.f32.mxu0 0.0
      %2545 = vmatmul.mubr.f32.gmra.mrb[0].mxu0 %v2086
      %v2546 = vpop.f32.mrb[0].mxu0
      %v2547 = vadd.f32 %v2302, %v2546
      %v2548 = vpop.f32.mrb[0].mxu0
      %2549 = vmatprep.mubr.f32.mxu0 0.0
      %2550 = vmatmul.mubr.f32.gmra.mrb[0].mxu0 %v2089
      %v2551 = vpop.f32.mrb[0].mxu0
      %v2552 = vadd.f32 %v2307, %v2551
      %v2553 = vpop.f32.mrb[0].mxu0
      %2554 = vmatprep.mubr.f32.mxu0 0.0
      %2555 = vmatmul.mubr.f32.gmra.mrb[0].mxu0 %v2092
      %v2556 = vpop.f32.mrb[0].mxu0
      %v2557 = vadd.f32 %v2312, %v2556
      %v2558 = vpop.f32.mrb[0].mxu0
      %2559 = vmatprep.mubr.f32.mxu0 0.0
      %2560 = vmatmul.mubr.f32.gmra.mrb[0].mxu0 %v2095
      %v2561 = vpop.f32.mrb[0].mxu0
      %v2562 = vadd.f32 %v2317, %v2561
      %v2563 = vpop.f32.mrb[0].mxu0
      %2564 = vmatprep.mubr.f32.mxu0 0.0
      %2565 = vmatmul.mubr.f32.gmra.mrb[0].mxu0 %v2098
      %v2566 = vpop.f32.mrb[0].mxu0
      %v2567 = vadd.f32 %v2322, %v2566
      %v2568 = vpop.f32.mrb[0].mxu0
      %2569 = vmatprep.mubr.f32.mxu0 0.0
      %2570 = vmatmul.mubr.f32.gmra.mrb[0].mxu0 %v2101
      %v2571 = vpop.f32.mrb[0].mxu0
      %v2572 = vadd.f32 %v2327, %v2571
      %v2573 = vpop.f32.mrb[0].mxu0
      %2574 = vmatprep.mubr.f32.mxu0 0.0
      %2575 = vmatmul.mubr.f32.gmra.mrb[0].mxu0 %v2104
      %v2576 = vpop.f32.mrb[0].mxu0
      %v2577 = vadd.f32 %v2332, %v2576
      %v2578 = vpop.f32.mrb[0].mxu0
      %2579 = vmatprep.mubr.f32.mxu0 0.0
      %2580 = vmatmul.mubr.f32.gmra.mrb[0].mxu0 %v2107
      %v2581 = vpop.f32.mrb[0].mxu0
      %v2582 = vadd.f32 %v2337, %v2581
      %v2583 = vpop.f32.mrb[0].mxu0
      %2584 = vmatprep.mubr.f32.mxu0 0.0
      %2585 = vmatmul.mubr.f32.gmra.mrb[0].mxu0 %v2110
      %v2586 = vpop.f32.mrb[0].mxu0
      %v2587 = vadd.f32 %v2342, %v2586
      %v2588 = vpop.f32.mrb[0].mxu0
      %2589 = vmatprep.mubr.f32.mxu0 0.0
      %2590 = vmatmul.mubr.f32.gmra.mrb[0].mxu0 %v2113
      %v2591 = vpop.f32.mrb[0].mxu0
      %v2592 = vadd.f32 %v2347, %v2591
      %v2593 = vpop.f32.mrb[0].mxu0
      %2594 = vmatprep.mubr.f32.mxu0 0.0
      %2595 = vmatmul.mubr.f32.gmra.mrb[0].mxu0 %v2116
      %v2596 = vpop.f32.mrb[0].mxu0
      %v2597 = vadd.f32 %v2352, %v2596
      %v2598 = vpop.f32.mrb[0].mxu0
      %2599 = vmatprep.mubr.f32.mxu0 0.0
      %2600 = vmatmul.mubr.f32.gmra.mrb[0].mxu0 %v2119
      %v2601 = vpop.f32.mrb[0].mxu0
      %v2602 = vadd.f32 %v2357, %v2601
      %v2603 = vpop.f32.mrb[0].mxu0
      %2604 = vmatprep.mubr.f32.mxu0 0.0
      %2605 = vmatmul.mubr.f32.gmra.mrb[0].mxu0 %v2122
      %v2606 = vpop.f32.mrb[0].mxu0
      %v2607 = vadd.f32 %v2362, %v2606
      %v2608 = vpop.f32.mrb[0].mxu0
      %2609 = vmatprep.mubr.f32.mxu0 0.0
      %2610 = vmatmul.mubr.f32.gmra.mrb[0].mxu0 %v2125
      %v2611 = vpop.f32.mrb[0].mxu0
      %v2612 = vadd.f32 %v2367, %v2611
      %v2613 = vpop.f32.mrb[0].mxu0
      %2614 = vmatprep.mubr.f32.mxu0 0.0
      %2615 = vmatmul.mubr.f32.gmra.mrb[0].mxu0 %v2128
      %v2616 = vpop.f32.mrb[0].mxu0
      %v2617 = vadd.f32 %v2372, %v2616
      %v2618 = vpop.f32.mrb[0].mxu0
      %2619 = vdwg.mxu0
      %v2620 = vmax.f32 %v2442, 0.0
      %v2621 = vmax.f32 %v2447, 0.0
      %v2622 = vmax.f32 %v2452, 0.0
      %v2623 = vmax.f32 %v2457, 0.0
      %v2624 = vmax.f32 %v2462, 0.0
      %v2625 = vmax.f32 %v2467, 0.0
      %v2626 = vmax.f32 %v2472, 0.0
      %v2627 = vmax.f32 %v2477, 0.0
      %v2628 = vmax.f32 %v2482, 0.0
      %v2629 = vmax.f32 %v2487, 0.0
      %v2630 = vmax.f32 %v2492, 0.0
      %v2631 = vmax.f32 %v2497, 0.0
      %v2632 = vmax.f32 %v2502, 0.0
      %v2633 = vmax.f32 %v2507, 0.0
      %v2634 = vmax.f32 %v2512, 0.0
      %v2635 = vmax.f32 %v2517, 0.0
      %v2636 = vmax.f32 %v2522, 0.0
      %v2637 = vmax.f32 %v2527, 0.0
      %v2638 = vmax.f32 %v2532, 0.0
      %v2639 = vmax.f32 %v2537, 0.0
      %v2640 = vmax.f32 %v2542, 0.0
      %v2641 = vmax.f32 %v2547, 0.0
      %v2642 = vmax.f32 %v2552, 0.0
      %v2643 = vmax.f32 %v2557, 0.0
      %v2644 = vmax.f32 %v2562, 0.0
      %v2645 = vmax.f32 %v2567, 0.0
      %v2646 = vmax.f32 %v2572, 0.0
      %v2647 = vmax.f32 %v2577, 0.0
      %v2648 = vmax.f32 %v2582, 0.0
      %v2649 = vmax.f32 %v2587, 0.0
      %v2650 = vmax.f32 %v2592, 0.0
      %v2651 = vmax.f32 %v2597, 0.0
      %v2652 = vmax.f32 %v2602, 0.0
      %v2653 = vmax.f32 %v2607, 0.0
      %v2654 = vmax.f32 %v2612, 0.0
      %v2655 = vmax.f32 %v2617, 0.0
      %2656 = vst.msk [vmem:[#allocation3] sm:$0xff] %vm252, 0.0
      %2657 = vst.msk [vmem:[#allocation3 + $0x8] sm:$0xff] %vm252, 0.0
      %2658 = vst.msk [vmem:[#allocation3 + $0x10] sm:$0x7] %vm255, 0.0
      %v2659 = vld [vmem:[%s5] sm:$0xff]
      %v2660 = vld [vmem:[%s5 + $0x8] sm:$0xff]
      %v2661 = vld [vmem:[%s5 + $0x10] sm:$0xff]
      %v2662 = vld [vmem:[%s5 + $0x18] sm:$0xff]
      %v2663 = vld [vmem:[%s5 + $0x20] sm:$0xff]
      %v2664 = vld [vmem:[%s5 + $0x28] sm:$0xff]
      %v2665 = vld [vmem:[%s5 + $0x30] sm:$0xff]
      %v2666 = vld [vmem:[%s5 + $0x38] sm:$0xff]
      %v2667 = vld [vmem:[%s5 + $0x40] sm:$0xff]
      %v2668 = vld [vmem:[%s5 + $0x48] sm:$0xff]
      %v2669 = vld [vmem:[%s5 + $0x50] sm:$0xff]
      %v2670 = vld [vmem:[%s5 + $0x58] sm:$0xff]
      %v2671 = vld [vmem:[%s5 + $0x60] sm:$0xff]
      %v2672 = vld [vmem:[%s5 + $0x68] sm:$0xff]
      %v2673 = vld [vmem:[%s5 + $0x70] sm:$0xff]
      %v2674 = vld [vmem:[%s5 + $0x78] sm:$0xff]
      %v2675 = vld [vmem:[%s5 + $0x80] sm:$0xff]
      %v2676 = vld [vmem:[%s5 + $0x88] sm:$0xff]
      %v2677 = vld [vmem:[%s5 + $0x90] sm:$0xff]
      %v2678 = vld [vmem:[%s5 + $0x98] sm:$0xff]
      %v2679 = vld [vmem:[%s5 + $0xa0] sm:$0xff]
      %v2680 = vld [vmem:[%s5 + $0xa8] sm:$0xff]
      %v2681 = vld [vmem:[%s5 + $0xb0] sm:$0xff]
      %v2682 = vld [vmem:[%s5 + $0xb8] sm:$0xff]
      %v2683 = vld [vmem:[%s5 + $0xc0] sm:$0xff]
      %v2684 = vld [vmem:[%s5 + $0xc8] sm:$0xff]
      %v2685 = vld [vmem:[%s5 + $0xd0] sm:$0xff]
      %v2686 = vld [vmem:[%s5 + $0xd8] sm:$0xff]
      %v2687 = vld [vmem:[%s5 + $0xe0] sm:$0xff]
      %v2688 = vld [vmem:[%s5 + $0xe8] sm:$0xff]
      %v2689 = vld [vmem:[%s5 + $0xf0] sm:$0xff]
      %v2690 = vld [vmem:[%s5 + $0xf8] sm:$0xff]
      %v2691 = vld [vmem:[%s5 + $0x100] sm:$0xff]
      %v2692 = vld [vmem:[%s5 + $0x108] sm:$0xff]
      %v2693 = vld [vmem:[%s5 + $0x110] sm:$0xff]
      %v2694 = vld [vmem:[%s5 + $0x118] sm:$0xff]
      %2696 = vset.pattern.permute.xlu0 0
      %2697 = vperm.xlu0 %2696, %v2659
      %v2698 = vpop.permute.xlu0 %2697
      %2701 = vset.pattern.permute.xlu0 0
      %2702 = vperm.xlu0 %2701, %v2660
      %v2703 = vpop.permute.xlu0 %2702
      %2706 = vset.pattern.permute.xlu0 0
      %2707 = vperm.xlu0 %2706, %v2661
      %v2708 = vpop.permute.xlu0 %2707
      %2711 = vset.pattern.permute.xlu0 0
      %2712 = vperm.xlu0 %2711, %v2662
      %v2713 = vpop.permute.xlu0 %2712
      %2716 = vset.pattern.permute.xlu0 0
      %2717 = vperm.xlu0 %2716, %v2663
      %v2718 = vpop.permute.xlu0 %2717
      %2721 = vset.pattern.permute.xlu0 0
      %2722 = vperm.xlu0 %2721, %v2664
      %v2723 = vpop.permute.xlu0 %2722
      %2726 = vset.pattern.permute.xlu0 0
      %2727 = vperm.xlu0 %2726, %v2665
      %v2728 = vpop.permute.xlu0 %2727
      %2731 = vset.pattern.permute.xlu0 0
      %2732 = vperm.xlu0 %2731, %v2666
      %v2733 = vpop.permute.xlu0 %2732
      %2736 = vset.pattern.permute.xlu0 0
      %2737 = vperm.xlu0 %2736, %v2667
      %v2738 = vpop.permute.xlu0 %2737
      %2741 = vset.pattern.permute.xlu0 0
      %2742 = vperm.xlu0 %2741, %v2668
      %v2743 = vpop.permute.xlu0 %2742
      %2746 = vset.pattern.permute.xlu0 0
      %2747 = vperm.xlu0 %2746, %v2669
      %v2748 = vpop.permute.xlu0 %2747
      %2751 = vset.pattern.permute.xlu0 0
      %2752 = vperm.xlu0 %2751, %v2670
      %v2753 = vpop.permute.xlu0 %2752
      %2756 = vset.pattern.permute.xlu0 0
      %2757 = vperm.xlu0 %2756, %v2671
      %v2758 = vpop.permute.xlu0 %2757
      %2761 = vset.pattern.permute.xlu0 0
      %2762 = vperm.xlu0 %2761, %v2672
      %v2763 = vpop.permute.xlu0 %2762
      %2766 = vset.pattern.permute.xlu0 0
      %2767 = vperm.xlu0 %2766, %v2673
      %v2768 = vpop.permute.xlu0 %2767
      %2771 = vset.pattern.permute.xlu0 0
      %2772 = vperm.xlu0 %2771, %v2674
      %v2773 = vpop.permute.xlu0 %2772
      %2776 = vset.pattern.permute.xlu0 0
      %2777 = vperm.xlu0 %2776, %v2675
      %v2778 = vpop.permute.xlu0 %2777
      %2781 = vset.pattern.permute.xlu0 0
      %2782 = vperm.xlu0 %2781, %v2676
      %v2783 = vpop.permute.xlu0 %2782
      %2786 = vset.pattern.permute.xlu0 0
      %2787 = vperm.xlu0 %2786, %v2677
      %v2788 = vpop.permute.xlu0 %2787
      %2791 = vset.pattern.permute.xlu0 0
      %2792 = vperm.xlu0 %2791, %v2678
      %v2793 = vpop.permute.xlu0 %2792
      %2796 = vset.pattern.permute.xlu0 0
      %2797 = vperm.xlu0 %2796, %v2679
      %v2798 = vpop.permute.xlu0 %2797
      %2801 = vset.pattern.permute.xlu0 0
      %2802 = vperm.xlu0 %2801, %v2680
      %v2803 = vpop.permute.xlu0 %2802
      %2806 = vset.pattern.permute.xlu0 0
      %2807 = vperm.xlu0 %2806, %v2681
      %v2808 = vpop.permute.xlu0 %2807
      %2811 = vset.pattern.permute.xlu0 0
      %2812 = vperm.xlu0 %2811, %v2682
      %v2813 = vpop.permute.xlu0 %2812
      %2816 = vset.pattern.permute.xlu0 0
      %2817 = vperm.xlu0 %2816, %v2683
      %v2818 = vpop.permute.xlu0 %2817
      %2821 = vset.pattern.permute.xlu0 0
      %2822 = vperm.xlu0 %2821, %v2684
      %v2823 = vpop.permute.xlu0 %2822
      %2826 = vset.pattern.permute.xlu0 0
      %2827 = vperm.xlu0 %2826, %v2685
      %v2828 = vpop.permute.xlu0 %2827
      %2831 = vset.pattern.permute.xlu0 0
      %2832 = vperm.xlu0 %2831, %v2686
      %v2833 = vpop.permute.xlu0 %2832
      %2836 = vset.pattern.permute.xlu0 0
      %2837 = vperm.xlu0 %2836, %v2687
      %v2838 = vpop.permute.xlu0 %2837
      %2841 = vset.pattern.permute.xlu0 0
      %2842 = vperm.xlu0 %2841, %v2688
      %v2843 = vpop.permute.xlu0 %2842
      %2846 = vset.pattern.permute.xlu0 0
      %2847 = vperm.xlu0 %2846, %v2689
      %v2848 = vpop.permute.xlu0 %2847
      %2851 = vset.pattern.permute.xlu0 0
      %2852 = vperm.xlu0 %2851, %v2690
      %v2853 = vpop.permute.xlu0 %2852
      %2856 = vset.pattern.permute.xlu0 0
      %2857 = vperm.xlu0 %2856, %v2691
      %v2858 = vpop.permute.xlu0 %2857
      %2861 = vset.pattern.permute.xlu0 0
      %2862 = vperm.xlu0 %2861, %v2692
      %v2863 = vpop.permute.xlu0 %2862
      %2866 = vset.pattern.permute.xlu0 0
      %2867 = vperm.xlu0 %2866, %v2693
      %v2868 = vpop.permute.xlu0 %2867
      %2871 = vset.pattern.permute.xlu0 0
      %2872 = vperm.xlu0 %2871, %v2694
      %v2873 = vpop.permute.xlu0 %2872
      %v2875 = vmul.f32 %v2620, %v2698
      %v2876 = vmul.f32 %v2621, %v2703
      %v2877 = vmul.f32 %v2622, %v2708
      %v2878 = vmul.f32 %v2623, %v2713
      %v2879 = vmul.f32 %v2624, %v2718
      %v2880 = vmul.f32 %v2625, %v2723
      %v2881 = vmul.f32 %v2626, %v2728
      %v2882 = vmul.f32 %v2627, %v2733
      %v2883 = vmul.f32 %v2628, %v2738
      %v2884 = vmul.f32 %v2629, %v2743
      %v2885 = vmul.f32 %v2630, %v2748
      %v2886 = vmul.f32 %v2631, %v2753
      %v2887 = vmul.f32 %v2632, %v2758
      %v2888 = vmul.f32 %v2633, %v2763
      %v2889 = vmul.f32 %v2634, %v2768
      %v2890 = vmul.f32 %v2635, %v2773
      %v2891 = vmul.f32 %v2636, %v2778
      %v2892 = vmul.f32 %v2637, %v2783
      %v2893 = vmul.f32 %v2638, %v2788
      %v2894 = vmul.f32 %v2639, %v2793
      %v2895 = vmul.f32 %v2640, %v2798
      %v2896 = vmul.f32 %v2641, %v2803
      %v2897 = vmul.f32 %v2642, %v2808
      %v2898 = vmul.f32 %v2643, %v2813
      %v2899 = vmul.f32 %v2644, %v2818
      %v2900 = vmul.f32 %v2645, %v2823
      %v2901 = vmul.f32 %v2646, %v2828
      %v2902 = vmul.f32 %v2647, %v2833
      %v2903 = vmul.f32 %v2648, %v2838
      %v2904 = vmul.f32 %v2649, %v2843
      %v2905 = vmul.f32 %v2650, %v2848
      %v2906 = vmul.f32 %v2651, %v2853
      %v2907 = vmul.f32 %v2652, %v2858
      %v2908 = vmul.f32 %v2653, %v2863
      %v2909 = vmul.f32 %v2654, %v2868
      %v2910 = vmul.f32 %v2655, %v2873
      %2911 = vst.msk [vmem:[#allocation3 + $0x13] sm:$0xff] %vm252, %v2875
      %2912 = vst.msk [vmem:[#allocation3 + $0x1b] sm:$0xff] %vm252, %v2876
      %2913 = vst.msk [vmem:[#allocation3 + $0x23] sm:$0xff] %vm252, %v2877
      %2914 = vst.msk [vmem:[#allocation3 + $0x2b] sm:$0xff] %vm252, %v2878
      %2915 = vst.msk [vmem:[#allocation3 + $0x33] sm:$0xff] %vm252, %v2879
      %2916 = vst.msk [vmem:[#allocation3 + $0x3b] sm:$0xff] %vm252, %v2880
      %2917 = vst.msk [vmem:[#allocation3 + $0x43] sm:$0xff] %vm252, %v2881
      %2918 = vst.msk [vmem:[#allocation3 + $0x4b] sm:$0xff] %vm252, %v2882
      %2919 = vst.msk [vmem:[#allocation3 + $0x53] sm:$0xff] %vm252, %v2883
      %2920 = vst.msk [vmem:[#allocation3 + $0x5b] sm:$0xff] %vm252, %v2884
      %2921 = vst.msk [vmem:[#allocation3 + $0x63] sm:$0xff] %vm252, %v2885
      %2922 = vst.msk [vmem:[#allocation3 + $0x6b] sm:$0xff] %vm252, %v2886
      %2923 = vst.msk [vmem:[#allocation3 + $0x73] sm:$0xff] %vm252, %v2887
      %2924 = vst.msk [vmem:[#allocation3 + $0x7b] sm:$0xff] %vm252, %v2888
      %2925 = vst.msk [vmem:[#allocation3 + $0x83] sm:$0xff] %vm252, %v2889
      %2926 = vst.msk [vmem:[#allocation3 + $0x8b] sm:$0xff] %vm252, %v2890
      %2927 = vst.msk [vmem:[#allocation3 + $0x93] sm:$0xff] %vm252, %v2891
      %2928 = vst.msk [vmem:[#allocation3 + $0x9b] sm:$0xff] %vm252, %v2892
      %2929 = vst.msk [vmem:[#allocation3 + $0xa3] sm:$0xff] %vm252, %v2893
      %2930 = vst.msk [vmem:[#allocation3 + $0xab] sm:$0xff] %vm252, %v2894
      %2931 = vst.msk [vmem:[#allocation3 + $0xb3] sm:$0xff] %vm252, %v2895
      %2932 = vst.msk [vmem:[#allocation3 + $0xbb] sm:$0xff] %vm252, %v2896
      %2933 = vst.msk [vmem:[#allocation3 + $0xc3] sm:$0xff] %vm252, %v2897
      %2934 = vst.msk [vmem:[#allocation3 + $0xcb] sm:$0xff] %vm252, %v2898
      %2935 = vst.msk [vmem:[#allocation3 + $0xd3] sm:$0xff] %vm252, %v2899
      %2936 = vst.msk [vmem:[#allocation3 + $0xdb] sm:$0xff] %vm252, %v2900
      %2937 = vst.msk [vmem:[#allocation3 + $0xe3] sm:$0xff] %vm252, %v2901
      %2938 = vst.msk [vmem:[#allocation3 + $0xeb] sm:$0xff] %vm252, %v2902
      %2939 = vst.msk [vmem:[#allocation3 + $0xf3] sm:$0xff] %vm252, %v2903
      %2940 = vst.msk [vmem:[#allocation3 + $0xfb] sm:$0xff] %vm252, %v2904
      %2941 = vst.msk [vmem:[#allocation3 + $0x103] sm:$0xff] %vm252, %v2905
      %2942 = vst.msk [vmem:[#allocation3 + $0x10b] sm:$0xff] %vm252, %v2906
      %2943 = vst.msk [vmem:[#allocation3 + $0x113] sm:$0xff] %vm252, %v2907
      %2944 = vst.msk [vmem:[#allocation3 + $0x11b] sm:$0xff] %vm252, %v2908
      %2945 = vst.msk [vmem:[#allocation3 + $0x123] sm:$0xff] %vm252, %v2909
      %2946 = vst.msk [vmem:[#allocation3 + $0x12b] sm:$0xff] %vm252, %v2910
      %2947 = vst.msk [vmem:[#allocation3 + $0x133] sm:$0xff] %vm252, 0.0
      %2948 = vst.msk [vmem:[#allocation3 + $0x13b] sm:$0xff] %vm252, 0.0
      %vm2949 = vcmask 258048
      %2950 = vst.msk [vmem:[#allocation3 + $0x143] sm:$0x1f] %vm2949, 0.0
      %v2951 = vld [vmem:[#allocation3] sm:$0xff]
      %v2952 = vld [vmem:[#allocation3 + $0x8] sm:$0xff]
      %v2953 = vld [vmem:[#allocation3 + $0x10] sm:$0xff]
      %v2954 = vld [vmem:[#allocation3 + $0x18] sm:$0xff]
      %v2955 = vld [vmem:[#allocation3 + $0x20] sm:$0xff]
      %v2956 = vld [vmem:[#allocation3 + $0x28] sm:$0xff]
      %v2957 = vld [vmem:[#allocation3 + $0x30] sm:$0xff]
      %v2958 = vld [vmem:[#allocation3 + $0x38] sm:$0xff]
      %v2959 = vld [vmem:[#allocation3 + $0x40] sm:$0xff]
      %v2960 = vld [vmem:[#allocation3 + $0x48] sm:$0xff]
      %v2961 = vld [vmem:[#allocation3 + $0x50] sm:$0xff]
      %v2962 = vld [vmem:[#allocation3 + $0x58] sm:$0xff]
      %v2963 = vld [vmem:[#allocation3 + $0x60] sm:$0xff]
      %v2964 = vld [vmem:[#allocation3 + $0x68] sm:$0xff]
      %v2965 = vld [vmem:[#allocation3 + $0x70] sm:$0xff]
      %v2966 = vld [vmem:[#allocation3 + $0x78] sm:$0xff]
      %v2967 = vld [vmem:[#allocation3 + $0x80] sm:$0xff]
      %v2968 = vld [vmem:[#allocation3 + $0x88] sm:$0xff]
      %v2969 = vld [vmem:[#allocation3 + $0x90] sm:$0xff]
      %v2970 = vld [vmem:[#allocation3 + $0x98] sm:$0xff]
      %v2971 = vld [vmem:[#allocation3 + $0xa0] sm:$0xff]
      %v2972 = vld [vmem:[#allocation3 + $0xa8] sm:$0xff]
      %v2973 = vld [vmem:[#allocation3 + $0xb0] sm:$0xff]
      %v2974 = vld [vmem:[#allocation3 + $0xb8] sm:$0xff]
      %v2975 = vld [vmem:[#allocation3 + $0xc0] sm:$0xff]
      %v2976 = vld [vmem:[#allocation3 + $0xc8] sm:$0xff]
      %v2977 = vld [vmem:[#allocation3 + $0xd0] sm:$0xff]
      %v2978 = vld [vmem:[#allocation3 + $0xd8] sm:$0xff]
      %v2979 = vld [vmem:[#allocation3 + $0xe0] sm:$0xff]
      %v2980 = vld [vmem:[#allocation3 + $0xe8] sm:$0xff]
      %v2981 = vld [vmem:[#allocation3 + $0xf0] sm:$0xff]
      %v2982 = vld [vmem:[#allocation3 + $0xf8] sm:$0xff]
      %v2983 = vld [vmem:[#allocation3 + $0x100] sm:$0xff]
      %v2984 = vld [vmem:[#allocation3 + $0x108] sm:$0xff]
      %v2985 = vld [vmem:[#allocation3 + $0x110] sm:$0xff]
      %v2986 = vld [vmem:[#allocation3 + $0x118] sm:$0xff]
      %2987 = vst.msk [vmem:[#allocation4] sm:$0xff] %vm252, %v2951
      %2988 = vst.msk [vmem:[#allocation4 + $0x18] sm:$0xff] %vm252, %v2952
      %2989 = vst.msk [vmem:[#allocation4 + $0x30] sm:$0xff] %vm252, %v2953
      %2990 = vst.msk [vmem:[#allocation4 + $0x48] sm:$0xff] %vm252, %v2954
      %2991 = vst.msk [vmem:[#allocation4 + $0x60] sm:$0xff] %vm252, %v2955
      %2992 = vst.msk [vmem:[#allocation4 + $0x78] sm:$0xff] %vm252, %v2956
      %2993 = vst.msk [vmem:[#allocation4 + $0x90] sm:$0xff] %vm252, %v2957
      %2994 = vst.msk [vmem:[#allocation4 + $0xa8] sm:$0xff] %vm252, %v2958
      %2995 = vst.msk [vmem:[#allocation4 + $0xc0] sm:$0xff] %vm252, %v2959
      %2996 = vst.msk [vmem:[#allocation4 + $0xd8] sm:$0xff] %vm252, %v2960
      %2997 = vst.msk [vmem:[#allocation4 + $0xf0] sm:$0xff] %vm252, %v2961
      %2998 = vst.msk [vmem:[#allocation4 + $0x108] sm:$0xff] %vm252, %v2962
      %2999 = vst.msk [vmem:[#allocation4 + $0x120] sm:$0xff] %vm252, %v2963
      %3000 = vst.msk [vmem:[#allocation4 + $0x138] sm:$0xff] %vm252, %v2964
      %3001 = vst.msk [vmem:[#allocation4 + $0x150] sm:$0xff] %vm252, %v2965
      %3002 = vst.msk [vmem:[#allocation4 + $0x168] sm:$0xff] %vm252, %v2966
      %3003 = vst.msk [vmem:[#allocation4 + $0x180] sm:$0xff] %vm252, %v2967
      %3004 = vst.msk [vmem:[#allocation4 + $0x198] sm:$0xff] %vm252, %v2968
      %3005 = vst.msk [vmem:[#allocation4 + $0x1b0] sm:$0xff] %vm252, %v2969
      %3006 = vst.msk [vmem:[#allocation4 + $0x1c8] sm:$0xff] %vm252, %v2970
      %3007 = vst.msk [vmem:[#allocation4 + $0x1e0] sm:$0xff] %vm252, %v2971
      %3008 = vst.msk [vmem:[#allocation4 + $0x1f8] sm:$0xff] %vm252, %v2972
      %3009 = vst.msk [vmem:[#allocation4 + $0x210] sm:$0xff] %vm252, %v2973
      %3010 = vst.msk [vmem:[#allocation4 + $0x228] sm:$0xff] %vm252, %v2974
      %3011 = vst.msk [vmem:[#allocation4 + $0x240] sm:$0xff] %vm252, %v2975
      %3012 = vst.msk [vmem:[#allocation4 + $0x258] sm:$0xff] %vm252, %v2976
      %3013 = vst.msk [vmem:[#allocation4 + $0x270] sm:$0xff] %vm252, %v2977
      %3014 = vst.msk [vmem:[#allocation4 + $0x288] sm:$0xff] %vm252, %v2978
      %3015 = vst.msk [vmem:[#allocation4 + $0x2a0] sm:$0xff] %vm252, %v2979
      %3016 = vst.msk [vmem:[#allocation4 + $0x2b8] sm:$0xff] %vm252, %v2980
      %3017 = vst.msk [vmem:[#allocation4 + $0x2d0] sm:$0xff] %vm252, %v2981
      %3018 = vst.msk [vmem:[#allocation4 + $0x2e8] sm:$0xff] %vm252, %v2982
      %3019 = vst.msk [vmem:[#allocation4 + $0x300] sm:$0xff] %vm252, %v2983
      %3020 = vst.msk [vmem:[#allocation4 + $0x318] sm:$0xff] %vm252, %v2984
      %3021 = vst.msk [vmem:[#allocation4 + $0x330] sm:$0xff] %vm252, %v2985
      %3022 = vst.msk [vmem:[#allocation4 + $0x348] sm:$0xff] %vm252, %v2986
      %v3023 = vld [vmem:[#allocation3 + $0x1] sm:$0xff]
      %v3024 = vld [vmem:[#allocation3 + $0x9] sm:$0xff]
      %v3025 = vld [vmem:[#allocation3 + $0x11] sm:$0xff]
      %v3026 = vld [vmem:[#allocation3 + $0x19] sm:$0xff]
      %v3027 = vld [vmem:[#allocation3 + $0x21] sm:$0xff]
      %v3028 = vld [vmem:[#allocation3 + $0x29] sm:$0xff]
      %v3029 = vld [vmem:[#allocation3 + $0x31] sm:$0xff]
      %v3030 = vld [vmem:[#allocation3 + $0x39] sm:$0xff]
      %v3031 = vld [vmem:[#allocation3 + $0x41] sm:$0xff]
      %v3032 = vld [vmem:[#allocation3 + $0x49] sm:$0xff]
      %v3033 = vld [vmem:[#allocation3 + $0x51] sm:$0xff]
      %v3034 = vld [vmem:[#allocation3 + $0x59] sm:$0xff]
      %v3035 = vld [vmem:[#allocation3 + $0x61] sm:$0xff]
      %v3036 = vld [vmem:[#allocation3 + $0x69] sm:$0xff]
      %v3037 = vld [vmem:[#allocation3 + $0x71] sm:$0xff]
      %v3038 = vld [vmem:[#allocation3 + $0x79] sm:$0xff]
      %v3039 = vld [vmem:[#allocation3 + $0x81] sm:$0xff]
      %v3040 = vld [vmem:[#allocation3 + $0x89] sm:$0xff]
      %v3041 = vld [vmem:[#allocation3 + $0x91] sm:$0xff]
      %v3042 = vld [vmem:[#allocation3 + $0x99] sm:$0xff]
      %v3043 = vld [vmem:[#allocation3 + $0xa1] sm:$0xff]
      %v3044 = vld [vmem:[#allocation3 + $0xa9] sm:$0xff]
      %v3045 = vld [vmem:[#allocation3 + $0xb1] sm:$0xff]
      %v3046 = vld [vmem:[#allocation3 + $0xb9] sm:$0xff]
      %v3047 = vld [vmem:[#allocation3 + $0xc1] sm:$0xff]
      %v3048 = vld [vmem:[#allocation3 + $0xc9] sm:$0xff]
      %v3049 = vld [vmem:[#allocation3 + $0xd1] sm:$0xff]
      %v3050 = vld [vmem:[#allocation3 + $0xd9] sm:$0xff]
      %v3051 = vld [vmem:[#allocation3 + $0xe1] sm:$0xff]
      %v3052 = vld [vmem:[#allocation3 + $0xe9] sm:$0xff]
      %v3053 = vld [vmem:[#allocation3 + $0xf1] sm:$0xff]
      %v3054 = vld [vmem:[#allocation3 + $0xf9] sm:$0xff]
      %v3055 = vld [vmem:[#allocation3 + $0x101] sm:$0xff]
      %v3056 = vld [vmem:[#allocation3 + $0x109] sm:$0xff]
      %v3057 = vld [vmem:[#allocation3 + $0x111] sm:$0xff]
      %v3058 = vld [vmem:[#allocation3 + $0x119] sm:$0xff]
      %3095 = vrot.lane.b32.xlu0 %v3023, 32
      %v3096 = vpop.permute.xlu0 %3095
      %3097 = vrot.lane.b32.xlu0 %v3024, 32
      %v3098 = vpop.permute.xlu0 %3097
      %3099 = vrot.lane.b32.xlu0 %v3025, 32
      %v3100 = vpop.permute.xlu0 %3099
      %3101 = vrot.lane.b32.xlu0 %v3026, 32
      %v3102 = vpop.permute.xlu0 %3101
      %3103 = vrot.lane.b32.xlu0 %v3027, 32
      %v3104 = vpop.permute.xlu0 %3103
      %3105 = vrot.lane.b32.xlu0 %v3028, 32
      %v3106 = vpop.permute.xlu0 %3105
      %3107 = vrot.lane.b32.xlu0 %v3029, 32
      %v3108 = vpop.permute.xlu0 %3107
      %3109 = vrot.lane.b32.xlu0 %v3030, 32
      %v3110 = vpop.permute.xlu0 %3109
      %3111 = vrot.lane.b32.xlu0 %v3031, 32
      %v3112 = vpop.permute.xlu0 %3111
      %3113 = vrot.lane.b32.xlu0 %v3032, 32
      %v3114 = vpop.permute.xlu0 %3113
      %3115 = vrot.lane.b32.xlu0 %v3033, 32
      %v3116 = vpop.permute.xlu0 %3115
      %3117 = vrot.lane.b32.xlu0 %v3034, 32
      %v3118 = vpop.permute.xlu0 %3117
      %3119 = vrot.lane.b32.xlu0 %v3035, 32
      %v3120 = vpop.permute.xlu0 %3119
      %3121 = vrot.lane.b32.xlu0 %v3036, 32
      %v3122 = vpop.permute.xlu0 %3121
      %3123 = vrot.lane.b32.xlu0 %v3037, 32
      %v3124 = vpop.permute.xlu0 %3123
      %3125 = vrot.lane.b32.xlu0 %v3038, 32
      %v3126 = vpop.permute.xlu0 %3125
      %3127 = vrot.lane.b32.xlu0 %v3039, 32
      %v3128 = vpop.permute.xlu0 %3127
      %3129 = vrot.lane.b32.xlu0 %v3040, 32
      %v3130 = vpop.permute.xlu0 %3129
      %3131 = vrot.lane.b32.xlu0 %v3041, 32
      %v3132 = vpop.permute.xlu0 %3131
      %3133 = vrot.lane.b32.xlu0 %v3042, 32
      %v3134 = vpop.permute.xlu0 %3133
      %3135 = vrot.lane.b32.xlu0 %v3043, 32
      %v3136 = vpop.permute.xlu0 %3135
      %3137 = vrot.lane.b32.xlu0 %v3044, 32
      %v3138 = vpop.permute.xlu0 %3137
      %3139 = vrot.lane.b32.xlu0 %v3045, 32
      %v3140 = vpop.permute.xlu0 %3139
      %3141 = vrot.lane.b32.xlu0 %v3046, 32
      %v3142 = vpop.permute.xlu0 %3141
      %3143 = vrot.lane.b32.xlu0 %v3047, 32
      %v3144 = vpop.permute.xlu0 %3143
      %3145 = vrot.lane.b32.xlu0 %v3048, 32
      %v3146 = vpop.permute.xlu0 %3145
      %3147 = vrot.lane.b32.xlu0 %v3049, 32
      %v3148 = vpop.permute.xlu0 %3147
      %3149 = vrot.lane.b32.xlu0 %v3050, 32
      %v3150 = vpop.permute.xlu0 %3149
      %3151 = vrot.lane.b32.xlu0 %v3051, 32
      %v3152 = vpop.permute.xlu0 %3151
      %3153 = vrot.lane.b32.xlu0 %v3052, 32
      %v3154 = vpop.permute.xlu0 %3153
      %3155 = vrot.lane.b32.xlu0 %v3053, 32
      %v3156 = vpop.permute.xlu0 %3155
      %3157 = vrot.lane.b32.xlu0 %v3054, 32
      %v3158 = vpop.permute.xlu0 %3157
      %3159 = vrot.lane.b32.xlu0 %v3055, 32
      %v3160 = vpop.permute.xlu0 %3159
      %3161 = vrot.lane.b32.xlu0 %v3056, 32
      %v3162 = vpop.permute.xlu0 %3161
      %3163 = vrot.lane.b32.xlu0 %v3057, 32
      %v3164 = vpop.permute.xlu0 %3163
      %3165 = vrot.lane.b32.xlu0 %v3058, 32
      %v3166 = vpop.permute.xlu0 %3165
      %3203 = vst.msk [vmem:[#allocation4] sm:$0xff] %vm608, %v3096
      %3204 = vst.msk [vmem:[#allocation4 + $0x18] sm:$0xff] %vm608, %v3098
      %3205 = vst.msk [vmem:[#allocation4 + $0x30] sm:$0xff] %vm608, %v3100
      %3206 = vst.msk [vmem:[#allocation4 + $0x48] sm:$0xff] %vm608, %v3102
      %3207 = vst.msk [vmem:[#allocation4 + $0x60] sm:$0xff] %vm608, %v3104
      %3208 = vst.msk [vmem:[#allocation4 + $0x78] sm:$0xff] %vm608, %v3106
      %3209 = vst.msk [vmem:[#allocation4 + $0x90] sm:$0xff] %vm608, %v3108
      %3210 = vst.msk [vmem:[#allocation4 + $0xa8] sm:$0xff] %vm608, %v3110
      %3211 = vst.msk [vmem:[#allocation4 + $0xc0] sm:$0xff] %vm608, %v3112
      %3212 = vst.msk [vmem:[#allocation4 + $0xd8] sm:$0xff] %vm608, %v3114
      %3213 = vst.msk [vmem:[#allocation4 + $0xf0] sm:$0xff] %vm608, %v3116
      %3214 = vst.msk [vmem:[#allocation4 + $0x108] sm:$0xff] %vm608, %v3118
      %3215 = vst.msk [vmem:[#allocation4 + $0x120] sm:$0xff] %vm608, %v3120
      %3216 = vst.msk [vmem:[#allocation4 + $0x138] sm:$0xff] %vm608, %v3122
      %3217 = vst.msk [vmem:[#allocation4 + $0x150] sm:$0xff] %vm608, %v3124
      %3218 = vst.msk [vmem:[#allocation4 + $0x168] sm:$0xff] %vm608, %v3126
      %3219 = vst.msk [vmem:[#allocation4 + $0x180] sm:$0xff] %vm608, %v3128
      %3220 = vst.msk [vmem:[#allocation4 + $0x198] sm:$0xff] %vm608, %v3130
      %3221 = vst.msk [vmem:[#allocation4 + $0x1b0] sm:$0xff] %vm608, %v3132
      %3222 = vst.msk [vmem:[#allocation4 + $0x1c8] sm:$0xff] %vm608, %v3134
      %3223 = vst.msk [vmem:[#allocation4 + $0x1e0] sm:$0xff] %vm608, %v3136
      %3224 = vst.msk [vmem:[#allocation4 + $0x1f8] sm:$0xff] %vm608, %v3138
      %3225 = vst.msk [vmem:[#allocation4 + $0x210] sm:$0xff] %vm608, %v3140
      %3226 = vst.msk [vmem:[#allocation4 + $0x228] sm:$0xff] %vm608, %v3142
      %3227 = vst.msk [vmem:[#allocation4 + $0x240] sm:$0xff] %vm608, %v3144
      %3228 = vst.msk [vmem:[#allocation4 + $0x258] sm:$0xff] %vm608, %v3146
      %3229 = vst.msk [vmem:[#allocation4 + $0x270] sm:$0xff] %vm608, %v3148
      %3230 = vst.msk [vmem:[#allocation4 + $0x288] sm:$0xff] %vm608, %v3150
      %3231 = vst.msk [vmem:[#allocation4 + $0x2a0] sm:$0xff] %vm608, %v3152
      %3232 = vst.msk [vmem:[#allocation4 + $0x2b8] sm:$0xff] %vm608, %v3154
      %3233 = vst.msk [vmem:[#allocation4 + $0x2d0] sm:$0xff] %vm608, %v3156
      %3234 = vst.msk [vmem:[#allocation4 + $0x2e8] sm:$0xff] %vm608, %v3158
      %3235 = vst.msk [vmem:[#allocation4 + $0x300] sm:$0xff] %vm608, %v3160
      %3236 = vst.msk [vmem:[#allocation4 + $0x318] sm:$0xff] %vm608, %v3162
      %3237 = vst.msk [vmem:[#allocation4 + $0x330] sm:$0xff] %vm608, %v3164
      %3238 = vst.msk [vmem:[#allocation4 + $0x348] sm:$0xff] %vm608, %v3166
      %v3239 = vld [vmem:[#allocation3 + $0x2] sm:$0xff]
      %v3240 = vld [vmem:[#allocation3 + $0xa] sm:$0xff]
      %v3241 = vld [vmem:[#allocation3 + $0x12] sm:$0xff]
      %v3242 = vld [vmem:[#allocation3 + $0x1a] sm:$0xff]
      %v3243 = vld [vmem:[#allocation3 + $0x22] sm:$0xff]
      %v3244 = vld [vmem:[#allocation3 + $0x2a] sm:$0xff]
      %v3245 = vld [vmem:[#allocation3 + $0x32] sm:$0xff]
      %v3246 = vld [vmem:[#allocation3 + $0x3a] sm:$0xff]
      %v3247 = vld [vmem:[#allocation3 + $0x42] sm:$0xff]
      %v3248 = vld [vmem:[#allocation3 + $0x4a] sm:$0xff]
      %v3249 = vld [vmem:[#allocation3 + $0x52] sm:$0xff]
      %v3250 = vld [vmem:[#allocation3 + $0x5a] sm:$0xff]
      %v3251 = vld [vmem:[#allocation3 + $0x62] sm:$0xff]
      %v3252 = vld [vmem:[#allocation3 + $0x6a] sm:$0xff]
      %v3253 = vld [vmem:[#allocation3 + $0x72] sm:$0xff]
      %v3254 = vld [vmem:[#allocation3 + $0x7a] sm:$0xff]
      %v3255 = vld [vmem:[#allocation3 + $0x82] sm:$0xff]
      %v3256 = vld [vmem:[#allocation3 + $0x8a] sm:$0xff]
      %v3257 = vld [vmem:[#allocation3 + $0x92] sm:$0xff]
      %v3258 = vld [vmem:[#allocation3 + $0x9a] sm:$0xff]
      %v3259 = vld [vmem:[#allocation3 + $0xa2] sm:$0xff]
      %v3260 = vld [vmem:[#allocation3 + $0xaa] sm:$0xff]
      %v3261 = vld [vmem:[#allocation3 + $0xb2] sm:$0xff]
      %v3262 = vld [vmem:[#allocation3 + $0xba] sm:$0xff]
      %v3263 = vld [vmem:[#allocation3 + $0xc2] sm:$0xff]
      %v3264 = vld [vmem:[#allocation3 + $0xca] sm:$0xff]
      %v3265 = vld [vmem:[#allocation3 + $0xd2] sm:$0xff]
      %v3266 = vld [vmem:[#allocation3 + $0xda] sm:$0xff]
      %v3267 = vld [vmem:[#allocation3 + $0xe2] sm:$0xff]
      %v3268 = vld [vmem:[#allocation3 + $0xea] sm:$0xff]
      %v3269 = vld [vmem:[#allocation3 + $0xf2] sm:$0xff]
      %v3270 = vld [vmem:[#allocation3 + $0xfa] sm:$0xff]
      %v3271 = vld [vmem:[#allocation3 + $0x102] sm:$0xff]
      %v3272 = vld [vmem:[#allocation3 + $0x10a] sm:$0xff]
      %v3273 = vld [vmem:[#allocation3 + $0x112] sm:$0xff]
      %v3274 = vld [vmem:[#allocation3 + $0x11a] sm:$0xff]
      %3311 = vrot.lane.b32.xlu0 %v3239, 64
      %v3312 = vpop.permute.xlu0 %3311
      %3313 = vrot.lane.b32.xlu0 %v3240, 64
      %v3314 = vpop.permute.xlu0 %3313
      %3315 = vrot.lane.b32.xlu0 %v3241, 64
      %v3316 = vpop.permute.xlu0 %3315
      %3317 = vrot.lane.b32.xlu0 %v3242, 64
      %v3318 = vpop.permute.xlu0 %3317
      %3319 = vrot.lane.b32.xlu0 %v3243, 64
      %v3320 = vpop.permute.xlu0 %3319
      %3321 = vrot.lane.b32.xlu0 %v3244, 64
      %v3322 = vpop.permute.xlu0 %3321
      %3323 = vrot.lane.b32.xlu0 %v3245, 64
      %v3324 = vpop.permute.xlu0 %3323
      %3325 = vrot.lane.b32.xlu0 %v3246, 64
      %v3326 = vpop.permute.xlu0 %3325
      %3327 = vrot.lane.b32.xlu0 %v3247, 64
      %v3328 = vpop.permute.xlu0 %3327
      %3329 = vrot.lane.b32.xlu0 %v3248, 64
      %v3330 = vpop.permute.xlu0 %3329
      %3331 = vrot.lane.b32.xlu0 %v3249, 64
      %v3332 = vpop.permute.xlu0 %3331
      %3333 = vrot.lane.b32.xlu0 %v3250, 64
      %v3334 = vpop.permute.xlu0 %3333
      %3335 = vrot.lane.b32.xlu0 %v3251, 64
      %v3336 = vpop.permute.xlu0 %3335
      %3337 = vrot.lane.b32.xlu0 %v3252, 64
      %v3338 = vpop.permute.xlu0 %3337
      %3339 = vrot.lane.b32.xlu0 %v3253, 64
      %v3340 = vpop.permute.xlu0 %3339
      %3341 = vrot.lane.b32.xlu0 %v3254, 64
      %v3342 = vpop.permute.xlu0 %3341
      %3343 = vrot.lane.b32.xlu0 %v3255, 64
      %v3344 = vpop.permute.xlu0 %3343
      %3345 = vrot.lane.b32.xlu0 %v3256, 64
      %v3346 = vpop.permute.xlu0 %3345
      %3347 = vrot.lane.b32.xlu0 %v3257, 64
      %v3348 = vpop.permute.xlu0 %3347
      %3349 = vrot.lane.b32.xlu0 %v3258, 64
      %v3350 = vpop.permute.xlu0 %3349
      %3351 = vrot.lane.b32.xlu0 %v3259, 64
      %v3352 = vpop.permute.xlu0 %3351
      %3353 = vrot.lane.b32.xlu0 %v3260, 64
      %v3354 = vpop.permute.xlu0 %3353
      %3355 = vrot.lane.b32.xlu0 %v3261, 64
      %v3356 = vpop.permute.xlu0 %3355
      %3357 = vrot.lane.b32.xlu0 %v3262, 64
      %v3358 = vpop.permute.xlu0 %3357
      %3359 = vrot.lane.b32.xlu0 %v3263, 64
      %v3360 = vpop.permute.xlu0 %3359
      %3361 = vrot.lane.b32.xlu0 %v3264, 64
      %v3362 = vpop.permute.xlu0 %3361
      %3363 = vrot.lane.b32.xlu0 %v3265, 64
      %v3364 = vpop.permute.xlu0 %3363
      %3365 = vrot.lane.b32.xlu0 %v3266, 64
      %v3366 = vpop.permute.xlu0 %3365
      %3367 = vrot.lane.b32.xlu0 %v3267, 64
      %v3368 = vpop.permute.xlu0 %3367
      %3369 = vrot.lane.b32.xlu0 %v3268, 64
      %v3370 = vpop.permute.xlu0 %3369
      %3371 = vrot.lane.b32.xlu0 %v3269, 64
      %v3372 = vpop.permute.xlu0 %3371
      %3373 = vrot.lane.b32.xlu0 %v3270, 64
      %v3374 = vpop.permute.xlu0 %3373
      %3375 = vrot.lane.b32.xlu0 %v3271, 64
      %v3376 = vpop.permute.xlu0 %3375
      %3377 = vrot.lane.b32.xlu0 %v3272, 64
      %v3378 = vpop.permute.xlu0 %3377
      %3379 = vrot.lane.b32.xlu0 %v3273, 64
      %v3380 = vpop.permute.xlu0 %3379
      %3381 = vrot.lane.b32.xlu0 %v3274, 64
      %v3382 = vpop.permute.xlu0 %3381
      %3419 = vst.msk [vmem:[#allocation4] sm:$0xff] %vm825, %v3312
      %3420 = vst.msk [vmem:[#allocation4 + $0x18] sm:$0xff] %vm825, %v3314
      %3421 = vst.msk [vmem:[#allocation4 + $0x30] sm:$0xff] %vm825, %v3316
      %3422 = vst.msk [vmem:[#allocation4 + $0x48] sm:$0xff] %vm825, %v3318
      %3423 = vst.msk [vmem:[#allocation4 + $0x60] sm:$0xff] %vm825, %v3320
      %3424 = vst.msk [vmem:[#allocation4 + $0x78] sm:$0xff] %vm825, %v3322
      %3425 = vst.msk [vmem:[#allocation4 + $0x90] sm:$0xff] %vm825, %v3324
      %3426 = vst.msk [vmem:[#allocation4 + $0xa8] sm:$0xff] %vm825, %v3326
      %3427 = vst.msk [vmem:[#allocation4 + $0xc0] sm:$0xff] %vm825, %v3328
      %3428 = vst.msk [vmem:[#allocation4 + $0xd8] sm:$0xff] %vm825, %v3330
      %3429 = vst.msk [vmem:[#allocation4 + $0xf0] sm:$0xff] %vm825, %v3332
      %3430 = vst.msk [vmem:[#allocation4 + $0x108] sm:$0xff] %vm825, %v3334
      %3431 = vst.msk [vmem:[#allocation4 + $0x120] sm:$0xff] %vm825, %v3336
      %3432 = vst.msk [vmem:[#allocation4 + $0x138] sm:$0xff] %vm825, %v3338
      %3433 = vst.msk [vmem:[#allocation4 + $0x150] sm:$0xff] %vm825, %v3340
      %3434 = vst.msk [vmem:[#allocation4 + $0x168] sm:$0xff] %vm825, %v3342
      %3435 = vst.msk [vmem:[#allocation4 + $0x180] sm:$0xff] %vm825, %v3344
      %3436 = vst.msk [vmem:[#allocation4 + $0x198] sm:$0xff] %vm825, %v3346
      %3437 = vst.msk [vmem:[#allocation4 + $0x1b0] sm:$0xff] %vm825, %v3348
      %3438 = vst.msk [vmem:[#allocation4 + $0x1c8] sm:$0xff] %vm825, %v3350
      %3439 = vst.msk [vmem:[#allocation4 + $0x1e0] sm:$0xff] %vm825, %v3352
      %3440 = vst.msk [vmem:[#allocation4 + $0x1f8] sm:$0xff] %vm825, %v3354
      %3441 = vst.msk [vmem:[#allocation4 + $0x210] sm:$0xff] %vm825, %v3356
      %3442 = vst.msk [vmem:[#allocation4 + $0x228] sm:$0xff] %vm825, %v3358
      %3443 = vst.msk [vmem:[#allocation4 + $0x240] sm:$0xff] %vm825, %v3360
      %3444 = vst.msk [vmem:[#allocation4 + $0x258] sm:$0xff] %vm825, %v3362
      %3445 = vst.msk [vmem:[#allocation4 + $0x270] sm:$0xff] %vm825, %v3364
      %3446 = vst.msk [vmem:[#allocation4 + $0x288] sm:$0xff] %vm825, %v3366
      %3447 = vst.msk [vmem:[#allocation4 + $0x2a0] sm:$0xff] %vm825, %v3368
      %3448 = vst.msk [vmem:[#allocation4 + $0x2b8] sm:$0xff] %vm825, %v3370
      %3449 = vst.msk [vmem:[#allocation4 + $0x2d0] sm:$0xff] %vm825, %v3372
      %3450 = vst.msk [vmem:[#allocation4 + $0x2e8] sm:$0xff] %vm825, %v3374
      %3451 = vst.msk [vmem:[#allocation4 + $0x300] sm:$0xff] %vm825, %v3376
      %3452 = vst.msk [vmem:[#allocation4 + $0x318] sm:$0xff] %vm825, %v3378
      %3453 = vst.msk [vmem:[#allocation4 + $0x330] sm:$0xff] %vm825, %v3380
      %3454 = vst.msk [vmem:[#allocation4 + $0x348] sm:$0xff] %vm825, %v3382
      %v3455 = vld [vmem:[#allocation3 + $0x12] sm:$0xff]
      %v3456 = vld [vmem:[#allocation3 + $0x1a] sm:$0xff]
      %v3457 = vld [vmem:[#allocation3 + $0x22] sm:$0xff]
      %v3458 = vld [vmem:[#allocation3 + $0x2a] sm:$0xff]
      %v3459 = vld [vmem:[#allocation3 + $0x32] sm:$0xff]
      %v3460 = vld [vmem:[#allocation3 + $0x3a] sm:$0xff]
      %v3461 = vld [vmem:[#allocation3 + $0x42] sm:$0xff]
      %v3462 = vld [vmem:[#allocation3 + $0x4a] sm:$0xff]
      %v3463 = vld [vmem:[#allocation3 + $0x52] sm:$0xff]
      %v3464 = vld [vmem:[#allocation3 + $0x5a] sm:$0xff]
      %v3465 = vld [vmem:[#allocation3 + $0x62] sm:$0xff]
      %v3466 = vld [vmem:[#allocation3 + $0x6a] sm:$0xff]
      %v3467 = vld [vmem:[#allocation3 + $0x72] sm:$0xff]
      %v3468 = vld [vmem:[#allocation3 + $0x7a] sm:$0xff]
      %v3469 = vld [vmem:[#allocation3 + $0x82] sm:$0xff]
      %v3470 = vld [vmem:[#allocation3 + $0x8a] sm:$0xff]
      %v3471 = vld [vmem:[#allocation3 + $0x92] sm:$0xff]
      %v3472 = vld [vmem:[#allocation3 + $0x9a] sm:$0xff]
      %v3473 = vld [vmem:[#allocation3 + $0xa2] sm:$0xff]
      %v3474 = vld [vmem:[#allocation3 + $0xaa] sm:$0xff]
      %v3475 = vld [vmem:[#allocation3 + $0xb2] sm:$0xff]
      %v3476 = vld [vmem:[#allocation3 + $0xba] sm:$0xff]
      %v3477 = vld [vmem:[#allocation3 + $0xc2] sm:$0xff]
      %v3478 = vld [vmem:[#allocation3 + $0xca] sm:$0xff]
      %v3479 = vld [vmem:[#allocation3 + $0xd2] sm:$0xff]
      %v3480 = vld [vmem:[#allocation3 + $0xda] sm:$0xff]
      %v3481 = vld [vmem:[#allocation3 + $0xe2] sm:$0xff]
      %v3482 = vld [vmem:[#allocation3 + $0xea] sm:$0xff]
      %v3483 = vld [vmem:[#allocation3 + $0xf2] sm:$0xff]
      %v3484 = vld [vmem:[#allocation3 + $0xfa] sm:$0xff]
      %v3485 = vld [vmem:[#allocation3 + $0x102] sm:$0xff]
      %v3486 = vld [vmem:[#allocation3 + $0x10a] sm:$0xff]
      %v3487 = vld [vmem:[#allocation3 + $0x112] sm:$0xff]
      %v3488 = vld [vmem:[#allocation3 + $0x11a] sm:$0xff]
      %v3489 = vld [vmem:[#allocation3 + $0x122] sm:$0xff]
      %v3490 = vld [vmem:[#allocation3 + $0x12a] sm:$0xff]
      %3527 = vrot.lane.b32.xlu0 %v3455, 96
      %v3528 = vpop.permute.xlu0 %3527
      %3529 = vrot.lane.b32.xlu0 %v3456, 96
      %v3530 = vpop.permute.xlu0 %3529
      %3531 = vrot.lane.b32.xlu0 %v3457, 96
      %v3532 = vpop.permute.xlu0 %3531
      %3533 = vrot.lane.b32.xlu0 %v3458, 96
      %v3534 = vpop.permute.xlu0 %3533
      %3535 = vrot.lane.b32.xlu0 %v3459, 96
      %v3536 = vpop.permute.xlu0 %3535
      %3537 = vrot.lane.b32.xlu0 %v3460, 96
      %v3538 = vpop.permute.xlu0 %3537
      %3539 = vrot.lane.b32.xlu0 %v3461, 96
      %v3540 = vpop.permute.xlu0 %3539
      %3541 = vrot.lane.b32.xlu0 %v3462, 96
      %v3542 = vpop.permute.xlu0 %3541
      %3543 = vrot.lane.b32.xlu0 %v3463, 96
      %v3544 = vpop.permute.xlu0 %3543
      %3545 = vrot.lane.b32.xlu0 %v3464, 96
      %v3546 = vpop.permute.xlu0 %3545
      %3547 = vrot.lane.b32.xlu0 %v3465, 96
      %v3548 = vpop.permute.xlu0 %3547
      %3549 = vrot.lane.b32.xlu0 %v3466, 96
      %v3550 = vpop.permute.xlu0 %3549
      %3551 = vrot.lane.b32.xlu0 %v3467, 96
      %v3552 = vpop.permute.xlu0 %3551
      %3553 = vrot.lane.b32.xlu0 %v3468, 96
      %v3554 = vpop.permute.xlu0 %3553
      %3555 = vrot.lane.b32.xlu0 %v3469, 96
      %v3556 = vpop.permute.xlu0 %3555
      %3557 = vrot.lane.b32.xlu0 %v3470, 96
      %v3558 = vpop.permute.xlu0 %3557
      %3559 = vrot.lane.b32.xlu0 %v3471, 96
      %v3560 = vpop.permute.xlu0 %3559
      %3561 = vrot.lane.b32.xlu0 %v3472, 96
      %v3562 = vpop.permute.xlu0 %3561
      %3563 = vrot.lane.b32.xlu0 %v3473, 96
      %v3564 = vpop.permute.xlu0 %3563
      %3565 = vrot.lane.b32.xlu0 %v3474, 96
      %v3566 = vpop.permute.xlu0 %3565
      %3567 = vrot.lane.b32.xlu0 %v3475, 96
      %v3568 = vpop.permute.xlu0 %3567
      %3569 = vrot.lane.b32.xlu0 %v3476, 96
      %v3570 = vpop.permute.xlu0 %3569
      %3571 = vrot.lane.b32.xlu0 %v3477, 96
      %v3572 = vpop.permute.xlu0 %3571
      %3573 = vrot.lane.b32.xlu0 %v3478, 96
      %v3574 = vpop.permute.xlu0 %3573
      %3575 = vrot.lane.b32.xlu0 %v3479, 96
      %v3576 = vpop.permute.xlu0 %3575
      %3577 = vrot.lane.b32.xlu0 %v3480, 96
      %v3578 = vpop.permute.xlu0 %3577
      %3579 = vrot.lane.b32.xlu0 %v3481, 96
      %v3580 = vpop.permute.xlu0 %3579
      %3581 = vrot.lane.b32.xlu0 %v3482, 96
      %v3582 = vpop.permute.xlu0 %3581
      %3583 = vrot.lane.b32.xlu0 %v3483, 96
      %v3584 = vpop.permute.xlu0 %3583
      %3585 = vrot.lane.b32.xlu0 %v3484, 96
      %v3586 = vpop.permute.xlu0 %3585
      %3587 = vrot.lane.b32.xlu0 %v3485, 96
      %v3588 = vpop.permute.xlu0 %3587
      %3589 = vrot.lane.b32.xlu0 %v3486, 96
      %v3590 = vpop.permute.xlu0 %3589
      %3591 = vrot.lane.b32.xlu0 %v3487, 96
      %v3592 = vpop.permute.xlu0 %3591
      %3593 = vrot.lane.b32.xlu0 %v3488, 96
      %v3594 = vpop.permute.xlu0 %3593
      %3595 = vrot.lane.b32.xlu0 %v3489, 96
      %v3596 = vpop.permute.xlu0 %3595
      %3597 = vrot.lane.b32.xlu0 %v3490, 96
      %v3598 = vpop.permute.xlu0 %3597
      %3635 = vst.msk [vmem:[#allocation4] sm:$0xff] %vm1042, %v3528
      %3636 = vst.msk [vmem:[#allocation4 + $0x18] sm:$0xff] %vm1042, %v3530
      %3637 = vst.msk [vmem:[#allocation4 + $0x30] sm:$0xff] %vm1042, %v3532
      %3638 = vst.msk [vmem:[#allocation4 + $0x48] sm:$0xff] %vm1042, %v3534
      %3639 = vst.msk [vmem:[#allocation4 + $0x60] sm:$0xff] %vm1042, %v3536
      %3640 = vst.msk [vmem:[#allocation4 + $0x78] sm:$0xff] %vm1042, %v3538
      %3641 = vst.msk [vmem:[#allocation4 + $0x90] sm:$0xff] %vm1042, %v3540
      %3642 = vst.msk [vmem:[#allocation4 + $0xa8] sm:$0xff] %vm1042, %v3542
      %3643 = vst.msk [vmem:[#allocation4 + $0xc0] sm:$0xff] %vm1042, %v3544
      %3644 = vst.msk [vmem:[#allocation4 + $0xd8] sm:$0xff] %vm1042, %v3546
      %3645 = vst.msk [vmem:[#allocation4 + $0xf0] sm:$0xff] %vm1042, %v3548
      %3646 = vst.msk [vmem:[#allocation4 + $0x108] sm:$0xff] %vm1042, %v3550
      %3647 = vst.msk [vmem:[#allocation4 + $0x120] sm:$0xff] %vm1042, %v3552
      %3648 = vst.msk [vmem:[#allocation4 + $0x138] sm:$0xff] %vm1042, %v3554
      %3649 = vst.msk [vmem:[#allocation4 + $0x150] sm:$0xff] %vm1042, %v3556
      %3650 = vst.msk [vmem:[#allocation4 + $0x168] sm:$0xff] %vm1042, %v3558
      %3651 = vst.msk [vmem:[#allocation4 + $0x180] sm:$0xff] %vm1042, %v3560
      %3652 = vst.msk [vmem:[#allocation4 + $0x198] sm:$0xff] %vm1042, %v3562
      %3653 = vst.msk [vmem:[#allocation4 + $0x1b0] sm:$0xff] %vm1042, %v3564
      %3654 = vst.msk [vmem:[#allocation4 + $0x1c8] sm:$0xff] %vm1042, %v3566
      %3655 = vst.msk [vmem:[#allocation4 + $0x1e0] sm:$0xff] %vm1042, %v3568
      %3656 = vst.msk [vmem:[#allocation4 + $0x1f8] sm:$0xff] %vm1042, %v3570
      %3657 = vst.msk [vmem:[#allocation4 + $0x210] sm:$0xff] %vm1042, %v3572
      %3658 = vst.msk [vmem:[#allocation4 + $0x228] sm:$0xff] %vm1042, %v3574
      %3659 = vst.msk [vmem:[#allocation4 + $0x240] sm:$0xff] %vm1042, %v3576
      %3660 = vst.msk [vmem:[#allocation4 + $0x258] sm:$0xff] %vm1042, %v3578
      %3661 = vst.msk [vmem:[#allocation4 + $0x270] sm:$0xff] %vm1042, %v3580
      %3662 = vst.msk [vmem:[#allocation4 + $0x288] sm:$0xff] %vm1042, %v3582
      %3663 = vst.msk [vmem:[#allocation4 + $0x2a0] sm:$0xff] %vm1042, %v3584
      %3664 = vst.msk [vmem:[#allocation4 + $0x2b8] sm:$0xff] %vm1042, %v3586
      %3665 = vst.msk [vmem:[#allocation4 + $0x2d0] sm:$0xff] %vm1042, %v3588
      %3666 = vst.msk [vmem:[#allocation4 + $0x2e8] sm:$0xff] %vm1042, %v3590
      %3667 = vst.msk [vmem:[#allocation4 + $0x300] sm:$0xff] %vm1042, %v3592
      %3668 = vst.msk [vmem:[#allocation4 + $0x318] sm:$0xff] %vm1042, %v3594
      %3669 = vst.msk [vmem:[#allocation4 + $0x330] sm:$0xff] %vm1042, %v3596
      %3670 = vst.msk [vmem:[#allocation4 + $0x348] sm:$0xff] %vm1042, %v3598
      %v3671 = vld [vmem:[#allocation3 + $0x13] sm:$0xff]
      %v3672 = vld [vmem:[#allocation3 + $0x1b] sm:$0xff]
      %v3673 = vld [vmem:[#allocation3 + $0x23] sm:$0xff]
      %v3674 = vld [vmem:[#allocation3 + $0x2b] sm:$0xff]
      %v3675 = vld [vmem:[#allocation3 + $0x33] sm:$0xff]
      %v3676 = vld [vmem:[#allocation3 + $0x3b] sm:$0xff]
      %v3677 = vld [vmem:[#allocation3 + $0x43] sm:$0xff]
      %v3678 = vld [vmem:[#allocation3 + $0x4b] sm:$0xff]
      %v3679 = vld [vmem:[#allocation3 + $0x53] sm:$0xff]
      %v3680 = vld [vmem:[#allocation3 + $0x5b] sm:$0xff]
      %v3681 = vld [vmem:[#allocation3 + $0x63] sm:$0xff]
      %v3682 = vld [vmem:[#allocation3 + $0x6b] sm:$0xff]
      %v3683 = vld [vmem:[#allocation3 + $0x73] sm:$0xff]
      %v3684 = vld [vmem:[#allocation3 + $0x7b] sm:$0xff]
      %v3685 = vld [vmem:[#allocation3 + $0x83] sm:$0xff]
      %v3686 = vld [vmem:[#allocation3 + $0x8b] sm:$0xff]
      %v3687 = vld [vmem:[#allocation3 + $0x93] sm:$0xff]
      %v3688 = vld [vmem:[#allocation3 + $0x9b] sm:$0xff]
      %v3689 = vld [vmem:[#allocation3 + $0xa3] sm:$0xff]
      %v3690 = vld [vmem:[#allocation3 + $0xab] sm:$0xff]
      %v3691 = vld [vmem:[#allocation3 + $0xb3] sm:$0xff]
      %v3692 = vld [vmem:[#allocation3 + $0xbb] sm:$0xff]
      %v3693 = vld [vmem:[#allocation3 + $0xc3] sm:$0xff]
      %v3694 = vld [vmem:[#allocation3 + $0xcb] sm:$0xff]
      %v3695 = vld [vmem:[#allocation3 + $0xd3] sm:$0xff]
      %v3696 = vld [vmem:[#allocation3 + $0xdb] sm:$0xff]
      %v3697 = vld [vmem:[#allocation3 + $0xe3] sm:$0xff]
      %v3698 = vld [vmem:[#allocation3 + $0xeb] sm:$0xff]
      %v3699 = vld [vmem:[#allocation3 + $0xf3] sm:$0xff]
      %v3700 = vld [vmem:[#allocation3 + $0xfb] sm:$0xff]
      %v3701 = vld [vmem:[#allocation3 + $0x103] sm:$0xff]
      %v3702 = vld [vmem:[#allocation3 + $0x10b] sm:$0xff]
      %v3703 = vld [vmem:[#allocation3 + $0x113] sm:$0xff]
      %v3704 = vld [vmem:[#allocation3 + $0x11b] sm:$0xff]
      %v3705 = vld [vmem:[#allocation3 + $0x123] sm:$0xff]
      %v3706 = vld [vmem:[#allocation3 + $0x12b] sm:$0xff]
      %3707 = vst.msk [vmem:[#allocation4 + $0x8] sm:$0xff] %vm252, %v3671
      %3708 = vst.msk [vmem:[#allocation4 + $0x20] sm:$0xff] %vm252, %v3672
      %3709 = vst.msk [vmem:[#allocation4 + $0x38] sm:$0xff] %vm252, %v3673
      %3710 = vst.msk [vmem:[#allocation4 + $0x50] sm:$0xff] %vm252, %v3674
      %3711 = vst.msk [vmem:[#allocation4 + $0x68] sm:$0xff] %vm252, %v3675
      %3712 = vst.msk [vmem:[#allocation4 + $0x80] sm:$0xff] %vm252, %v3676
      %3713 = vst.msk [vmem:[#allocation4 + $0x98] sm:$0xff] %vm252, %v3677
      %3714 = vst.msk [vmem:[#allocation4 + $0xb0] sm:$0xff] %vm252, %v3678
      %3715 = vst.msk [vmem:[#allocation4 + $0xc8] sm:$0xff] %vm252, %v3679
      %3716 = vst.msk [vmem:[#allocation4 + $0xe0] sm:$0xff] %vm252, %v3680
      %3717 = vst.msk [vmem:[#allocation4 + $0xf8] sm:$0xff] %vm252, %v3681
      %3718 = vst.msk [vmem:[#allocation4 + $0x110] sm:$0xff] %vm252, %v3682
      %3719 = vst.msk [vmem:[#allocation4 + $0x128] sm:$0xff] %vm252, %v3683
      %3720 = vst.msk [vmem:[#allocation4 + $0x140] sm:$0xff] %vm252, %v3684
      %3721 = vst.msk [vmem:[#allocation4 + $0x158] sm:$0xff] %vm252, %v3685
      %3722 = vst.msk [vmem:[#allocation4 + $0x170] sm:$0xff] %vm252, %v3686
      %3723 = vst.msk [vmem:[#allocation4 + $0x188] sm:$0xff] %vm252, %v3687
      %3724 = vst.msk [vmem:[#allocation4 + $0x1a0] sm:$0xff] %vm252, %v3688
      %3725 = vst.msk [vmem:[#allocation4 + $0x1b8] sm:$0xff] %vm252, %v3689
      %3726 = vst.msk [vmem:[#allocation4 + $0x1d0] sm:$0xff] %vm252, %v3690
      %3727 = vst.msk [vmem:[#allocation4 + $0x1e8] sm:$0xff] %vm252, %v3691
      %3728 = vst.msk [vmem:[#allocation4 + $0x200] sm:$0xff] %vm252, %v3692
      %3729 = vst.msk [vmem:[#allocation4 + $0x218] sm:$0xff] %vm252, %v3693
      %3730 = vst.msk [vmem:[#allocation4 + $0x230] sm:$0xff] %vm252, %v3694
      %3731 = vst.msk [vmem:[#allocation4 + $0x248] sm:$0xff] %vm252, %v3695
      %3732 = vst.msk [vmem:[#allocation4 + $0x260] sm:$0xff] %vm252, %v3696
      %3733 = vst.msk [vmem:[#allocation4 + $0x278] sm:$0xff] %vm252, %v3697
      %3734 = vst.msk [vmem:[#allocation4 + $0x290] sm:$0xff] %vm252, %v3698
      %3735 = vst.msk [vmem:[#allocation4 + $0x2a8] sm:$0xff] %vm252, %v3699
      %3736 = vst.msk [vmem:[#allocation4 + $0x2c0] sm:$0xff] %vm252, %v3700
      %3737 = vst.msk [vmem:[#allocation4 + $0x2d8] sm:$0xff] %vm252, %v3701
      %3738 = vst.msk [vmem:[#allocation4 + $0x2f0] sm:$0xff] %vm252, %v3702
      %3739 = vst.msk [vmem:[#allocation4 + $0x308] sm:$0xff] %vm252, %v3703
      %3740 = vst.msk [vmem:[#allocation4 + $0x320] sm:$0xff] %vm252, %v3704
      %3741 = vst.msk [vmem:[#allocation4 + $0x338] sm:$0xff] %vm252, %v3705
      %3742 = vst.msk [vmem:[#allocation4 + $0x350] sm:$0xff] %vm252, %v3706
      %v3743 = vld [vmem:[#allocation3 + $0x14] sm:$0xff]
      %v3744 = vld [vmem:[#allocation3 + $0x1c] sm:$0xff]
      %v3745 = vld [vmem:[#allocation3 + $0x24] sm:$0xff]
      %v3746 = vld [vmem:[#allocation3 + $0x2c] sm:$0xff]
      %v3747 = vld [vmem:[#allocation3 + $0x34] sm:$0xff]
      %v3748 = vld [vmem:[#allocation3 + $0x3c] sm:$0xff]
      %v3749 = vld [vmem:[#allocation3 + $0x44] sm:$0xff]
      %v3750 = vld [vmem:[#allocation3 + $0x4c] sm:$0xff]
      %v3751 = vld [vmem:[#allocation3 + $0x54] sm:$0xff]
      %v3752 = vld [vmem:[#allocation3 + $0x5c] sm:$0xff]
      %v3753 = vld [vmem:[#allocation3 + $0x64] sm:$0xff]
      %v3754 = vld [vmem:[#allocation3 + $0x6c] sm:$0xff]
      %v3755 = vld [vmem:[#allocation3 + $0x74] sm:$0xff]
      %v3756 = vld [vmem:[#allocation3 + $0x7c] sm:$0xff]
      %v3757 = vld [vmem:[#allocation3 + $0x84] sm:$0xff]
      %v3758 = vld [vmem:[#allocation3 + $0x8c] sm:$0xff]
      %v3759 = vld [vmem:[#allocation3 + $0x94] sm:$0xff]
      %v3760 = vld [vmem:[#allocation3 + $0x9c] sm:$0xff]
      %v3761 = vld [vmem:[#allocation3 + $0xa4] sm:$0xff]
      %v3762 = vld [vmem:[#allocation3 + $0xac] sm:$0xff]
      %v3763 = vld [vmem:[#allocation3 + $0xb4] sm:$0xff]
      %v3764 = vld [vmem:[#allocation3 + $0xbc] sm:$0xff]
      %v3765 = vld [vmem:[#allocation3 + $0xc4] sm:$0xff]
      %v3766 = vld [vmem:[#allocation3 + $0xcc] sm:$0xff]
      %v3767 = vld [vmem:[#allocation3 + $0xd4] sm:$0xff]
      %v3768 = vld [vmem:[#allocation3 + $0xdc] sm:$0xff]
      %v3769 = vld [vmem:[#allocation3 + $0xe4] sm:$0xff]
      %v3770 = vld [vmem:[#allocation3 + $0xec] sm:$0xff]
      %v3771 = vld [vmem:[#allocation3 + $0xf4] sm:$0xff]
      %v3772 = vld [vmem:[#allocation3 + $0xfc] sm:$0xff]
      %v3773 = vld [vmem:[#allocation3 + $0x104] sm:$0xff]
      %v3774 = vld [vmem:[#allocation3 + $0x10c] sm:$0xff]
      %v3775 = vld [vmem:[#allocation3 + $0x114] sm:$0xff]
      %v3776 = vld [vmem:[#allocation3 + $0x11c] sm:$0xff]
      %v3777 = vld [vmem:[#allocation3 + $0x124] sm:$0xff]
      %v3778 = vld [vmem:[#allocation3 + $0x12c] sm:$0xff]
      %3815 = vrot.lane.b32.xlu0 %v3743, 32
      %v3816 = vpop.permute.xlu0 %3815
      %3817 = vrot.lane.b32.xlu0 %v3744, 32
      %v3818 = vpop.permute.xlu0 %3817
      %3819 = vrot.lane.b32.xlu0 %v3745, 32
      %v3820 = vpop.permute.xlu0 %3819
      %3821 = vrot.lane.b32.xlu0 %v3746, 32
      %v3822 = vpop.permute.xlu0 %3821
      %3823 = vrot.lane.b32.xlu0 %v3747, 32
      %v3824 = vpop.permute.xlu0 %3823
      %3825 = vrot.lane.b32.xlu0 %v3748, 32
      %v3826 = vpop.permute.xlu0 %3825
      %3827 = vrot.lane.b32.xlu0 %v3749, 32
      %v3828 = vpop.permute.xlu0 %3827
      %3829 = vrot.lane.b32.xlu0 %v3750, 32
      %v3830 = vpop.permute.xlu0 %3829
      %3831 = vrot.lane.b32.xlu0 %v3751, 32
      %v3832 = vpop.permute.xlu0 %3831
      %3833 = vrot.lane.b32.xlu0 %v3752, 32
      %v3834 = vpop.permute.xlu0 %3833
      %3835 = vrot.lane.b32.xlu0 %v3753, 32
      %v3836 = vpop.permute.xlu0 %3835
      %3837 = vrot.lane.b32.xlu0 %v3754, 32
      %v3838 = vpop.permute.xlu0 %3837
      %3839 = vrot.lane.b32.xlu0 %v3755, 32
      %v3840 = vpop.permute.xlu0 %3839
      %3841 = vrot.lane.b32.xlu0 %v3756, 32
      %v3842 = vpop.permute.xlu0 %3841
      %3843 = vrot.lane.b32.xlu0 %v3757, 32
      %v3844 = vpop.permute.xlu0 %3843
      %3845 = vrot.lane.b32.xlu0 %v3758, 32
      %v3846 = vpop.permute.xlu0 %3845
      %3847 = vrot.lane.b32.xlu0 %v3759, 32
      %v3848 = vpop.permute.xlu0 %3847
      %3849 = vrot.lane.b32.xlu0 %v3760, 32
      %v3850 = vpop.permute.xlu0 %3849
      %3851 = vrot.lane.b32.xlu0 %v3761, 32
      %v3852 = vpop.permute.xlu0 %3851
      %3853 = vrot.lane.b32.xlu0 %v3762, 32
      %v3854 = vpop.permute.xlu0 %3853
      %3855 = vrot.lane.b32.xlu0 %v3763, 32
      %v3856 = vpop.permute.xlu0 %3855
      %3857 = vrot.lane.b32.xlu0 %v3764, 32
      %v3858 = vpop.permute.xlu0 %3857
      %3859 = vrot.lane.b32.xlu0 %v3765, 32
      %v3860 = vpop.permute.xlu0 %3859
      %3861 = vrot.lane.b32.xlu0 %v3766, 32
      %v3862 = vpop.permute.xlu0 %3861
      %3863 = vrot.lane.b32.xlu0 %v3767, 32
      %v3864 = vpop.permute.xlu0 %3863
      %3865 = vrot.lane.b32.xlu0 %v3768, 32
      %v3866 = vpop.permute.xlu0 %3865
      %3867 = vrot.lane.b32.xlu0 %v3769, 32
      %v3868 = vpop.permute.xlu0 %3867
      %3869 = vrot.lane.b32.xlu0 %v3770, 32
      %v3870 = vpop.permute.xlu0 %3869
      %3871 = vrot.lane.b32.xlu0 %v3771, 32
      %v3872 = vpop.permute.xlu0 %3871
      %3873 = vrot.lane.b32.xlu0 %v3772, 32
      %v3874 = vpop.permute.xlu0 %3873
      %3875 = vrot.lane.b32.xlu0 %v3773, 32
      %v3876 = vpop.permute.xlu0 %3875
      %3877 = vrot.lane.b32.xlu0 %v3774, 32
      %v3878 = vpop.permute.xlu0 %3877
      %3879 = vrot.lane.b32.xlu0 %v3775, 32
      %v3880 = vpop.permute.xlu0 %3879
      %3881 = vrot.lane.b32.xlu0 %v3776, 32
      %v3882 = vpop.permute.xlu0 %3881
      %3883 = vrot.lane.b32.xlu0 %v3777, 32
      %v3884 = vpop.permute.xlu0 %3883
      %3885 = vrot.lane.b32.xlu0 %v3778, 32
      %v3886 = vpop.permute.xlu0 %3885
      %3923 = vst.msk [vmem:[#allocation4 + $0x8] sm:$0xff] %vm608, %v3816
      %3924 = vst.msk [vmem:[#allocation4 + $0x20] sm:$0xff] %vm608, %v3818
      %3925 = vst.msk [vmem:[#allocation4 + $0x38] sm:$0xff] %vm608, %v3820
      %3926 = vst.msk [vmem:[#allocation4 + $0x50] sm:$0xff] %vm608, %v3822
      %3927 = vst.msk [vmem:[#allocation4 + $0x68] sm:$0xff] %vm608, %v3824
      %3928 = vst.msk [vmem:[#allocation4 + $0x80] sm:$0xff] %vm608, %v3826
      %3929 = vst.msk [vmem:[#allocation4 + $0x98] sm:$0xff] %vm608, %v3828
      %3930 = vst.msk [vmem:[#allocation4 + $0xb0] sm:$0xff] %vm608, %v3830
      %3931 = vst.msk [vmem:[#allocation4 + $0xc8] sm:$0xff] %vm608, %v3832
      %3932 = vst.msk [vmem:[#allocation4 + $0xe0] sm:$0xff] %vm608, %v3834
      %3933 = vst.msk [vmem:[#allocation4 + $0xf8] sm:$0xff] %vm608, %v3836
      %3934 = vst.msk [vmem:[#allocation4 + $0x110] sm:$0xff] %vm608, %v3838
      %3935 = vst.msk [vmem:[#allocation4 + $0x128] sm:$0xff] %vm608, %v3840
      %3936 = vst.msk [vmem:[#allocation4 + $0x140] sm:$0xff] %vm608, %v3842
      %3937 = vst.msk [vmem:[#allocation4 + $0x158] sm:$0xff] %vm608, %v3844
      %3938 = vst.msk [vmem:[#allocation4 + $0x170] sm:$0xff] %vm608, %v3846
      %3939 = vst.msk [vmem:[#allocation4 + $0x188] sm:$0xff] %vm608, %v3848
      %3940 = vst.msk [vmem:[#allocation4 + $0x1a0] sm:$0xff] %vm608, %v3850
      %3941 = vst.msk [vmem:[#allocation4 + $0x1b8] sm:$0xff] %vm608, %v3852
      %3942 = vst.msk [vmem:[#allocation4 + $0x1d0] sm:$0xff] %vm608, %v3854
      %3943 = vst.msk [vmem:[#allocation4 + $0x1e8] sm:$0xff] %vm608, %v3856
      %3944 = vst.msk [vmem:[#allocation4 + $0x200] sm:$0xff] %vm608, %v3858
      %3945 = vst.msk [vmem:[#allocation4 + $0x218] sm:$0xff] %vm608, %v3860
      %3946 = vst.msk [vmem:[#allocation4 + $0x230] sm:$0xff] %vm608, %v3862
      %3947 = vst.msk [vmem:[#allocation4 + $0x248] sm:$0xff] %vm608, %v3864
      %3948 = vst.msk [vmem:[#allocation4 + $0x260] sm:$0xff] %vm608, %v3866
      %3949 = vst.msk [vmem:[#allocation4 + $0x278] sm:$0xff] %vm608, %v3868
      %3950 = vst.msk [vmem:[#allocation4 + $0x290] sm:$0xff] %vm608, %v3870
      %3951 = vst.msk [vmem:[#allocation4 + $0x2a8] sm:$0xff] %vm608, %v3872
      %3952 = vst.msk [vmem:[#allocation4 + $0x2c0] sm:$0xff] %vm608, %v3874
      %3953 = vst.msk [vmem:[#allocation4 + $0x2d8] sm:$0xff] %vm608, %v3876
      %3954 = vst.msk [vmem:[#allocation4 + $0x2f0] sm:$0xff] %vm608, %v3878
      %3955 = vst.msk [vmem:[#allocation4 + $0x308] sm:$0xff] %vm608, %v3880
      %3956 = vst.msk [vmem:[#allocation4 + $0x320] sm:$0xff] %vm608, %v3882
      %3957 = vst.msk [vmem:[#allocation4 + $0x338] sm:$0xff] %vm608, %v3884
      %3958 = vst.msk [vmem:[#allocation4 + $0x350] sm:$0xff] %vm608, %v3886
      %v3959 = vld [vmem:[#allocation3 + $0x24] sm:$0xff]
      %v3960 = vld [vmem:[#allocation3 + $0x2c] sm:$0xff]
      %v3961 = vld [vmem:[#allocation3 + $0x34] sm:$0xff]
      %v3962 = vld [vmem:[#allocation3 + $0x3c] sm:$0xff]
      %v3963 = vld [vmem:[#allocation3 + $0x44] sm:$0xff]
      %v3964 = vld [vmem:[#allocation3 + $0x4c] sm:$0xff]
      %v3965 = vld [vmem:[#allocation3 + $0x54] sm:$0xff]
      %v3966 = vld [vmem:[#allocation3 + $0x5c] sm:$0xff]
      %v3967 = vld [vmem:[#allocation3 + $0x64] sm:$0xff]
      %v3968 = vld [vmem:[#allocation3 + $0x6c] sm:$0xff]
      %v3969 = vld [vmem:[#allocation3 + $0x74] sm:$0xff]
      %v3970 = vld [vmem:[#allocation3 + $0x7c] sm:$0xff]
      %v3971 = vld [vmem:[#allocation3 + $0x84] sm:$0xff]
      %v3972 = vld [vmem:[#allocation3 + $0x8c] sm:$0xff]
      %v3973 = vld [vmem:[#allocation3 + $0x94] sm:$0xff]
      %v3974 = vld [vmem:[#allocation3 + $0x9c] sm:$0xff]
      %v3975 = vld [vmem:[#allocation3 + $0xa4] sm:$0xff]
      %v3976 = vld [vmem:[#allocation3 + $0xac] sm:$0xff]
      %v3977 = vld [vmem:[#allocation3 + $0xb4] sm:$0xff]
      %v3978 = vld [vmem:[#allocation3 + $0xbc] sm:$0xff]
      %v3979 = vld [vmem:[#allocation3 + $0xc4] sm:$0xff]
      %v3980 = vld [vmem:[#allocation3 + $0xcc] sm:$0xff]
      %v3981 = vld [vmem:[#allocation3 + $0xd4] sm:$0xff]
      %v3982 = vld [vmem:[#allocation3 + $0xdc] sm:$0xff]
      %v3983 = vld [vmem:[#allocation3 + $0xe4] sm:$0xff]
      %v3984 = vld [vmem:[#allocation3 + $0xec] sm:$0xff]
      %v3985 = vld [vmem:[#allocation3 + $0xf4] sm:$0xff]
      %v3986 = vld [vmem:[#allocation3 + $0xfc] sm:$0xff]
      %v3987 = vld [vmem:[#allocation3 + $0x104] sm:$0xff]
      %v3988 = vld [vmem:[#allocation3 + $0x10c] sm:$0xff]
      %v3989 = vld [vmem:[#allocation3 + $0x114] sm:$0xff]
      %v3990 = vld [vmem:[#allocation3 + $0x11c] sm:$0xff]
      %v3991 = vld [vmem:[#allocation3 + $0x124] sm:$0xff]
      %v3992 = vld [vmem:[#allocation3 + $0x12c] sm:$0xff]
      %v3993 = vld [vmem:[#allocation3 + $0x134] sm:$0xff]
      %v3994 = vld [vmem:[#allocation3 + $0x13c] sm:$0xff]
      %4031 = vrot.lane.b32.xlu0 %v3959, 64
      %v4032 = vpop.permute.xlu0 %4031
      %4033 = vrot.lane.b32.xlu0 %v3960, 64
      %v4034 = vpop.permute.xlu0 %4033
      %4035 = vrot.lane.b32.xlu0 %v3961, 64
      %v4036 = vpop.permute.xlu0 %4035
      %4037 = vrot.lane.b32.xlu0 %v3962, 64
      %v4038 = vpop.permute.xlu0 %4037
      %4039 = vrot.lane.b32.xlu0 %v3963, 64
      %v4040 = vpop.permute.xlu0 %4039
      %4041 = vrot.lane.b32.xlu0 %v3964, 64
      %v4042 = vpop.permute.xlu0 %4041
      %4043 = vrot.lane.b32.xlu0 %v3965, 64
      %v4044 = vpop.permute.xlu0 %4043
      %4045 = vrot.lane.b32.xlu0 %v3966, 64
      %v4046 = vpop.permute.xlu0 %4045
      %4047 = vrot.lane.b32.xlu0 %v3967, 64
      %v4048 = vpop.permute.xlu0 %4047
      %4049 = vrot.lane.b32.xlu0 %v3968, 64
      %v4050 = vpop.permute.xlu0 %4049
      %4051 = vrot.lane.b32.xlu0 %v3969, 64
      %v4052 = vpop.permute.xlu0 %4051
      %4053 = vrot.lane.b32.xlu0 %v3970, 64
      %v4054 = vpop.permute.xlu0 %4053
      %4055 = vrot.lane.b32.xlu0 %v3971, 64
      %v4056 = vpop.permute.xlu0 %4055
      %4057 = vrot.lane.b32.xlu0 %v3972, 64
      %v4058 = vpop.permute.xlu0 %4057
      %4059 = vrot.lane.b32.xlu0 %v3973, 64
      %v4060 = vpop.permute.xlu0 %4059
      %4061 = vrot.lane.b32.xlu0 %v3974, 64
      %v4062 = vpop.permute.xlu0 %4061
      %4063 = vrot.lane.b32.xlu0 %v3975, 64
      %v4064 = vpop.permute.xlu0 %4063
      %4065 = vrot.lane.b32.xlu0 %v3976, 64
      %v4066 = vpop.permute.xlu0 %4065
      %4067 = vrot.lane.b32.xlu0 %v3977, 64
      %v4068 = vpop.permute.xlu0 %4067
      %4069 = vrot.lane.b32.xlu0 %v3978, 64
      %v4070 = vpop.permute.xlu0 %4069
      %4071 = vrot.lane.b32.xlu0 %v3979, 64
      %v4072 = vpop.permute.xlu0 %4071
      %4073 = vrot.lane.b32.xlu0 %v3980, 64
      %v4074 = vpop.permute.xlu0 %4073
      %4075 = vrot.lane.b32.xlu0 %v3981, 64
      %v4076 = vpop.permute.xlu0 %4075
      %4077 = vrot.lane.b32.xlu0 %v3982, 64
      %v4078 = vpop.permute.xlu0 %4077
      %4079 = vrot.lane.b32.xlu0 %v3983, 64
      %v4080 = vpop.permute.xlu0 %4079
      %4081 = vrot.lane.b32.xlu0 %v3984, 64
      %v4082 = vpop.permute.xlu0 %4081
      %4083 = vrot.lane.b32.xlu0 %v3985, 64
      %v4084 = vpop.permute.xlu0 %4083
      %4085 = vrot.lane.b32.xlu0 %v3986, 64
      %v4086 = vpop.permute.xlu0 %4085
      %4087 = vrot.lane.b32.xlu0 %v3987, 64
      %v4088 = vpop.permute.xlu0 %4087
      %4089 = vrot.lane.b32.xlu0 %v3988, 64
      %v4090 = vpop.permute.xlu0 %4089
      %4091 = vrot.lane.b32.xlu0 %v3989, 64
      %v4092 = vpop.permute.xlu0 %4091
      %4093 = vrot.lane.b32.xlu0 %v3990, 64
      %v4094 = vpop.permute.xlu0 %4093
      %4095 = vrot.lane.b32.xlu0 %v3991, 64
      %v4096 = vpop.permute.xlu0 %4095
      %4097 = vrot.lane.b32.xlu0 %v3992, 64
      %v4098 = vpop.permute.xlu0 %4097
      %4099 = vrot.lane.b32.xlu0 %v3993, 64
      %v4100 = vpop.permute.xlu0 %4099
      %4101 = vrot.lane.b32.xlu0 %v3994, 64
      %v4102 = vpop.permute.xlu0 %4101
      %4139 = vst.msk [vmem:[#allocation4 + $0x8] sm:$0xff] %vm825, %v4032
      %4140 = vst.msk [vmem:[#allocation4 + $0x20] sm:$0xff] %vm825, %v4034
      %4141 = vst.msk [vmem:[#allocation4 + $0x38] sm:$0xff] %vm825, %v4036
      %4142 = vst.msk [vmem:[#allocation4 + $0x50] sm:$0xff] %vm825, %v4038
      %4143 = vst.msk [vmem:[#allocation4 + $0x68] sm:$0xff] %vm825, %v4040
      %4144 = vst.msk [vmem:[#allocation4 + $0x80] sm:$0xff] %vm825, %v4042
      %4145 = vst.msk [vmem:[#allocation4 + $0x98] sm:$0xff] %vm825, %v4044
      %4146 = vst.msk [vmem:[#allocation4 + $0xb0] sm:$0xff] %vm825, %v4046
      %4147 = vst.msk [vmem:[#allocation4 + $0xc8] sm:$0xff] %vm825, %v4048
      %4148 = vst.msk [vmem:[#allocation4 + $0xe0] sm:$0xff] %vm825, %v4050
      %4149 = vst.msk [vmem:[#allocation4 + $0xf8] sm:$0xff] %vm825, %v4052
      %4150 = vst.msk [vmem:[#allocation4 + $0x110] sm:$0xff] %vm825, %v4054
      %4151 = vst.msk [vmem:[#allocation4 + $0x128] sm:$0xff] %vm825, %v4056
      %4152 = vst.msk [vmem:[#allocation4 + $0x140] sm:$0xff] %vm825, %v4058
      %4153 = vst.msk [vmem:[#allocation4 + $0x158] sm:$0xff] %vm825, %v4060
      %4154 = vst.msk [vmem:[#allocation4 + $0x170] sm:$0xff] %vm825, %v4062
      %4155 = vst.msk [vmem:[#allocation4 + $0x188] sm:$0xff] %vm825, %v4064
      %4156 = vst.msk [vmem:[#allocation4 + $0x1a0] sm:$0xff] %vm825, %v4066
      %4157 = vst.msk [vmem:[#allocation4 + $0x1b8] sm:$0xff] %vm825, %v4068
      %4158 = vst.msk [vmem:[#allocation4 + $0x1d0] sm:$0xff] %vm825, %v4070
      %4159 = vst.msk [vmem:[#allocation4 + $0x1e8] sm:$0xff] %vm825, %v4072
      %4160 = vst.msk [vmem:[#allocation4 + $0x200] sm:$0xff] %vm825, %v4074
      %4161 = vst.msk [vmem:[#allocation4 + $0x218] sm:$0xff] %vm825, %v4076
      %4162 = vst.msk [vmem:[#allocation4 + $0x230] sm:$0xff] %vm825, %v4078
      %4163 = vst.msk [vmem:[#allocation4 + $0x248] sm:$0xff] %vm825, %v4080
      %4164 = vst.msk [vmem:[#allocation4 + $0x260] sm:$0xff] %vm825, %v4082
      %4165 = vst.msk [vmem:[#allocation4 + $0x278] sm:$0xff] %vm825, %v4084
      %4166 = vst.msk [vmem:[#allocation4 + $0x290] sm:$0xff] %vm825, %v4086
      %4167 = vst.msk [vmem:[#allocation4 + $0x2a8] sm:$0xff] %vm825, %v4088
      %4168 = vst.msk [vmem:[#allocation4 + $0x2c0] sm:$0xff] %vm825, %v4090
      %4169 = vst.msk [vmem:[#allocation4 + $0x2d8] sm:$0xff] %vm825, %v4092
      %4170 = vst.msk [vmem:[#allocation4 + $0x2f0] sm:$0xff] %vm825, %v4094
      %4171 = vst.msk [vmem:[#allocation4 + $0x308] sm:$0xff] %vm825, %v4096
      %4172 = vst.msk [vmem:[#allocation4 + $0x320] sm:$0xff] %vm825, %v4098
      %4173 = vst.msk [vmem:[#allocation4 + $0x338] sm:$0xff] %vm825, %v4100
      %4174 = vst.msk [vmem:[#allocation4 + $0x350] sm:$0xff] %vm825, %v4102
      %v4175 = vld [vmem:[#allocation3 + $0x25] sm:$0xff]
      %v4176 = vld [vmem:[#allocation3 + $0x2d] sm:$0xff]
      %v4177 = vld [vmem:[#allocation3 + $0x35] sm:$0xff]
      %v4178 = vld [vmem:[#allocation3 + $0x3d] sm:$0xff]
      %v4179 = vld [vmem:[#allocation3 + $0x45] sm:$0xff]
      %v4180 = vld [vmem:[#allocation3 + $0x4d] sm:$0xff]
      %v4181 = vld [vmem:[#allocation3 + $0x55] sm:$0xff]
      %v4182 = vld [vmem:[#allocation3 + $0x5d] sm:$0xff]
      %v4183 = vld [vmem:[#allocation3 + $0x65] sm:$0xff]
      %v4184 = vld [vmem:[#allocation3 + $0x6d] sm:$0xff]
      %v4185 = vld [vmem:[#allocation3 + $0x75] sm:$0xff]
      %v4186 = vld [vmem:[#allocation3 + $0x7d] sm:$0xff]
      %v4187 = vld [vmem:[#allocation3 + $0x85] sm:$0xff]
      %v4188 = vld [vmem:[#allocation3 + $0x8d] sm:$0xff]
      %v4189 = vld [vmem:[#allocation3 + $0x95] sm:$0xff]
      %v4190 = vld [vmem:[#allocation3 + $0x9d] sm:$0xff]
      %v4191 = vld [vmem:[#allocation3 + $0xa5] sm:$0xff]
      %v4192 = vld [vmem:[#allocation3 + $0xad] sm:$0xff]
      %v4193 = vld [vmem:[#allocation3 + $0xb5] sm:$0xff]
      %v4194 = vld [vmem:[#allocation3 + $0xbd] sm:$0xff]
      %v4195 = vld [vmem:[#allocation3 + $0xc5] sm:$0xff]
      %v4196 = vld [vmem:[#allocation3 + $0xcd] sm:$0xff]
      %v4197 = vld [vmem:[#allocation3 + $0xd5] sm:$0xff]
      %v4198 = vld [vmem:[#allocation3 + $0xdd] sm:$0xff]
      %v4199 = vld [vmem:[#allocation3 + $0xe5] sm:$0xff]
      %v4200 = vld [vmem:[#allocation3 + $0xed] sm:$0xff]
      %v4201 = vld [vmem:[#allocation3 + $0xf5] sm:$0xff]
      %v4202 = vld [vmem:[#allocation3 + $0xfd] sm:$0xff]
      %v4203 = vld [vmem:[#allocation3 + $0x105] sm:$0xff]
      %v4204 = vld [vmem:[#allocation3 + $0x10d] sm:$0xff]
      %v4205 = vld [vmem:[#allocation3 + $0x115] sm:$0xff]
      %v4206 = vld [vmem:[#allocation3 + $0x11d] sm:$0xff]
      %v4207 = vld [vmem:[#allocation3 + $0x125] sm:$0xff]
      %v4208 = vld [vmem:[#allocation3 + $0x12d] sm:$0xff]
      %v4209 = vld [vmem:[#allocation3 + $0x135] sm:$0xff]
      %v4210 = vld [vmem:[#allocation3 + $0x13d] sm:$0xff]
      %4247 = vrot.lane.b32.xlu0 %v4175, 96
      %v4248 = vpop.permute.xlu0 %4247
      %4249 = vrot.lane.b32.xlu0 %v4176, 96
      %v4250 = vpop.permute.xlu0 %4249
      %4251 = vrot.lane.b32.xlu0 %v4177, 96
      %v4252 = vpop.permute.xlu0 %4251
      %4253 = vrot.lane.b32.xlu0 %v4178, 96
      %v4254 = vpop.permute.xlu0 %4253
      %4255 = vrot.lane.b32.xlu0 %v4179, 96
      %v4256 = vpop.permute.xlu0 %4255
      %4257 = vrot.lane.b32.xlu0 %v4180, 96
      %v4258 = vpop.permute.xlu0 %4257
      %4259 = vrot.lane.b32.xlu0 %v4181, 96
      %v4260 = vpop.permute.xlu0 %4259
      %4261 = vrot.lane.b32.xlu0 %v4182, 96
      %v4262 = vpop.permute.xlu0 %4261
      %4263 = vrot.lane.b32.xlu0 %v4183, 96
      %v4264 = vpop.permute.xlu0 %4263
      %4265 = vrot.lane.b32.xlu0 %v4184, 96
      %v4266 = vpop.permute.xlu0 %4265
      %4267 = vrot.lane.b32.xlu0 %v4185, 96
      %v4268 = vpop.permute.xlu0 %4267
      %4269 = vrot.lane.b32.xlu0 %v4186, 96
      %v4270 = vpop.permute.xlu0 %4269
      %4271 = vrot.lane.b32.xlu0 %v4187, 96
      %v4272 = vpop.permute.xlu0 %4271
      %4273 = vrot.lane.b32.xlu0 %v4188, 96
      %v4274 = vpop.permute.xlu0 %4273
      %4275 = vrot.lane.b32.xlu0 %v4189, 96
      %v4276 = vpop.permute.xlu0 %4275
      %4277 = vrot.lane.b32.xlu0 %v4190, 96
      %v4278 = vpop.permute.xlu0 %4277
      %4279 = vrot.lane.b32.xlu0 %v4191, 96
      %v4280 = vpop.permute.xlu0 %4279
      %4281 = vrot.lane.b32.xlu0 %v4192, 96
      %v4282 = vpop.permute.xlu0 %4281
      %4283 = vrot.lane.b32.xlu0 %v4193, 96
      %v4284 = vpop.permute.xlu0 %4283
      %4285 = vrot.lane.b32.xlu0 %v4194, 96
      %v4286 = vpop.permute.xlu0 %4285
      %4287 = vrot.lane.b32.xlu0 %v4195, 96
      %v4288 = vpop.permute.xlu0 %4287
      %4289 = vrot.lane.b32.xlu0 %v4196, 96
      %v4290 = vpop.permute.xlu0 %4289
      %4291 = vrot.lane.b32.xlu0 %v4197, 96
      %v4292 = vpop.permute.xlu0 %4291
      %4293 = vrot.lane.b32.xlu0 %v4198, 96
      %v4294 = vpop.permute.xlu0 %4293
      %4295 = vrot.lane.b32.xlu0 %v4199, 96
      %v4296 = vpop.permute.xlu0 %4295
      %4297 = vrot.lane.b32.xlu0 %v4200, 96
      %v4298 = vpop.permute.xlu0 %4297
      %4299 = vrot.lane.b32.xlu0 %v4201, 96
      %v4300 = vpop.permute.xlu0 %4299
      %4301 = vrot.lane.b32.xlu0 %v4202, 96
      %v4302 = vpop.permute.xlu0 %4301
      %4303 = vrot.lane.b32.xlu0 %v4203, 96
      %v4304 = vpop.permute.xlu0 %4303
      %4305 = vrot.lane.b32.xlu0 %v4204, 96
      %v4306 = vpop.permute.xlu0 %4305
      %4307 = vrot.lane.b32.xlu0 %v4205, 96
      %v4308 = vpop.permute.xlu0 %4307
      %4309 = vrot.lane.b32.xlu0 %v4206, 96
      %v4310 = vpop.permute.xlu0 %4309
      %4311 = vrot.lane.b32.xlu0 %v4207, 96
      %v4312 = vpop.permute.xlu0 %4311
      %4313 = vrot.lane.b32.xlu0 %v4208, 96
      %v4314 = vpop.permute.xlu0 %4313
      %4315 = vrot.lane.b32.xlu0 %v4209, 96
      %v4316 = vpop.permute.xlu0 %4315
      %4317 = vrot.lane.b32.xlu0 %v4210, 96
      %v4318 = vpop.permute.xlu0 %4317
      %4355 = vst.msk [vmem:[#allocation4 + $0x8] sm:$0xff] %vm1042, %v4248
      %4356 = vst.msk [vmem:[#allocation4 + $0x20] sm:$0xff] %vm1042, %v4250
      %4357 = vst.msk [vmem:[#allocation4 + $0x38] sm:$0xff] %vm1042, %v4252
      %4358 = vst.msk [vmem:[#allocation4 + $0x50] sm:$0xff] %vm1042, %v4254
      %4359 = vst.msk [vmem:[#allocation4 + $0x68] sm:$0xff] %vm1042, %v4256
      %4360 = vst.msk [vmem:[#allocation4 + $0x80] sm:$0xff] %vm1042, %v4258
      %4361 = vst.msk [vmem:[#allocation4 + $0x98] sm:$0xff] %vm1042, %v4260
      %4362 = vst.msk [vmem:[#allocation4 + $0xb0] sm:$0xff] %vm1042, %v4262
      %4363 = vst.msk [vmem:[#allocation4 + $0xc8] sm:$0xff] %vm1042, %v4264
      %4364 = vst.msk [vmem:[#allocation4 + $0xe0] sm:$0xff] %vm1042, %v4266
      %4365 = vst.msk [vmem:[#allocation4 + $0xf8] sm:$0xff] %vm1042, %v4268
      %4366 = vst.msk [vmem:[#allocation4 + $0x110] sm:$0xff] %vm1042, %v4270
      %4367 = vst.msk [vmem:[#allocation4 + $0x128] sm:$0xff] %vm1042, %v4272
      %4368 = vst.msk [vmem:[#allocation4 + $0x140] sm:$0xff] %vm1042, %v4274
      %4369 = vst.msk [vmem:[#allocation4 + $0x158] sm:$0xff] %vm1042, %v4276
      %4370 = vst.msk [vmem:[#allocation4 + $0x170] sm:$0xff] %vm1042, %v4278
      %4371 = vst.msk [vmem:[#allocation4 + $0x188] sm:$0xff] %vm1042, %v4280
      %4372 = vst.msk [vmem:[#allocation4 + $0x1a0] sm:$0xff] %vm1042, %v4282
      %4373 = vst.msk [vmem:[#allocation4 + $0x1b8] sm:$0xff] %vm1042, %v4284
      %4374 = vst.msk [vmem:[#allocation4 + $0x1d0] sm:$0xff] %vm1042, %v4286
      %4375 = vst.msk [vmem:[#allocation4 + $0x1e8] sm:$0xff] %vm1042, %v4288
      %4376 = vst.msk [vmem:[#allocation4 + $0x200] sm:$0xff] %vm1042, %v4290
      %4377 = vst.msk [vmem:[#allocation4 + $0x218] sm:$0xff] %vm1042, %v4292
      %4378 = vst.msk [vmem:[#allocation4 + $0x230] sm:$0xff] %vm1042, %v4294
      %4379 = vst.msk [vmem:[#allocation4 + $0x248] sm:$0xff] %vm1042, %v4296
      %4380 = vst.msk [vmem:[#allocation4 + $0x260] sm:$0xff] %vm1042, %v4298
      %4381 = vst.msk [vmem:[#allocation4 + $0x278] sm:$0xff] %vm1042, %v4300
      %4382 = vst.msk [vmem:[#allocation4 + $0x290] sm:$0xff] %vm1042, %v4302
      %4383 = vst.msk [vmem:[#allocation4 + $0x2a8] sm:$0xff] %vm1042, %v4304
      %4384 = vst.msk [vmem:[#allocation4 + $0x2c0] sm:$0xff] %vm1042, %v4306
      %4385 = vst.msk [vmem:[#allocation4 + $0x2d8] sm:$0xff] %vm1042, %v4308
      %4386 = vst.msk [vmem:[#allocation4 + $0x2f0] sm:$0xff] %vm1042, %v4310
      %4387 = vst.msk [vmem:[#allocation4 + $0x308] sm:$0xff] %vm1042, %v4312
      %4388 = vst.msk [vmem:[#allocation4 + $0x320] sm:$0xff] %vm1042, %v4314
      %4389 = vst.msk [vmem:[#allocation4 + $0x338] sm:$0xff] %vm1042, %v4316
      %4390 = vst.msk [vmem:[#allocation4 + $0x350] sm:$0xff] %vm1042, %v4318
      %v4391 = vld [vmem:[#allocation3 + $0x26] sm:$0xff]
      %v4392 = vld [vmem:[#allocation3 + $0x2e] sm:$0xff]
      %v4393 = vld [vmem:[#allocation3 + $0x36] sm:$0xff]
      %v4394 = vld [vmem:[#allocation3 + $0x3e] sm:$0xff]
      %v4395 = vld [vmem:[#allocation3 + $0x46] sm:$0xff]
      %v4396 = vld [vmem:[#allocation3 + $0x4e] sm:$0xff]
      %v4397 = vld [vmem:[#allocation3 + $0x56] sm:$0xff]
      %v4398 = vld [vmem:[#allocation3 + $0x5e] sm:$0xff]
      %v4399 = vld [vmem:[#allocation3 + $0x66] sm:$0xff]
      %v4400 = vld [vmem:[#allocation3 + $0x6e] sm:$0xff]
      %v4401 = vld [vmem:[#allocation3 + $0x76] sm:$0xff]
      %v4402 = vld [vmem:[#allocation3 + $0x7e] sm:$0xff]
      %v4403 = vld [vmem:[#allocation3 + $0x86] sm:$0xff]
      %v4404 = vld [vmem:[#allocation3 + $0x8e] sm:$0xff]
      %v4405 = vld [vmem:[#allocation3 + $0x96] sm:$0xff]
      %v4406 = vld [vmem:[#allocation3 + $0x9e] sm:$0xff]
      %v4407 = vld [vmem:[#allocation3 + $0xa6] sm:$0xff]
      %v4408 = vld [vmem:[#allocation3 + $0xae] sm:$0xff]
      %v4409 = vld [vmem:[#allocation3 + $0xb6] sm:$0xff]
      %v4410 = vld [vmem:[#allocation3 + $0xbe] sm:$0xff]
      %v4411 = vld [vmem:[#allocation3 + $0xc6] sm:$0xff]
      %v4412 = vld [vmem:[#allocation3 + $0xce] sm:$0xff]
      %v4413 = vld [vmem:[#allocation3 + $0xd6] sm:$0xff]
      %v4414 = vld [vmem:[#allocation3 + $0xde] sm:$0xff]
      %v4415 = vld [vmem:[#allocation3 + $0xe6] sm:$0xff]
      %v4416 = vld [vmem:[#allocation3 + $0xee] sm:$0xff]
      %v4417 = vld [vmem:[#allocation3 + $0xf6] sm:$0xff]
      %v4418 = vld [vmem:[#allocation3 + $0xfe] sm:$0xff]
      %v4419 = vld [vmem:[#allocation3 + $0x106] sm:$0xff]
      %v4420 = vld [vmem:[#allocation3 + $0x10e] sm:$0xff]
      %v4421 = vld [vmem:[#allocation3 + $0x116] sm:$0xff]
      %v4422 = vld [vmem:[#allocation3 + $0x11e] sm:$0xff]
      %v4423 = vld [vmem:[#allocation3 + $0x126] sm:$0xff]
      %v4424 = vld [vmem:[#allocation3 + $0x12e] sm:$0xff]
      %v4425 = vld [vmem:[#allocation3 + $0x136] sm:$0xff]
      %v4426 = vld [vmem:[#allocation3 + $0x13e] sm:$0xff]
      %4427 = vst.msk [vmem:[#allocation4 + $0x10] sm:$0xff] %vm252, %v4391
      %4428 = vst.msk [vmem:[#allocation4 + $0x28] sm:$0xff] %vm252, %v4392
      %4429 = vst.msk [vmem:[#allocation4 + $0x40] sm:$0xff] %vm252, %v4393
      %4430 = vst.msk [vmem:[#allocation4 + $0x58] sm:$0xff] %vm252, %v4394
      %4431 = vst.msk [vmem:[#allocation4 + $0x70] sm:$0xff] %vm252, %v4395
      %4432 = vst.msk [vmem:[#allocation4 + $0x88] sm:$0xff] %vm252, %v4396
      %4433 = vst.msk [vmem:[#allocation4 + $0xa0] sm:$0xff] %vm252, %v4397
      %4434 = vst.msk [vmem:[#allocation4 + $0xb8] sm:$0xff] %vm252, %v4398
      %4435 = vst.msk [vmem:[#allocation4 + $0xd0] sm:$0xff] %vm252, %v4399
      %4436 = vst.msk [vmem:[#allocation4 + $0xe8] sm:$0xff] %vm252, %v4400
      %4437 = vst.msk [vmem:[#allocation4 + $0x100] sm:$0xff] %vm252, %v4401
      %4438 = vst.msk [vmem:[#allocation4 + $0x118] sm:$0xff] %vm252, %v4402
      %4439 = vst.msk [vmem:[#allocation4 + $0x130] sm:$0xff] %vm252, %v4403
      %4440 = vst.msk [vmem:[#allocation4 + $0x148] sm:$0xff] %vm252, %v4404
      %4441 = vst.msk [vmem:[#allocation4 + $0x160] sm:$0xff] %vm252, %v4405
      %4442 = vst.msk [vmem:[#allocation4 + $0x178] sm:$0xff] %vm252, %v4406
      %4443 = vst.msk [vmem:[#allocation4 + $0x190] sm:$0xff] %vm252, %v4407
      %4444 = vst.msk [vmem:[#allocation4 + $0x1a8] sm:$0xff] %vm252, %v4408
      %4445 = vst.msk [vmem:[#allocation4 + $0x1c0] sm:$0xff] %vm252, %v4409
      %4446 = vst.msk [vmem:[#allocation4 + $0x1d8] sm:$0xff] %vm252, %v4410
      %4447 = vst.msk [vmem:[#allocation4 + $0x1f0] sm:$0xff] %vm252, %v4411
      %4448 = vst.msk [vmem:[#allocation4 + $0x208] sm:$0xff] %vm252, %v4412
      %4449 = vst.msk [vmem:[#allocation4 + $0x220] sm:$0xff] %vm252, %v4413
      %4450 = vst.msk [vmem:[#allocation4 + $0x238] sm:$0xff] %vm252, %v4414
      %4451 = vst.msk [vmem:[#allocation4 + $0x250] sm:$0xff] %vm252, %v4415
      %4452 = vst.msk [vmem:[#allocation4 + $0x268] sm:$0xff] %vm252, %v4416
      %4453 = vst.msk [vmem:[#allocation4 + $0x280] sm:$0xff] %vm252, %v4417
      %4454 = vst.msk [vmem:[#allocation4 + $0x298] sm:$0xff] %vm252, %v4418
      %4455 = vst.msk [vmem:[#allocation4 + $0x2b0] sm:$0xff] %vm252, %v4419
      %4456 = vst.msk [vmem:[#allocation4 + $0x2c8] sm:$0xff] %vm252, %v4420
      %4457 = vst.msk [vmem:[#allocation4 + $0x2e0] sm:$0xff] %vm252, %v4421
      %4458 = vst.msk [vmem:[#allocation4 + $0x2f8] sm:$0xff] %vm252, %v4422
      %4459 = vst.msk [vmem:[#allocation4 + $0x310] sm:$0xff] %vm252, %v4423
      %4460 = vst.msk [vmem:[#allocation4 + $0x328] sm:$0xff] %vm252, %v4424
      %4461 = vst.msk [vmem:[#allocation4 + $0x340] sm:$0xff] %vm252, %v4425
      %4462 = vst.msk [vmem:[#allocation4 + $0x358] sm:$0xff] %vm252, %v4426
      %v4463 = vld [vmem:[#allocation4] sm:$0xff]
      %v4464 = vld [vmem:[#allocation4 + $0x8] sm:$0xff]
      %v4465 = vld [vmem:[#allocation4 + $0x10] sm:$0xff]
      %v4466 = vld [vmem:[#allocation4 + $0x18] sm:$0xff]
      %v4467 = vld [vmem:[#allocation4 + $0x20] sm:$0xff]
      %v4468 = vld [vmem:[#allocation4 + $0x28] sm:$0xff]
      %v4469 = vld [vmem:[#allocation4 + $0x30] sm:$0xff]
      %v4470 = vld [vmem:[#allocation4 + $0x38] sm:$0xff]
      %v4471 = vld [vmem:[#allocation4 + $0x40] sm:$0xff]
      %v4472 = vld [vmem:[#allocation4 + $0x48] sm:$0xff]
      %v4473 = vld [vmem:[#allocation4 + $0x50] sm:$0xff]
      %v4474 = vld [vmem:[#allocation4 + $0x58] sm:$0xff]
      %v4475 = vld [vmem:[#allocation4 + $0x60] sm:$0xff]
      %v4476 = vld [vmem:[#allocation4 + $0x68] sm:$0xff]
      %v4477 = vld [vmem:[#allocation4 + $0x70] sm:$0xff]
      %v4478 = vld [vmem:[#allocation4 + $0x78] sm:$0xff]
      %v4479 = vld [vmem:[#allocation4 + $0x80] sm:$0xff]
      %v4480 = vld [vmem:[#allocation4 + $0x88] sm:$0xff]
      %v4481 = vld [vmem:[#allocation4 + $0x90] sm:$0xff]
      %v4482 = vld [vmem:[#allocation4 + $0x98] sm:$0xff]
      %v4483 = vld [vmem:[#allocation4 + $0xa0] sm:$0xff]
      %v4484 = vld [vmem:[#allocation4 + $0xa8] sm:$0xff]
      %v4485 = vld [vmem:[#allocation4 + $0xb0] sm:$0xff]
      %v4486 = vld [vmem:[#allocation4 + $0xb8] sm:$0xff]
      %v4487 = vld [vmem:[#allocation4 + $0xc0] sm:$0xff]
      %v4488 = vld [vmem:[#allocation4 + $0xc8] sm:$0xff]
      %v4489 = vld [vmem:[#allocation4 + $0xd0] sm:$0xff]
      %v4490 = vld [vmem:[#allocation4 + $0xd8] sm:$0xff]
      %v4491 = vld [vmem:[#allocation4 + $0xe0] sm:$0xff]
      %v4492 = vld [vmem:[#allocation4 + $0xe8] sm:$0xff]
      %v4493 = vld [vmem:[#allocation4 + $0xf0] sm:$0xff]
      %v4494 = vld [vmem:[#allocation4 + $0xf8] sm:$0xff]
      %v4495 = vld [vmem:[#allocation4 + $0x100] sm:$0xff]
      %v4496 = vld [vmem:[#allocation4 + $0x108] sm:$0xff]
      %v4497 = vld [vmem:[#allocation4 + $0x110] sm:$0xff]
      %v4498 = vld [vmem:[#allocation4 + $0x118] sm:$0xff]
      %v4499 = vld [vmem:[#allocation4 + $0x120] sm:$0xff]
      %v4500 = vld [vmem:[#allocation4 + $0x128] sm:$0xff]
      %v4501 = vld [vmem:[#allocation4 + $0x130] sm:$0xff]
      %v4502 = vld [vmem:[#allocation4 + $0x138] sm:$0xff]
      %v4503 = vld [vmem:[#allocation4 + $0x140] sm:$0xff]
      %v4504 = vld [vmem:[#allocation4 + $0x148] sm:$0xff]
      %v4505 = vld [vmem:[#allocation4 + $0x150] sm:$0xff]
      %v4506 = vld [vmem:[#allocation4 + $0x158] sm:$0xff]
      %v4507 = vld [vmem:[#allocation4 + $0x160] sm:$0xff]
      %v4508 = vld [vmem:[#allocation4 + $0x168] sm:$0xff]
      %v4509 = vld [vmem:[#allocation4 + $0x170] sm:$0xff]
      %v4510 = vld [vmem:[#allocation4 + $0x178] sm:$0xff]
      %v4511 = vld [vmem:[#allocation4 + $0x180] sm:$0xff]
      %v4512 = vld [vmem:[#allocation4 + $0x188] sm:$0xff]
      %v4513 = vld [vmem:[#allocation4 + $0x190] sm:$0xff]
      %v4514 = vld [vmem:[#allocation4 + $0x198] sm:$0xff]
      %v4515 = vld [vmem:[#allocation4 + $0x1a0] sm:$0xff]
      %v4516 = vld [vmem:[#allocation4 + $0x1a8] sm:$0xff]
      %v4517 = vld [vmem:[#allocation4 + $0x1b0] sm:$0xff]
      %v4518 = vld [vmem:[#allocation4 + $0x1b8] sm:$0xff]
      %v4519 = vld [vmem:[#allocation4 + $0x1c0] sm:$0xff]
      %v4520 = vld [vmem:[#allocation4 + $0x1c8] sm:$0xff]
      %v4521 = vld [vmem:[#allocation4 + $0x1d0] sm:$0xff]
      %v4522 = vld [vmem:[#allocation4 + $0x1d8] sm:$0xff]
      %v4523 = vld [vmem:[#allocation4 + $0x1e0] sm:$0xff]
      %v4524 = vld [vmem:[#allocation4 + $0x1e8] sm:$0xff]
      %v4525 = vld [vmem:[#allocation4 + $0x1f0] sm:$0xff]
      %v4526 = vld [vmem:[#allocation4 + $0x1f8] sm:$0xff]
      %v4527 = vld [vmem:[#allocation4 + $0x200] sm:$0xff]
      %v4528 = vld [vmem:[#allocation4 + $0x208] sm:$0xff]
      %v4529 = vld [vmem:[#allocation4 + $0x210] sm:$0xff]
      %v4530 = vld [vmem:[#allocation4 + $0x218] sm:$0xff]
      %v4531 = vld [vmem:[#allocation4 + $0x220] sm:$0xff]
      %v4532 = vld [vmem:[#allocation4 + $0x228] sm:$0xff]
      %v4533 = vld [vmem:[#allocation4 + $0x230] sm:$0xff]
      %v4534 = vld [vmem:[#allocation4 + $0x238] sm:$0xff]
      %v4535 = vld [vmem:[#allocation4 + $0x240] sm:$0xff]
      %v4536 = vld [vmem:[#allocation4 + $0x248] sm:$0xff]
      %v4537 = vld [vmem:[#allocation4 + $0x250] sm:$0xff]
      %v4538 = vld [vmem:[#allocation4 + $0x258] sm:$0xff]
      %v4539 = vld [vmem:[#allocation4 + $0x260] sm:$0xff]
      %v4540 = vld [vmem:[#allocation4 + $0x268] sm:$0xff]
      %v4541 = vld [vmem:[#allocation4 + $0x270] sm:$0xff]
      %v4542 = vld [vmem:[#allocation4 + $0x278] sm:$0xff]
      %v4543 = vld [vmem:[#allocation4 + $0x280] sm:$0xff]
      %v4544 = vld [vmem:[#allocation4 + $0x288] sm:$0xff]
      %v4545 = vld [vmem:[#allocation4 + $0x290] sm:$0xff]
      %v4546 = vld [vmem:[#allocation4 + $0x298] sm:$0xff]
      %v4547 = vld [vmem:[#allocation4 + $0x2a0] sm:$0xff]
      %v4548 = vld [vmem:[#allocation4 + $0x2a8] sm:$0xff]
      %v4549 = vld [vmem:[#allocation4 + $0x2b0] sm:$0xff]
      %v4550 = vld [vmem:[#allocation4 + $0x2b8] sm:$0xff]
      %v4551 = vld [vmem:[#allocation4 + $0x2c0] sm:$0xff]
      %v4552 = vld [vmem:[#allocation4 + $0x2c8] sm:$0xff]
      %v4553 = vld [vmem:[#allocation4 + $0x2d0] sm:$0xff]
      %v4554 = vld [vmem:[#allocation4 + $0x2d8] sm:$0xff]
      %v4555 = vld [vmem:[#allocation4 + $0x2e0] sm:$0xff]
      %v4556 = vld [vmem:[#allocation4 + $0x2e8] sm:$0xff]
      %v4557 = vld [vmem:[#allocation4 + $0x2f0] sm:$0xff]
      %v4558 = vld [vmem:[#allocation4 + $0x2f8] sm:$0xff]
      %v4559 = vld [vmem:[#allocation4 + $0x300] sm:$0xff]
      %v4560 = vld [vmem:[#allocation4 + $0x308] sm:$0xff]
      %v4561 = vld [vmem:[#allocation4 + $0x310] sm:$0xff]
      %v4562 = vld [vmem:[#allocation4 + $0x318] sm:$0xff]
      %v4563 = vld [vmem:[#allocation4 + $0x320] sm:$0xff]
      %v4564 = vld [vmem:[#allocation4 + $0x328] sm:$0xff]
      %v4565 = vld [vmem:[#allocation4 + $0x330] sm:$0xff]
      %v4566 = vld [vmem:[#allocation4 + $0x338] sm:$0xff]
      %v4567 = vld [vmem:[#allocation4 + $0x340] sm:$0xff]
      %v4568 = vld [vmem:[#allocation4 + $0x348] sm:$0xff]
      %v4569 = vld [vmem:[#allocation4 + $0x350] sm:$0xff]
      %v4570 = vld [vmem:[#allocation4 + $0x358] sm:$0xff]
      %v4571 = vld [vmem:[%s3] sm:$0xff]
      %v4572 = vld [vmem:[%s3 + $0x8] sm:$0xff]
      %v4573 = vld [vmem:[%s3 + $0x10] sm:$0xff]
      %v4574 = vld [vmem:[%s3 + $0x18] sm:$0xff]
      %v4575 = vld [vmem:[%s3 + $0x20] sm:$0xff]
      %v4576 = vld [vmem:[%s3 + $0x28] sm:$0xff]
      %v4577 = vld [vmem:[%s3 + $0x30] sm:$0xff]
      %v4578 = vld [vmem:[%s3 + $0x38] sm:$0xff]
      %v4579 = vld [vmem:[%s3 + $0x40] sm:$0xff]
      %v4580 = vld [vmem:[%s3 + $0x48] sm:$0xff]
      %v4581 = vld [vmem:[%s3 + $0x50] sm:$0xff]
      %v4582 = vld [vmem:[%s3 + $0x58] sm:$0xff]
      %v4583 = vld [vmem:[%s3 + $0x60] sm:$0xff]
      %v4584 = vld [vmem:[%s3 + $0x68] sm:$0xff]
      %v4585 = vld [vmem:[%s3 + $0x70] sm:$0xff]
      %v4586 = vld [vmem:[%s3 + $0x78] sm:$0xff]
      %v4587 = vld [vmem:[%s3 + $0x80] sm:$0xff]
      %v4588 = vld [vmem:[%s3 + $0x88] sm:$0xff]
      %v4589 = vld [vmem:[%s3 + $0x90] sm:$0xff]
      %v4590 = vld [vmem:[%s3 + $0x98] sm:$0xff]
      %v4591 = vld [vmem:[%s3 + $0xa0] sm:$0xff]
      %v4592 = vld [vmem:[%s3 + $0xa8] sm:$0xff]
      %v4593 = vld [vmem:[%s3 + $0xb0] sm:$0xff]
      %v4594 = vld [vmem:[%s3 + $0xb8] sm:$0xff]
      %v4595 = vld [vmem:[%s3 + $0xc0] sm:$0xff]
      %v4596 = vld [vmem:[%s3 + $0xc8] sm:$0xff]
      %v4597 = vld [vmem:[%s3 + $0xd0] sm:$0xff]
      %v4598 = vld [vmem:[%s3 + $0xd8] sm:$0xff]
      %v4599 = vld [vmem:[%s3 + $0xe0] sm:$0xff]
      %v4600 = vld [vmem:[%s3 + $0xe8] sm:$0xff]
      %v4601 = vld [vmem:[%s3 + $0xf0] sm:$0xff]
      %v4602 = vld [vmem:[%s3 + $0xf8] sm:$0xff]
      %v4603 = vld [vmem:[%s3 + $0x100] sm:$0xff]
      %v4604 = vld [vmem:[%s3 + $0x108] sm:$0xff]
      %v4605 = vld [vmem:[%s3 + $0x110] sm:$0xff]
      %v4606 = vld [vmem:[%s3 + $0x118] sm:$0xff]
      %v4607 = vld [vmem:[%s4] sm:$0x1]
      %v4609 = vlaneseq
      %v4610 = vshrl.u32 %v4609, 7
      %v4611 = vsub.s32 0, %v4610
      %v4612 = vrot.slane %v4607, %v4611
      %v4615 = vsel %vm252, %v4465, 0
      %v4618 = vsel %vm252, %v4468, 0
      %v4621 = vsel %vm252, %v4471, 0
      %v4624 = vsel %vm252, %v4474, 0
      %v4627 = vsel %vm252, %v4477, 0
      %v4630 = vsel %vm252, %v4480, 0
      %v4633 = vsel %vm252, %v4483, 0
      %v4636 = vsel %vm252, %v4486, 0
      %v4639 = vsel %vm252, %v4489, 0
      %v4642 = vsel %vm252, %v4492, 0
      %v4645 = vsel %vm252, %v4495, 0
      %v4648 = vsel %vm252, %v4498, 0
      %v4651 = vsel %vm252, %v4501, 0
      %v4654 = vsel %vm252, %v4504, 0
      %v4657 = vsel %vm252, %v4507, 0
      %v4660 = vsel %vm252, %v4510, 0
      %v4663 = vsel %vm252, %v4513, 0
      %v4666 = vsel %vm252, %v4516, 0
      %v4669 = vsel %vm252, %v4519, 0
      %v4672 = vsel %vm252, %v4522, 0
      %v4675 = vsel %vm252, %v4525, 0
      %v4678 = vsel %vm252, %v4528, 0
      %v4681 = vsel %vm252, %v4531, 0
      %v4684 = vsel %vm252, %v4534, 0
      %v4687 = vsel %vm252, %v4537, 0
      %v4690 = vsel %vm252, %v4540, 0
      %v4693 = vsel %vm252, %v4543, 0
      %v4696 = vsel %vm252, %v4546, 0
      %v4699 = vsel %vm252, %v4549, 0
      %v4702 = vsel %vm252, %v4552, 0
      %v4705 = vsel %vm252, %v4555, 0
      %v4708 = vsel %vm252, %v4558, 0
      %v4711 = vsel %vm252, %v4561, 0
      %v4714 = vsel %vm252, %v4564, 0
      %v4717 = vsel %vm252, %v4567, 0
      %v4720 = vsel %vm252, %v4570, 0
      %4722 = vmatprep.subr.mxu0 0.0
      %4723 = vmatpush1.msra.mxu0 %v4571
      %4724 = vmatprep.subr.mxu0 0.0
      %4725 = vmatpush1.msra.mxu0 %v4572
      %4726 = vmatprep.subr.mxu0 0.0
      %4727 = vmatpush1.msra.mxu0 %v4573
      %4728 = vmatprep.subr.mxu0 0.0
      %4729 = vmatpush1.msra.mxu0 %v4574
      %4730 = vmatprep.subr.mxu0 0.0
      %4731 = vmatpush1.msra.mxu0 %v4575
      %4732 = vmatprep.subr.mxu0 0.0
      %4733 = vmatpush1.msra.mxu0 %v4576
      %4734 = vmatprep.subr.mxu0 0.0
      %4735 = vmatpush1.msra.mxu0 %v4577
      %4736 = vmatprep.subr.mxu0 0.0
      %4737 = vmatpush1.msra.mxu0 %v4578
      %4738 = vmatprep.subr.mxu0 0.0
      %4739 = vmatpush1.msra.mxu0 %v4579
      %4740 = vmatprep.subr.mxu0 0.0
      %4741 = vmatpush1.msra.mxu0 %v4580
      %4742 = vmatprep.subr.mxu0 0.0
      %4743 = vmatpush1.msra.mxu0 %v4581
      %4744 = vmatprep.subr.mxu0 0.0
      %4745 = vmatpush1.msra.mxu0 %v4582
      %4746 = vmatprep.subr.mxu0 0.0
      %4747 = vmatpush1.msra.mxu0 %v4583
      %4748 = vmatprep.subr.mxu0 0.0
      %4749 = vmatpush1.msra.mxu0 %v4584
      %4750 = vmatprep.subr.mxu0 0.0
      %4751 = vmatpush1.msra.mxu0 %v4585
      %4752 = vmatprep.subr.mxu0 0.0
      %4753 = vmatpush1.msra.mxu0 %v4586
      %4754 = vmatprep.subr.mxu0 0.0
      %4755 = vmatpush1.msra.mxu0 %v4587
      %4756 = vmatprep.subr.mxu0 0.0
      %4757 = vmatpush1.msra.mxu0 %v4588
      %4758 = vmatprep.subr.mxu0 0.0
      %4759 = vmatpush1.msra.mxu0 %v4589
      %4760 = vmatprep.subr.mxu0 0.0
      %4761 = vmatpush1.msra.mxu0 %v4590
      %4762 = vmatprep.subr.mxu0 0.0
      %4763 = vmatpush1.msra.mxu0 %v4591
      %4764 = vmatprep.subr.mxu0 0.0
      %4765 = vmatpush1.msra.mxu0 %v4592
      %4766 = vmatprep.subr.mxu0 0.0
      %4767 = vmatpush1.msra.mxu0 %v4593
      %4768 = vmatprep.subr.mxu0 0.0
      %4769 = vmatpush1.msra.mxu0 %v4594
      %4770 = vmatprep.subr.mxu0 0.0
      %4771 = vmatpush1.msra.mxu0 %v4595
      %4772 = vmatprep.subr.mxu0 0.0
      %4773 = vmatpush1.msra.mxu0 %v4596
      %4774 = vmatprep.subr.mxu0 0.0
      %4775 = vmatpush1.msra.mxu0 %v4597
      %4776 = vmatprep.subr.mxu0 0.0
      %4777 = vmatpush1.msra.mxu0 %v4598
      %4778 = vmatprep.subr.mxu0 0.0
      %4779 = vmatpush1.msra.mxu0 %v4599
      %4780 = vmatprep.subr.mxu0 0.0
      %4781 = vmatpush1.msra.mxu0 %v4600
      %4782 = vmatprep.subr.mxu0 0.0
      %4783 = vmatpush1.msra.mxu0 %v4601
      %4784 = vmatprep.subr.mxu0 0.0
      %4785 = vmatpush1.msra.mxu0 %v4602
      %4786 = vmatprep.mubr.f32.mxu0 %v4464
      %4787 = vmatmul.mubr.f32.gmra.mrb[0].mxu0 %v4463
      %v4788 = vpop.f32.mrb[0].mxu0
      %v4789 = vadd.f32 %v4612, %v4788
      %v4790 = vpop.f32.mrb[0].mxu0
      %4791 = vmatprep.mubr.f32.mxu0 %v4467
      %4792 = vmatmul.mubr.f32.gmra.mrb[0].mxu0 %v4466
      %v4793 = vpop.f32.mrb[0].mxu0
      %v4794 = vadd.f32 %v4612, %v4793
      %v4795 = vpop.f32.mrb[0].mxu0
      %4796 = vmatprep.mubr.f32.mxu0 %v4470
      %4797 = vmatmul.mubr.f32.gmra.mrb[0].mxu0 %v4469
      %v4798 = vpop.f32.mrb[0].mxu0
      %v4799 = vadd.f32 %v4612, %v4798
      %v4800 = vpop.f32.mrb[0].mxu0
      %4801 = vmatprep.mubr.f32.mxu0 %v4473
      %4802 = vmatmul.mubr.f32.gmra.mrb[0].mxu0 %v4472
      %v4803 = vpop.f32.mrb[0].mxu0
      %v4804 = vadd.f32 %v4612, %v4803
      %v4805 = vpop.f32.mrb[0].mxu0
      %4806 = vmatprep.mubr.f32.mxu0 %v4476
      %4807 = vmatmul.mubr.f32.gmra.mrb[0].mxu0 %v4475
      %v4808 = vpop.f32.mrb[0].mxu0
      %v4809 = vadd.f32 %v4612, %v4808
      %v4810 = vpop.f32.mrb[0].mxu0
      %4811 = vmatprep.mubr.f32.mxu0 %v4479
      %4812 = vmatmul.mubr.f32.gmra.mrb[0].mxu0 %v4478
      %v4813 = vpop.f32.mrb[0].mxu0
      %v4814 = vadd.f32 %v4612, %v4813
      %v4815 = vpop.f32.mrb[0].mxu0
      %4816 = vmatprep.mubr.f32.mxu0 %v4482
      %4817 = vmatmul.mubr.f32.gmra.mrb[0].mxu0 %v4481
      %v4818 = vpop.f32.mrb[0].mxu0
      %v4819 = vadd.f32 %v4612, %v4818
      %v4820 = vpop.f32.mrb[0].mxu0
      %4821 = vmatprep.mubr.f32.mxu0 %v4485
      %4822 = vmatmul.mubr.f32.gmra.mrb[0].mxu0 %v4484
      %v4823 = vpop.f32.mrb[0].mxu0
      %v4824 = vadd.f32 %v4612, %v4823
      %v4825 = vpop.f32.mrb[0].mxu0
      %4826 = vmatprep.mubr.f32.mxu0 %v4488
      %4827 = vmatmul.mubr.f32.gmra.mrb[0].mxu0 %v4487
      %v4828 = vpop.f32.mrb[0].mxu0
      %v4829 = vadd.f32 %v4612, %v4828
      %v4830 = vpop.f32.mrb[0].mxu0
      %4831 = vmatprep.mubr.f32.mxu0 %v4491
      %4832 = vmatmul.mubr.f32.gmra.mrb[0].mxu0 %v4490
      %v4833 = vpop.f32.mrb[0].mxu0
      %v4834 = vadd.f32 %v4612, %v4833
      %v4835 = vpop.f32.mrb[0].mxu0
      %4836 = vmatprep.mubr.f32.mxu0 %v4494
      %4837 = vmatmul.mubr.f32.gmra.mrb[0].mxu0 %v4493
      %v4838 = vpop.f32.mrb[0].mxu0
      %v4839 = vadd.f32 %v4612, %v4838
      %v4840 = vpop.f32.mrb[0].mxu0
      %4841 = vmatprep.mubr.f32.mxu0 %v4497
      %4842 = vmatmul.mubr.f32.gmra.mrb[0].mxu0 %v4496
      %v4843 = vpop.f32.mrb[0].mxu0
      %v4844 = vadd.f32 %v4612, %v4843
      %v4845 = vpop.f32.mrb[0].mxu0
      %4846 = vmatprep.mubr.f32.mxu0 %v4500
      %4847 = vmatmul.mubr.f32.gmra.mrb[0].mxu0 %v4499
      %v4848 = vpop.f32.mrb[0].mxu0
      %v4849 = vadd.f32 %v4612, %v4848
      %v4850 = vpop.f32.mrb[0].mxu0
      %4851 = vmatprep.mubr.f32.mxu0 %v4503
      %4852 = vmatmul.mubr.f32.gmra.mrb[0].mxu0 %v4502
      %v4853 = vpop.f32.mrb[0].mxu0
      %v4854 = vadd.f32 %v4612, %v4853
      %v4855 = vpop.f32.mrb[0].mxu0
      %4856 = vmatprep.mubr.f32.mxu0 %v4506
      %4857 = vmatmul.mubr.f32.gmra.mrb[0].mxu0 %v4505
      %v4858 = vpop.f32.mrb[0].mxu0
      %v4859 = vadd.f32 %v4612, %v4858
      %v4860 = vpop.f32.mrb[0].mxu0
      %4861 = vmatprep.mubr.f32.mxu0 %v4509
      %4862 = vmatmul.mubr.f32.gmra.mrb[0].mxu0 %v4508
      %v4863 = vpop.f32.mrb[0].mxu0
      %v4864 = vadd.f32 %v4612, %v4863
      %v4865 = vpop.f32.mrb[0].mxu0
      %4866 = vmatprep.mubr.f32.mxu0 %v4512
      %4867 = vmatmul.mubr.f32.gmra.mrb[0].mxu0 %v4511
      %v4868 = vpop.f32.mrb[0].mxu0
      %v4869 = vadd.f32 %v4612, %v4868
      %v4870 = vpop.f32.mrb[0].mxu0
      %4871 = vmatprep.mubr.f32.mxu0 %v4515
      %4872 = vmatmul.mubr.f32.gmra.mrb[0].mxu0 %v4514
      %v4873 = vpop.f32.mrb[0].mxu0
      %v4874 = vadd.f32 %v4612, %v4873
      %v4875 = vpop.f32.mrb[0].mxu0
      %4876 = vmatprep.mubr.f32.mxu0 %v4518
      %4877 = vmatmul.mubr.f32.gmra.mrb[0].mxu0 %v4517
      %v4878 = vpop.f32.mrb[0].mxu0
      %v4879 = vadd.f32 %v4612, %v4878
      %v4880 = vpop.f32.mrb[0].mxu0
      %4881 = vmatprep.mubr.f32.mxu0 %v4521
      %4882 = vmatmul.mubr.f32.gmra.mrb[0].mxu0 %v4520
      %v4883 = vpop.f32.mrb[0].mxu0
      %v4884 = vadd.f32 %v4612, %v4883
      %v4885 = vpop.f32.mrb[0].mxu0
      %4886 = vmatprep.mubr.f32.mxu0 %v4524
      %4887 = vmatmul.mubr.f32.gmra.mrb[0].mxu0 %v4523
      %v4888 = vpop.f32.mrb[0].mxu0
      %v4889 = vadd.f32 %v4612, %v4888
      %v4890 = vpop.f32.mrb[0].mxu0
      %4891 = vmatprep.mubr.f32.mxu0 %v4527
      %4892 = vmatmul.mubr.f32.gmra.mrb[0].mxu0 %v4526
      %v4893 = vpop.f32.mrb[0].mxu0
      %v4894 = vadd.f32 %v4612, %v4893
      %v4895 = vpop.f32.mrb[0].mxu0
      %4896 = vmatprep.mubr.f32.mxu0 %v4530
      %4897 = vmatmul.mubr.f32.gmra.mrb[0].mxu0 %v4529
      %v4898 = vpop.f32.mrb[0].mxu0
      %v4899 = vadd.f32 %v4612, %v4898
      %v4900 = vpop.f32.mrb[0].mxu0
      %4901 = vmatprep.mubr.f32.mxu0 %v4533
      %4902 = vmatmul.mubr.f32.gmra.mrb[0].mxu0 %v4532
      %v4903 = vpop.f32.mrb[0].mxu0
      %v4904 = vadd.f32 %v4612, %v4903
      %v4905 = vpop.f32.mrb[0].mxu0
      %4906 = vmatprep.mubr.f32.mxu0 %v4536
      %4907 = vmatmul.mubr.f32.gmra.mrb[0].mxu0 %v4535
      %v4908 = vpop.f32.mrb[0].mxu0
      %v4909 = vadd.f32 %v4612, %v4908
      %v4910 = vpop.f32.mrb[0].mxu0
      %4911 = vmatprep.mubr.f32.mxu0 %v4539
      %4912 = vmatmul.mubr.f32.gmra.mrb[0].mxu0 %v4538
      %v4913 = vpop.f32.mrb[0].mxu0
      %v4914 = vadd.f32 %v4612, %v4913
      %v4915 = vpop.f32.mrb[0].mxu0
      %4916 = vmatprep.mubr.f32.mxu0 %v4542
      %4917 = vmatmul.mubr.f32.gmra.mrb[0].mxu0 %v4541
      %v4918 = vpop.f32.mrb[0].mxu0
      %v4919 = vadd.f32 %v4612, %v4918
      %v4920 = vpop.f32.mrb[0].mxu0
      %4921 = vmatprep.mubr.f32.mxu0 %v4545
      %4922 = vmatmul.mubr.f32.gmra.mrb[0].mxu0 %v4544
      %v4923 = vpop.f32.mrb[0].mxu0
      %v4924 = vadd.f32 %v4612, %v4923
      %v4925 = vpop.f32.mrb[0].mxu0
      %4926 = vmatprep.mubr.f32.mxu0 %v4548
      %4927 = vmatmul.mubr.f32.gmra.mrb[0].mxu0 %v4547
      %v4928 = vpop.f32.mrb[0].mxu0
      %v4929 = vadd.f32 %v4612, %v4928
      %v4930 = vpop.f32.mrb[0].mxu0
      %4931 = vmatprep.mubr.f32.mxu0 %v4551
      %4932 = vmatmul.mubr.f32.gmra.mrb[0].mxu0 %v4550
      %v4933 = vpop.f32.mrb[0].mxu0
      %v4934 = vadd.f32 %v4612, %v4933
      %v4935 = vpop.f32.mrb[0].mxu0
      %4936 = vmatprep.mubr.f32.mxu0 %v4554
      %4937 = vmatmul.mubr.f32.gmra.mrb[0].mxu0 %v4553
      %v4938 = vpop.f32.mrb[0].mxu0
      %v4939 = vadd.f32 %v4612, %v4938
      %v4940 = vpop.f32.mrb[0].mxu0
      %4941 = vmatprep.mubr.f32.mxu0 %v4557
      %4942 = vmatmul.mubr.f32.gmra.mrb[0].mxu0 %v4556
      %v4943 = vpop.f32.mrb[0].mxu0
      %v4944 = vadd.f32 %v4612, %v4943
      %v4945 = vpop.f32.mrb[0].mxu0
      %4946 = vmatprep.mubr.f32.mxu0 %v4560
      %4947 = vmatmul.mubr.f32.gmra.mrb[0].mxu0 %v4559
      %v4948 = vpop.f32.mrb[0].mxu0
      %v4949 = vadd.f32 %v4612, %v4948
      %v4950 = vpop.f32.mrb[0].mxu0
      %4951 = vmatprep.mubr.f32.mxu0 %v4563
      %4952 = vmatmul.mubr.f32.gmra.mrb[0].mxu0 %v4562
      %v4953 = vpop.f32.mrb[0].mxu0
      %v4954 = vadd.f32 %v4612, %v4953
      %v4955 = vpop.f32.mrb[0].mxu0
      %4956 = vmatprep.mubr.f32.mxu0 %v4566
      %4957 = vmatmul.mubr.f32.gmra.mrb[0].mxu0 %v4565
      %v4958 = vpop.f32.mrb[0].mxu0
      %v4959 = vadd.f32 %v4612, %v4958
      %v4960 = vpop.f32.mrb[0].mxu0
      %4961 = vmatprep.mubr.f32.mxu0 %v4569
      %4962 = vmatmul.mubr.f32.gmra.mrb[0].mxu0 %v4568
      %v4963 = vpop.f32.mrb[0].mxu0
      %v4964 = vadd.f32 %v4612, %v4963
      %v4965 = vpop.f32.mrb[0].mxu0
      %4966 = vdwg.mxu0
      %4967 = vmatprep.subr.mxu0 0.0
      %4968 = vmatpush1.msra.mxu0 %v4603
      %4969 = vmatprep.subr.mxu0 0.0
      %4970 = vmatpush1.msra.mxu0 %v4604
      %4971 = vmatprep.subr.mxu0 0.0
      %4972 = vmatpush1.msra.mxu0 %v4605
      %4973 = vmatprep.subr.mxu0 0.0
      %4974 = vmatpush1.msra.mxu0 %v4606
      %4975 = vmatprep.subr.mxu0 0.0
      %4976 = vmatpush1.msra.mxu0 0.0
      %4977 = vmatprep.subr.mxu0 0.0
      %4978 = vmatpush1.msra.mxu0 0.0
      %4979 = vmatprep.subr.mxu0 0.0
      %4980 = vmatpush1.msra.mxu0 0.0
      %4981 = vmatprep.subr.mxu0 0.0
      %4982 = vmatpush1.msra.mxu0 0.0
      %4983 = vmatprep.subr.mxu0 0.0
      %4984 = vmatpush1.msra.mxu0 0.0
      %4985 = vmatprep.subr.mxu0 0.0
      %4986 = vmatpush1.msra.mxu0 0.0
      %4987 = vmatprep.subr.mxu0 0.0
      %4988 = vmatpush1.msra.mxu0 0.0
      %4989 = vmatprep.subr.mxu0 0.0
      %4990 = vmatpush1.msra.mxu0 0.0
      %4991 = vmatprep.subr.mxu0 0.0
      %4992 = vmatpush1.msra.mxu0 0.0
      %4993 = vmatprep.subr.mxu0 0.0
      %4994 = vmatpush1.msra.mxu0 0.0
      %4995 = vmatprep.subr.mxu0 0.0
      %4996 = vmatpush1.msra.mxu0 0.0
      %4997 = vmatprep.subr.mxu0 0.0
      %4998 = vmatpush1.msra.mxu0 0.0
      %4999 = vmatprep.subr.mxu0 0.0
      %5000 = vmatpush1.msra.mxu0 0.0
      %5001 = vmatprep.subr.mxu0 0.0
      %5002 = vmatpush1.msra.mxu0 0.0
      %5003 = vmatprep.subr.mxu0 0.0
      %5004 = vmatpush1.msra.mxu0 0.0
      %5005 = vmatprep.subr.mxu0 0.0
      %5006 = vmatpush1.msra.mxu0 0.0
      %5007 = vmatprep.subr.mxu0 0.0
      %5008 = vmatpush1.msra.mxu0 0.0
      %5009 = vmatprep.subr.mxu0 0.0
      %5010 = vmatpush1.msra.mxu0 0.0
      %5011 = vmatprep.subr.mxu0 0.0
      %5012 = vmatpush1.msra.mxu0 0.0
      %5013 = vmatprep.subr.mxu0 0.0
      %5014 = vmatpush1.msra.mxu0 0.0
      %5015 = vmatprep.subr.mxu0 0.0
      %5016 = vmatpush1.msra.mxu0 0.0
      %5017 = vmatprep.subr.mxu0 0.0
      %5018 = vmatpush1.msra.mxu0 0.0
      %5019 = vmatprep.subr.mxu0 0.0
      %5020 = vmatpush1.msra.mxu0 0.0
      %5021 = vmatprep.subr.mxu0 0.0
      %5022 = vmatpush1.msra.mxu0 0.0
      %5023 = vmatprep.subr.mxu0 0.0
      %5024 = vmatpush1.msra.mxu0 0.0
      %5025 = vmatprep.subr.mxu0 0.0
      %5026 = vmatpush1.msra.mxu0 0.0
      %5027 = vmatprep.subr.mxu0 0.0
      %5028 = vmatpush1.msra.mxu0 0.0
      %5029 = vmatprep.subr.mxu0 0.0
      %5030 = vmatpush1.msra.mxu0 0.0
      %5031 = vmatprep.mubr.f32.mxu0 0.0
      %5032 = vmatmul.mubr.f32.gmra.mrb[0].mxu0 %v4615
      %v5033 = vpop.f32.mrb[0].mxu0
      %v5034 = vadd.f32 %v4789, %v5033
      %v5035 = vpop.f32.mrb[0].mxu0
      %5036 = vmatprep.mubr.f32.mxu0 0.0
      %5037 = vmatmul.mubr.f32.gmra.mrb[0].mxu0 %v4618
      %v5038 = vpop.f32.mrb[0].mxu0
      %v5039 = vadd.f32 %v4794, %v5038
      %v5040 = vpop.f32.mrb[0].mxu0
      %5041 = vmatprep.mubr.f32.mxu0 0.0
      %5042 = vmatmul.mubr.f32.gmra.mrb[0].mxu0 %v4621
      %v5043 = vpop.f32.mrb[0].mxu0
      %v5044 = vadd.f32 %v4799, %v5043
      %v5045 = vpop.f32.mrb[0].mxu0
      %5046 = vmatprep.mubr.f32.mxu0 0.0
      %5047 = vmatmul.mubr.f32.gmra.mrb[0].mxu0 %v4624
      %v5048 = vpop.f32.mrb[0].mxu0
      %v5049 = vadd.f32 %v4804, %v5048
      %v5050 = vpop.f32.mrb[0].mxu0
      %5051 = vmatprep.mubr.f32.mxu0 0.0
      %5052 = vmatmul.mubr.f32.gmra.mrb[0].mxu0 %v4627
      %v5053 = vpop.f32.mrb[0].mxu0
      %v5054 = vadd.f32 %v4809, %v5053
      %v5055 = vpop.f32.mrb[0].mxu0
      %5056 = vmatprep.mubr.f32.mxu0 0.0
      %5057 = vmatmul.mubr.f32.gmra.mrb[0].mxu0 %v4630
      %v5058 = vpop.f32.mrb[0].mxu0
      %v5059 = vadd.f32 %v4814, %v5058
      %v5060 = vpop.f32.mrb[0].mxu0
      %5061 = vmatprep.mubr.f32.mxu0 0.0
      %5062 = vmatmul.mubr.f32.gmra.mrb[0].mxu0 %v4633
      %v5063 = vpop.f32.mrb[0].mxu0
      %v5064 = vadd.f32 %v4819, %v5063
      %v5065 = vpop.f32.mrb[0].mxu0
      %5066 = vmatprep.mubr.f32.mxu0 0.0
      %5067 = vmatmul.mubr.f32.gmra.mrb[0].mxu0 %v4636
      %v5068 = vpop.f32.mrb[0].mxu0
      %v5069 = vadd.f32 %v4824, %v5068
      %v5070 = vpop.f32.mrb[0].mxu0
      %5071 = vmatprep.mubr.f32.mxu0 0.0
      %5072 = vmatmul.mubr.f32.gmra.mrb[0].mxu0 %v4639
      %v5073 = vpop.f32.mrb[0].mxu0
      %v5074 = vadd.f32 %v4829, %v5073
      %v5075 = vpop.f32.mrb[0].mxu0
      %5076 = vmatprep.mubr.f32.mxu0 0.0
      %5077 = vmatmul.mubr.f32.gmra.mrb[0].mxu0 %v4642
      %v5078 = vpop.f32.mrb[0].mxu0
      %v5079 = vadd.f32 %v4834, %v5078
      %v5080 = vpop.f32.mrb[0].mxu0
      %5081 = vmatprep.mubr.f32.mxu0 0.0
      %5082 = vmatmul.mubr.f32.gmra.mrb[0].mxu0 %v4645
      %v5083 = vpop.f32.mrb[0].mxu0
      %v5084 = vadd.f32 %v4839, %v5083
      %v5085 = vpop.f32.mrb[0].mxu0
      %5086 = vmatprep.mubr.f32.mxu0 0.0
      %5087 = vmatmul.mubr.f32.gmra.mrb[0].mxu0 %v4648
      %v5088 = vpop.f32.mrb[0].mxu0
      %v5089 = vadd.f32 %v4844, %v5088
      %v5090 = vpop.f32.mrb[0].mxu0
      %5091 = vmatprep.mubr.f32.mxu0 0.0
      %5092 = vmatmul.mubr.f32.gmra.mrb[0].mxu0 %v4651
      %v5093 = vpop.f32.mrb[0].mxu0
      %v5094 = vadd.f32 %v4849, %v5093
      %v5095 = vpop.f32.mrb[0].mxu0
      %5096 = vmatprep.mubr.f32.mxu0 0.0
      %5097 = vmatmul.mubr.f32.gmra.mrb[0].mxu0 %v4654
      %v5098 = vpop.f32.mrb[0].mxu0
      %v5099 = vadd.f32 %v4854, %v5098
      %v5100 = vpop.f32.mrb[0].mxu0
      %5101 = vmatprep.mubr.f32.mxu0 0.0
      %5102 = vmatmul.mubr.f32.gmra.mrb[0].mxu0 %v4657
      %v5103 = vpop.f32.mrb[0].mxu0
      %v5104 = vadd.f32 %v4859, %v5103
      %v5105 = vpop.f32.mrb[0].mxu0
      %5106 = vmatprep.mubr.f32.mxu0 0.0
      %5107 = vmatmul.mubr.f32.gmra.mrb[0].mxu0 %v4660
      %v5108 = vpop.f32.mrb[0].mxu0
      %v5109 = vadd.f32 %v4864, %v5108
      %v5110 = vpop.f32.mrb[0].mxu0
      %5111 = vmatprep.mubr.f32.mxu0 0.0
      %5112 = vmatmul.mubr.f32.gmra.mrb[0].mxu0 %v4663
      %v5113 = vpop.f32.mrb[0].mxu0
      %v5114 = vadd.f32 %v4869, %v5113
      %v5115 = vpop.f32.mrb[0].mxu0
      %5116 = vmatprep.mubr.f32.mxu0 0.0
      %5117 = vmatmul.mubr.f32.gmra.mrb[0].mxu0 %v4666
      %v5118 = vpop.f32.mrb[0].mxu0
      %v5119 = vadd.f32 %v4874, %v5118
      %v5120 = vpop.f32.mrb[0].mxu0
      %5121 = vmatprep.mubr.f32.mxu0 0.0
      %5122 = vmatmul.mubr.f32.gmra.mrb[0].mxu0 %v4669
      %v5123 = vpop.f32.mrb[0].mxu0
      %v5124 = vadd.f32 %v4879, %v5123
      %v5125 = vpop.f32.mrb[0].mxu0
      %5126 = vmatprep.mubr.f32.mxu0 0.0
      %5127 = vmatmul.mubr.f32.gmra.mrb[0].mxu0 %v4672
      %v5128 = vpop.f32.mrb[0].mxu0
      %v5129 = vadd.f32 %v4884, %v5128
      %v5130 = vpop.f32.mrb[0].mxu0
      %5131 = vmatprep.mubr.f32.mxu0 0.0
      %5132 = vmatmul.mubr.f32.gmra.mrb[0].mxu0 %v4675
      %v5133 = vpop.f32.mrb[0].mxu0
      %v5134 = vadd.f32 %v4889, %v5133
      %v5135 = vpop.f32.mrb[0].mxu0
      %5136 = vmatprep.mubr.f32.mxu0 0.0
      %5137 = vmatmul.mubr.f32.gmra.mrb[0].mxu0 %v4678
      %v5138 = vpop.f32.mrb[0].mxu0
      %v5139 = vadd.f32 %v4894, %v5138
      %v5140 = vpop.f32.mrb[0].mxu0
      %5141 = vmatprep.mubr.f32.mxu0 0.0
      %5142 = vmatmul.mubr.f32.gmra.mrb[0].mxu0 %v4681
      %v5143 = vpop.f32.mrb[0].mxu0
      %v5144 = vadd.f32 %v4899, %v5143
      %v5145 = vpop.f32.mrb[0].mxu0
      %5146 = vmatprep.mubr.f32.mxu0 0.0
      %5147 = vmatmul.mubr.f32.gmra.mrb[0].mxu0 %v4684
      %v5148 = vpop.f32.mrb[0].mxu0
      %v5149 = vadd.f32 %v4904, %v5148
      %v5150 = vpop.f32.mrb[0].mxu0
      %5151 = vmatprep.mubr.f32.mxu0 0.0
      %5152 = vmatmul.mubr.f32.gmra.mrb[0].mxu0 %v4687
      %v5153 = vpop.f32.mrb[0].mxu0
      %v5154 = vadd.f32 %v4909, %v5153
      %v5155 = vpop.f32.mrb[0].mxu0
      %5156 = vmatprep.mubr.f32.mxu0 0.0
      %5157 = vmatmul.mubr.f32.gmra.mrb[0].mxu0 %v4690
      %v5158 = vpop.f32.mrb[0].mxu0
      %v5159 = vadd.f32 %v4914, %v5158
      %v5160 = vpop.f32.mrb[0].mxu0
      %5161 = vmatprep.mubr.f32.mxu0 0.0
      %5162 = vmatmul.mubr.f32.gmra.mrb[0].mxu0 %v4693
      %v5163 = vpop.f32.mrb[0].mxu0
      %v5164 = vadd.f32 %v4919, %v5163
      %v5165 = vpop.f32.mrb[0].mxu0
      %5166 = vmatprep.mubr.f32.mxu0 0.0
      %5167 = vmatmul.mubr.f32.gmra.mrb[0].mxu0 %v4696
      %v5168 = vpop.f32.mrb[0].mxu0
      %v5169 = vadd.f32 %v4924, %v5168
      %v5170 = vpop.f32.mrb[0].mxu0
      %5171 = vmatprep.mubr.f32.mxu0 0.0
      %5172 = vmatmul.mubr.f32.gmra.mrb[0].mxu0 %v4699
      %v5173 = vpop.f32.mrb[0].mxu0
      %v5174 = vadd.f32 %v4929, %v5173
      %v5175 = vpop.f32.mrb[0].mxu0
      %5176 = vmatprep.mubr.f32.mxu0 0.0
      %5177 = vmatmul.mubr.f32.gmra.mrb[0].mxu0 %v4702
      %v5178 = vpop.f32.mrb[0].mxu0
      %v5179 = vadd.f32 %v4934, %v5178
      %v5180 = vpop.f32.mrb[0].mxu0
      %5181 = vmatprep.mubr.f32.mxu0 0.0
      %5182 = vmatmul.mubr.f32.gmra.mrb[0].mxu0 %v4705
      %v5183 = vpop.f32.mrb[0].mxu0
      %v5184 = vadd.f32 %v4939, %v5183
      %v5185 = vpop.f32.mrb[0].mxu0
      %5186 = vmatprep.mubr.f32.mxu0 0.0
      %5187 = vmatmul.mubr.f32.gmra.mrb[0].mxu0 %v4708
      %v5188 = vpop.f32.mrb[0].mxu0
      %v5189 = vadd.f32 %v4944, %v5188
      %v5190 = vpop.f32.mrb[0].mxu0
      %5191 = vmatprep.mubr.f32.mxu0 0.0
      %5192 = vmatmul.mubr.f32.gmra.mrb[0].mxu0 %v4711
      %v5193 = vpop.f32.mrb[0].mxu0
      %v5194 = vadd.f32 %v4949, %v5193
      %v5195 = vpop.f32.mrb[0].mxu0
      %5196 = vmatprep.mubr.f32.mxu0 0.0
      %5197 = vmatmul.mubr.f32.gmra.mrb[0].mxu0 %v4714
      %v5198 = vpop.f32.mrb[0].mxu0
      %v5199 = vadd.f32 %v4954, %v5198
      %v5200 = vpop.f32.mrb[0].mxu0
      %5201 = vmatprep.mubr.f32.mxu0 0.0
      %5202 = vmatmul.mubr.f32.gmra.mrb[0].mxu0 %v4717
      %v5203 = vpop.f32.mrb[0].mxu0
      %v5204 = vadd.f32 %v4959, %v5203
      %v5205 = vpop.f32.mrb[0].mxu0
      %5206 = vmatprep.mubr.f32.mxu0 0.0
      %5207 = vmatmul.mubr.f32.gmra.mrb[0].mxu0 %v4720
      %v5208 = vpop.f32.mrb[0].mxu0
      %v5209 = vadd.f32 %v4964, %v5208
      %v5210 = vpop.f32.mrb[0].mxu0
      %5211 = vdwg.mxu0
      %v5212 = vld [vmem:[#allocation2 + $0x13] sm:$0xff]
      %v5213 = vld [vmem:[#allocation2 + $0x1b] sm:$0xff]
      %v5214 = vld [vmem:[#allocation2 + $0x23] sm:$0xff]
      %v5215 = vld [vmem:[#allocation2 + $0x2b] sm:$0xff]
      %v5216 = vld [vmem:[#allocation2 + $0x33] sm:$0xff]
      %v5217 = vld [vmem:[#allocation2 + $0x3b] sm:$0xff]
      %v5218 = vld [vmem:[#allocation2 + $0x43] sm:$0xff]
      %v5219 = vld [vmem:[#allocation2 + $0x4b] sm:$0xff]
      %v5220 = vld [vmem:[#allocation2 + $0x53] sm:$0xff]
      %v5221 = vld [vmem:[#allocation2 + $0x5b] sm:$0xff]
      %v5222 = vld [vmem:[#allocation2 + $0x63] sm:$0xff]
      %v5223 = vld [vmem:[#allocation2 + $0x6b] sm:$0xff]
      %v5224 = vld [vmem:[#allocation2 + $0x73] sm:$0xff]
      %v5225 = vld [vmem:[#allocation2 + $0x7b] sm:$0xff]
      %v5226 = vld [vmem:[#allocation2 + $0x83] sm:$0xff]
      %v5227 = vld [vmem:[#allocation2 + $0x8b] sm:$0xff]
      %v5228 = vld [vmem:[#allocation2 + $0x93] sm:$0xff]
      %v5229 = vld [vmem:[#allocation2 + $0x9b] sm:$0xff]
      %v5230 = vld [vmem:[#allocation2 + $0xa3] sm:$0xff]
      %v5231 = vld [vmem:[#allocation2 + $0xab] sm:$0xff]
      %v5232 = vld [vmem:[#allocation2 + $0xb3] sm:$0xff]
      %v5233 = vld [vmem:[#allocation2 + $0xbb] sm:$0xff]
      %v5234 = vld [vmem:[#allocation2 + $0xc3] sm:$0xff]
      %v5235 = vld [vmem:[#allocation2 + $0xcb] sm:$0xff]
      %v5236 = vld [vmem:[#allocation2 + $0xd3] sm:$0xff]
      %v5237 = vld [vmem:[#allocation2 + $0xdb] sm:$0xff]
      %v5238 = vld [vmem:[#allocation2 + $0xe3] sm:$0xff]
      %v5239 = vld [vmem:[#allocation2 + $0xeb] sm:$0xff]
      %v5240 = vld [vmem:[#allocation2 + $0xf3] sm:$0xff]
      %v5241 = vld [vmem:[#allocation2 + $0xfb] sm:$0xff]
      %v5242 = vld [vmem:[#allocation2 + $0x103] sm:$0xff]
      %v5243 = vld [vmem:[#allocation2 + $0x10b] sm:$0xff]
      %v5244 = vld [vmem:[#allocation2 + $0x113] sm:$0xff]
      %v5245 = vld [vmem:[#allocation2 + $0x11b] sm:$0xff]
      %v5246 = vld [vmem:[#allocation2 + $0x123] sm:$0xff]
      %v5247 = vld [vmem:[#allocation2 + $0x12b] sm:$0xff]
      %v5248 = vadd.f32 %v5034, %v5212
      %v5249 = vadd.f32 %v5039, %v5213
      %v5250 = vadd.f32 %v5044, %v5214
      %v5251 = vadd.f32 %v5049, %v5215
      %v5252 = vadd.f32 %v5054, %v5216
      %v5253 = vadd.f32 %v5059, %v5217
      %v5254 = vadd.f32 %v5064, %v5218
      %v5255 = vadd.f32 %v5069, %v5219
      %v5256 = vadd.f32 %v5074, %v5220
      %v5257 = vadd.f32 %v5079, %v5221
      %v5258 = vadd.f32 %v5084, %v5222
      %v5259 = vadd.f32 %v5089, %v5223
      %v5260 = vadd.f32 %v5094, %v5224
      %v5261 = vadd.f32 %v5099, %v5225
      %v5262 = vadd.f32 %v5104, %v5226
      %v5263 = vadd.f32 %v5109, %v5227
      %v5264 = vadd.f32 %v5114, %v5228
      %v5265 = vadd.f32 %v5119, %v5229
      %v5266 = vadd.f32 %v5124, %v5230
      %v5267 = vadd.f32 %v5129, %v5231
      %v5268 = vadd.f32 %v5134, %v5232
      %v5269 = vadd.f32 %v5139, %v5233
      %v5270 = vadd.f32 %v5144, %v5234
      %v5271 = vadd.f32 %v5149, %v5235
      %v5272 = vadd.f32 %v5154, %v5236
      %v5273 = vadd.f32 %v5159, %v5237
      %v5274 = vadd.f32 %v5164, %v5238
      %v5275 = vadd.f32 %v5169, %v5239
      %v5276 = vadd.f32 %v5174, %v5240
      %v5277 = vadd.f32 %v5179, %v5241
      %v5278 = vadd.f32 %v5184, %v5242
      %v5279 = vadd.f32 %v5189, %v5243
      %v5280 = vadd.f32 %v5194, %v5244
      %v5281 = vadd.f32 %v5199, %v5245
      %v5282 = vadd.f32 %v5204, %v5246
      %v5283 = vadd.f32 %v5209, %v5247
      %v5284 = vmax.f32 %v5248, 0.0
      %v5285 = vmax.f32 %v5249, 0.0
      %v5286 = vmax.f32 %v5250, 0.0
      %v5287 = vmax.f32 %v5251, 0.0
      %v5288 = vmax.f32 %v5252, 0.0
      %v5289 = vmax.f32 %v5253, 0.0
      %v5290 = vmax.f32 %v5254, 0.0
      %v5291 = vmax.f32 %v5255, 0.0
      %v5292 = vmax.f32 %v5256, 0.0
      %v5293 = vmax.f32 %v5257, 0.0
      %v5294 = vmax.f32 %v5258, 0.0
      %v5295 = vmax.f32 %v5259, 0.0
      %v5296 = vmax.f32 %v5260, 0.0
      %v5297 = vmax.f32 %v5261, 0.0
      %v5298 = vmax.f32 %v5262, 0.0
      %v5299 = vmax.f32 %v5263, 0.0
      %v5300 = vmax.f32 %v5264, 0.0
      %v5301 = vmax.f32 %v5265, 0.0
      %v5302 = vmax.f32 %v5266, 0.0
      %v5303 = vmax.f32 %v5267, 0.0
      %v5304 = vmax.f32 %v5268, 0.0
      %v5305 = vmax.f32 %v5269, 0.0
      %v5306 = vmax.f32 %v5270, 0.0
      %v5307 = vmax.f32 %v5271, 0.0
      %v5308 = vmax.f32 %v5272, 0.0
      %v5309 = vmax.f32 %v5273, 0.0
      %v5310 = vmax.f32 %v5274, 0.0
      %v5311 = vmax.f32 %v5275, 0.0
      %v5312 = vmax.f32 %v5276, 0.0
      %v5313 = vmax.f32 %v5277, 0.0
      %v5314 = vmax.f32 %v5278, 0.0
      %v5315 = vmax.f32 %v5279, 0.0
      %v5316 = vmax.f32 %v5280, 0.0
      %v5317 = vmax.f32 %v5281, 0.0
      %v5318 = vmax.f32 %v5282, 0.0
      %v5319 = vmax.f32 %v5283, 0.0
      %5320 = vst.msk [vmem:[%s251] sm:$0xff] %vm252, %v5284
      %5321 = vst.msk [vmem:[%s251 + $0x8] sm:$0xff] %vm252, %v5285
      %5322 = vst.msk [vmem:[%s251 + $0x10] sm:$0xff] %vm252, %v5286
      %5323 = vst.msk [vmem:[%s251 + $0x18] sm:$0xff] %vm252, %v5287
      %5324 = vst.msk [vmem:[%s251 + $0x20] sm:$0xff] %vm252, %v5288
      %5325 = vst.msk [vmem:[%s251 + $0x28] sm:$0xff] %vm252, %v5289
      %5326 = vst.msk [vmem:[%s251 + $0x30] sm:$0xff] %vm252, %v5290
      %5327 = vst.msk [vmem:[%s251 + $0x38] sm:$0xff] %vm252, %v5291
      %5328 = vst.msk [vmem:[%s251 + $0x40] sm:$0xff] %vm252, %v5292
      %5329 = vst.msk [vmem:[%s251 + $0x48] sm:$0xff] %vm252, %v5293
      %5330 = vst.msk [vmem:[%s251 + $0x50] sm:$0xff] %vm252, %v5294
      %5331 = vst.msk [vmem:[%s251 + $0x58] sm:$0xff] %vm252, %v5295
      %5332 = vst.msk [vmem:[%s251 + $0x60] sm:$0xff] %vm252, %v5296
      %5333 = vst.msk [vmem:[%s251 + $0x68] sm:$0xff] %vm252, %v5297
      %5334 = vst.msk [vmem:[%s251 + $0x70] sm:$0xff] %vm252, %v5298
      %5335 = vst.msk [vmem:[%s251 + $0x78] sm:$0xff] %vm252, %v5299
      %5336 = vst.msk [vmem:[%s251 + $0x80] sm:$0xff] %vm252, %v5300
      %5337 = vst.msk [vmem:[%s251 + $0x88] sm:$0xff] %vm252, %v5301
      %5338 = vst.msk [vmem:[%s251 + $0x90] sm:$0xff] %vm252, %v5302
      %5339 = vst.msk [vmem:[%s251 + $0x98] sm:$0xff] %vm252, %v5303
      %5340 = vst.msk [vmem:[%s251 + $0xa0] sm:$0xff] %vm252, %v5304
      %5341 = vst.msk [vmem:[%s251 + $0xa8] sm:$0xff] %vm252, %v5305
      %5342 = vst.msk [vmem:[%s251 + $0xb0] sm:$0xff] %vm252, %v5306
      %5343 = vst.msk [vmem:[%s251 + $0xb8] sm:$0xff] %vm252, %v5307
      %5344 = vst.msk [vmem:[%s251 + $0xc0] sm:$0xff] %vm252, %v5308
      %5345 = vst.msk [vmem:[%s251 + $0xc8] sm:$0xff] %vm252, %v5309
      %5346 = vst.msk [vmem:[%s251 + $0xd0] sm:$0xff] %vm252, %v5310
      %5347 = vst.msk [vmem:[%s251 + $0xd8] sm:$0xff] %vm252, %v5311
      %5348 = vst.msk [vmem:[%s251 + $0xe0] sm:$0xff] %vm252, %v5312
      %5349 = vst.msk [vmem:[%s251 + $0xe8] sm:$0xff] %vm252, %v5313
      %5350 = vst.msk [vmem:[%s251 + $0xf0] sm:$0xff] %vm252, %v5314
      %5351 = vst.msk [vmem:[%s251 + $0xf8] sm:$0xff] %vm252, %v5315
      %5352 = vst.msk [vmem:[%s251 + $0x100] sm:$0xff] %vm252, %v5316
      %5353 = vst.msk [vmem:[%s251 + $0x108] sm:$0xff] %vm252, %v5317
      %5354 = vst.msk [vmem:[%s251 + $0x110] sm:$0xff] %vm252, %v5318
      %5355 = vst.msk [vmem:[%s251 + $0x118] sm:$0xff] %vm252, %v5319
      %p5356 = scmp.lt.s32.totalorder %s17, 1
      %s5357 = scalar_select %p5356, %s17, 1
      %s5358 = smul.addr %s5357, 36
      %s5359 = smul.addr %s5358, 8
      %s5360 = scalar_lea.vmem %s6, %s5359
      // Predicated region
      $region45: #{tpu_custom_call.1} parent=43 // pred_check
        %p5361 = pneg %p166
      $region46: #{tpu_custom_call.1} parent=43 // pred_check_branch
        %5363 = sbr.rel (%p5361) target = $region48
      $region47: #{tpu_custom_call.1} parent=43 // pred_region
        _
      $region48: #{tpu_custom_call.1} parent=43 // pred_fallthru
        _
    $region44: #{tpu_custom_call.1} parent=5 // pred_fallthru
      _
    %p5364 = scmp.le.s32.totalorder 2, %s12
    // Predicated region
    $region49: #{tpu_custom_call.1} parent=5 // pred_check
      %p5365 = pneg %p5364
    $region50: #{tpu_custom_call.1} parent=5 // pred_check_branch
      %5367 = sbr.rel (%p5365) target = $region52
    $region51: #{tpu_custom_call.1} parent=5 // pred_region
      %s5368 = ssub.s32 %s12, 2
      // Predicated region
      $region53: #{tpu_custom_call.1} parent=51 // pred_check
        %p5369 = pneg %p172
      $region54: #{tpu_custom_call.1} parent=51 // pred_check_branch
        %5371 = sbr.rel (%p5369) target = $region56
      $region55: #{tpu_custom_call.1} parent=51 // pred_region
        %p5372 = scmp.lt.s32.totalorder %s18, 1
        %s5373 = scalar_select %p5372, %s18, 1
        %s5374 = smul.addr %s5373, 36
        %s5375 = smul.addr %s5374, 8
        %s5376 = scalar_lea.vmem %s6, %s5375
      $region56: #{tpu_custom_call.1} parent=51 // pred_fallthru
        _
    $region52: #{tpu_custom_call.1} parent=5 // pred_fallthru
      _
  $region6: #{tpu_custom_call.1} parent=0 // loop_footer
    %s16 = sadd.s32 1, %s12
  $region7: #{tpu_custom_call.1} parent=0 // loop_footer_branch
    %11 = sbr.rel target = $region3
  $region8: #{tpu_custom_call.1} parent=0 // loop_exit
    _

</llo_original>
